<compile_context>
chip_gen: v7x
topology: tpu7x:2x2x1
jax: 0.10.0
libtpu: 0.0.40
codegen_flags: <defaults>
</compile_context>

<pallas_src>
import functools
import math

import jax
import jax.numpy as jnp
from jax.experimental import pallas as pl
from jax.experimental.pallas import tpu as pltpu

# ----------------------------- "config" ------------------------------------
NF = 32                      # config.model.hidden
NUM_HYBRID_LAYERS = 2        # config.model.num_hybrid_layers
RW_DEPTH = 8                 # config.model.rw_depth
ATOM_CH = 8                  # config.data.atom_channels
BOND_CH = 1                  # config.data.bond_channels (asserted == 1)
N_HEAD_XATTN = 2
CENTERED = False             # config.data.centered
CONDITIONAL = True

BOND_SE_CH = int(NF * 0.5)                       # 16
ATOM_SE_CH = int(NF * 0.2)                       # 6
ATOM_TYPE_CH = NF - 2 * ATOM_SE_CH               # 20
CAT_DIM = NF * 2 // NUM_HYBRID_LAYERS            # 32

SPD_CH = RW_DEPTH + 1                            # 9
SPD_PAD = ((SPD_CH + 7) // 8) * 8                # 16  (aligned contraction dim)
ATOM_SE_PAD = ((ATOM_SE_CH + 7) // 8) * 8        # 8
ATOM_TYPE_PAD = ((ATOM_TYPE_CH + 7) // 8) * 8    # 24


def _round_up(x, m):
    return ((x + m - 1) // m) * m


def _pick_tile(m, unit, max_tile):
    """Tile size: multiple of `unit`, <= max_tile.  Split into a 2-step grid
    (megacore) only when it costs no extra padding."""
    mp = _round_up(m, unit)
    t = min(max_tile, mp)
    if mp // t < 2 and mp >= 2 * unit:
        half = _round_up(mp // 2, unit)
        if mp % half == 0:
            t = half
    return t


def _swish(x):
    return x * jax.nn.sigmoid(x)


def _dot(a, b):
    return jnp.dot(a, b, preferred_element_type=jnp.float32)


# ===================== fused EDGE chain (channel-first) ======================
def _edge_chain_kernel(xex_ref, spdi_ref, m_ref, *refs):
    (w_ex, b_ex, w_spd, b_spd,
     w_mix_ex, w_mix_spd, b_mix,
     w_bh0, b_bh0, w_bh1, b_bh1,
     w_bo0_ex, w_bo0_h0, w_bo0_h1, b_bo0,
     w_bo1, b_bo1, w_bo2, b_bo2,
     o_ref) = refs

    m = m_ref[...]                                        # (1, TM) 0/1 pixel mask
    x_ex = xex_ref[...]                                   # (1, TM) raw bond value

    # SPD one-hot built in-register from the int32 class index (never hits HBM).
    ch = jax.lax.broadcasted_iota(jnp.int32, (SPD_PAD, 1), 0)
    spd_oh = (spdi_ref[...] == ch).astype(jnp.float32)    # (16, TM)

    # conv1x1(1 -> bond_se_ch) on raw bond, conv1x1(spd one-hot) -- both masked.
    de = (w_ex[...] * x_ex + b_ex[...]) * m               # (16, TM)
    ds = (_dot(w_spd[...], spd_oh) + b_spd[...]) * m      # (16, TM)

    # edge_mix on cat([dense_exist, dense_spd])  (weight split -> two dots).
    dedge = (_dot(w_mix_ex[...], de) + _dot(w_mix_spd[...], ds) + b_mix[...]) * m

    # TODO(synk): HybridBlock would update (x_atom, h_dense_edge) here; its internals
    # are not provided in the reference -> identity passthrough of dense_edge.
    bh0 = _dot(w_bh0[...], dedge) + b_bh0[...]            # bond_hid0
    bh1 = _dot(w_bh1[...], dedge) + b_bh1[...]            # bond_hid1

    # bond head (conv1x1 stack) on cat([dense_exist, bond_hid0, bond_hid1]).
    e = (_dot(w_bo0_ex[...], de) + _dot(w_bo0_h0[...], bh0)
         + _dot(w_bo0_h1[...], bh1) + b_bo0[...])
    e = _swish(e) * m
    e = _swish(_dot(w_bo1[...], e) + b_bo1[...])
    # final 1-channel projection as a sublane reduce -> lane-dense (1, TM) store.
    ex = jnp.sum(w_bo2[...] * e, axis=0, keepdims=True) + b_bo2[...]
    o_ref[...] = ex.astype(o_ref.dtype)


def _edge_chain(params, x_ex, spd_idx, m_edge):
    """Fused edge-pixel chain.  Inputs are (C, B*N*N) channel-first slabs."""
    M = x_ex.shape[1]
    TM = _pick_tile(M, 128, 1024)
    Mp = _round_up(M, TM)
    if Mp != M:
        pad = ((0, 0), (0, Mp - M))
        x_ex = jnp.pad(x_ex, pad)
        spd_idx = jnp.pad(spd_idx, pad)
        m_edge = jnp.pad(m_edge, pad)

    col = lambda b: b.reshape(-1, 1)
    w_mix_t = params["edge_mix_w"].T                      # (nf, 2*bond_se)
    w_bo0_t = params["bond_out0_w"].T                     # (nf, bond_se + 2*cat_dim)
    weights = [
        params["conv_exist_w"].reshape(BOND_SE_CH, 1), col(params["conv_exist_b"]),
        jnp.pad(params["conv_spd_w"].T, ((0, 0), (0, SPD_PAD - SPD_CH))),
        col(params["conv_spd_b"]),
        w_mix_t[:, :BOND_SE_CH], w_mix_t[:, BOND_SE_CH:], col(params["edge_mix_b"]),
        params["bond_hid0_w"].T, col(params["bond_hid0_b"]),
        params["bond_hid1_w"].T, col(params["bond_hid1_b"]),
        w_bo0_t[:, :BOND_SE_CH],
        w_bo0_t[:, BOND_SE_CH:BOND_SE_CH + CAT_DIM],
        w_bo0_t[:, BOND_SE_CH + CAT_DIM:],
        col(params["bond_out0_b"]),
        params["bond_out1_w"].T, col(params["bond_out1_b"]),
        params["bond_out2_w"], col(params["bond_out2_b"]),
    ]
    data_specs = [
        pl.BlockSpec((1, TM), lambda i: (0, i)),
        pl.BlockSpec((1, TM), lambda i: (0, i)),
        pl.BlockSpec((1, TM), lambda i: (0, i)),
    ]
    w_specs = [pl.BlockSpec(w.shape, lambda i: (0, 0)) for w in weights]

    out = pl.pallas_call(
        _edge_chain_kernel,
        out_shape=jax.ShapeDtypeStruct((1, Mp), jnp.float32),
        grid=(Mp // TM,),
        in_specs=data_specs + w_specs,
        out_specs=pl.BlockSpec((1, TM), lambda i: (0, i)),
        compiler_params=pltpu.CompilerParams(dimension_semantics=("parallel",)),
    )(x_ex, spd_idx, m_edge, *weights)
    return out[:, :M]


# ===================== fused ATOM chain (channel-first) ======================
def _atom_chain_kernel(deg_ref, af_ref, rwl_ref, m_ref, *refs):
    (w_deg, b_deg, w_cate, b_cate, w_rwl, b_rwl,
     w_xa_deg, w_xa_cate, w_xa_rwl, b_xa,
     w_ah0, b_ah0, w_ah1, b_ah1,
     w_ao0_cate, w_ao0_h0, w_ao0_h1, b_ao0,
     w_ao1, b_ao1, w_ao2, b_ao2,
     o_ref) = refs

    m = m_ref[...]                                          # (1, TM) atom mask
    adeg = w_deg[...] * deg_ref[...] + b_deg[...]            # (8, TM)   K==1 -> bcast
    acate = _dot(w_cate[...], af_ref[...]) + b_cate[...]    # (24, TM)
    rwl = _dot(w_rwl[...], rwl_ref[...]) + b_rwl[...]       # (8, TM)

    # x_atom on cat([atom_degree, atom_cate, x_rwl])  (weight split -> 3 dots).
    xa = (_dot(w_xa_deg[...], adeg) + _dot(w_xa_cate[...], acate)
          + _dot(w_xa_rwl[...], rwl) + b_xa[...])           # (nf, TM)

    # TODO(synk): HybridBlock would update x_atom here; identity passthrough.
    ah0 = _dot(w_ah0[...], xa) + b_ah0[...]                 # atom_hid0
    ah1 = _dot(w_ah1[...], xa) + b_ah1[...]                 # atom_hid1

    # atom head on cat([atom_cate, atom_hid0, atom_hid1]).
    a = (_dot(w_ao0_cate[...], acate) + _dot(w_ao0_h0[...], ah0)
         + _dot(w_ao0_h1[...], ah1) + b_ao0[...])
    a = _swish(a) * m
    a = _swish(_dot(w_ao1[...], a) + b_ao1[...])
    a = (_dot(w_ao2[...], a) + b_ao2[...]) * m
    o_ref[...] = a.astype(o_ref.dtype)


def _atom_chain(params, deg, af, rwl, m_atom):
    """Fused atom chain.  Inputs are (C, B*N) channel-first slabs."""
    M = deg.shape[1]
    TM = _pick_tile(M, 128, 1024)
    Mp = _round_up(M, TM)
    if Mp != M:
        pad = ((0, 0), (0, Mp - M))
        deg, af, rwl, m_atom = [jnp.pad(a, pad) for a in (deg, af, rwl, m_atom)]

    col = lambda b: b.reshape(-1, 1)
    pad_r = lambda w, r: jnp.pad(w, ((0, r - w.shape[0]), (0, 0)))
    pad_c = lambda w, c: jnp.pad(w, ((0, 0), (0, c - w.shape[1])))
    w_xa_t = params["x_atom_w"].T        # (nf, 32): cols = [atom_degree | atom_cate | x_rwl]
    w_ao0_t = params["atom_out0_w"].T    # (nf, 84): cols = [atom_cate | atom_hid0 | atom_hid1]
    weights = [
        pad_r(params["atom_deg_w"].T, ATOM_SE_PAD),
        pad_r(col(params["atom_deg_b"]), ATOM_SE_PAD),
        pad_r(params["atom_cate_w"].T, ATOM_TYPE_PAD),
        pad_r(col(params["atom_cate_b"]), ATOM_TYPE_PAD),
        pad_r(params["x_rwl_w"].T, ATOM_SE_PAD),
        pad_r(col(params["x_rwl_b"]), ATOM_SE_PAD),
        pad_c(w_xa_t[:, :ATOM_SE_CH], ATOM_SE_PAD),
        pad_c(w_xa_t[:, ATOM_SE_CH:ATOM_SE_CH + ATOM_TYPE_CH], ATOM_TYPE_PAD),
        pad_c(w_xa_t[:, ATOM_SE_CH + ATOM_TYPE_CH:], ATOM_SE_PAD),
        col(params["x_atom_b"]),
        params["atom_hid0_w"].T, col(params["atom_hid0_b"]),
        params["atom_hid1_w"].T, col(params["atom_hid1_b"]),
        pad_c(w_ao0_t[:, :ATOM_TYPE_CH], ATOM_TYPE_PAD),
        w_ao0_t[:, ATOM_TYPE_CH:ATOM_TYPE_CH + CAT_DIM],
        w_ao0_t[:, ATOM_TYPE_CH + CAT_DIM:],
        col(params["atom_out0_b"]),
        params["atom_out1_w"].T, col(params["atom_out1_b"]),
        params["atom_out2_w"].T, col(params["atom_out2_b"]),
    ]
    data_specs = [
        pl.BlockSpec((1, TM), lambda i: (0, i)),
        pl.BlockSpec((ATOM_CH, TM), lambda i: (0, i)),
        pl.BlockSpec((RW_DEPTH, TM), lambda i: (0, i)),
        pl.BlockSpec((1, TM), lambda i: (0, i)),
    ]
    w_specs = [pl.BlockSpec(w.shape, lambda i: (0, 0)) for w in weights]

    out = pl.pallas_call(
        _atom_chain_kernel,
        out_shape=jax.ShapeDtypeStruct((ATOM_CH, Mp), jnp.float32),
        grid=(Mp // TM,),
        in_specs=data_specs + w_specs,
        out_specs=pl.BlockSpec((ATOM_CH, TM), lambda i: (0, i)),
        compiler_params=pltpu.CompilerParams(dimension_semantics=("parallel",)),
    )(deg, af, rwl, m_atom, *weights)
    return out[:, :M]


# ===================== generic small linear (Q/K/V projections) ==============
def _linear_kernel(x_ref, w_ref, b_ref, o_ref, *, act):
    y = jnp.dot(x_ref[...], w_ref[...], preferred_element_type=jnp.float32) + b_ref[...]
    if act == "swish":
        y = y * jax.nn.sigmoid(y)
    o_ref[...] = y.astype(o_ref.dtype)


def pallas_linear(x, w, b, *, act=None):
    """o = [act](x @ w + b).  x:(M,K) w:(K,N) b:(N,)."""
    M, K = x.shape
    _, N = w.shape
    Kp = _round_up(K, 8)
    if Kp != K:                                   # zero pad -> identical result
        x = jnp.pad(x, ((0, 0), (0, Kp - K)))
        w = jnp.pad(w, ((0, Kp - K), (0, 0)))
    TM = _pick_tile(M, 8, 512)
    Mp = _round_up(M, TM)
    if Mp != M:
        x = jnp.pad(x, ((0, Mp - M), (0, 0)))

    out = pl.pallas_call(
        functools.partial(_linear_kernel, act=act),
        out_shape=jax.ShapeDtypeStruct((Mp, N), jnp.float32),
        grid=(Mp // TM,),
        in_specs=[pl.BlockSpec((TM, Kp), lambda i: (i, 0)),
                  pl.BlockSpec((Kp, N), lambda i: (0, 0)),
                  pl.BlockSpec((1, N), lambda i: (0, 0))],
        out_specs=pl.BlockSpec((TM, N), lambda i: (i, 0)),
        compiler_params=pltpu.CompilerParams(dimension_semantics=("parallel",)),
    )(x, w, b.reshape(1, N))
    return out[:M]


# ===================== topo_CrossAttention (online softmax) ==================
def _topo_xattn_kernel(q_ref, k_ref, v_ref, o_ref, m_sc, l_sc, acc_sc, *,
                       scale, n_ctx, need_mask):
    # out[i, d] = sum_j softmax_j(q[i,d] * k[j,d] * scale) * v[j,d]
    j = pl.program_id(1)

    @pl.when(j == 0)
    def _():
        m_sc[...] = jnp.full_like(m_sc, -jnp.inf)
        l_sc[...] = jnp.zeros_like(l_sc)
        acc_sc[...] = jnp.zeros_like(acc_sc)

    q = q_ref[...]                                    # (TM, D)
    k = k_ref[...]                                    # (TK, D)
    v = v_ref[...]                                    # (TK, D)
    y = q[:, None, :] * k[None, :, :] * scale         # (TM, TK, D)
    if need_mask:                                     # mask padded context rows
        tk = k.shape[0]
        ctx = jax.lax.broadcasted_iota(jnp.int32, (1, tk, 1), 1) + j * tk
        y = jnp.where(ctx < n_ctx, y, -1e30)

    m_prev = m_sc[...]
    m_new = jnp.maximum(m_prev, jnp.max(y, axis=1))   # (TM, D)
    alpha = jnp.exp(m_prev - m_new)
    p = jnp.exp(y - m_new[:, None, :])
    l_sc[...] = alpha * l_sc[...] + jnp.sum(p, axis=1)
    acc_sc[...] = alpha * acc_sc[...] + jnp.sum(p * v[None, :, :], axis=1)
    m_sc[...] = m_new

    @pl.when(j == pl.num_programs(1) - 1)
    def _():
        o_ref[...] = (acc_sc[...] / l_sc[...]).astype(o_ref.dtype)


def topo_cross_attention(params, x, c, *, n_head=N_HEAD_XATTN):
    """Pallas port of topo_CrossAttention.forward (context axis tiled, online softmax)."""
    shape = x.shape
    if x.ndim == 3:
        x = x.reshape(-1, x.shape[-1])
        c = c.reshape(-1, c.shape[-1])
    D = x.shape[-1]
    df = D // n_head
    Q = pallas_linear(x, params["xattn_q_w"], params["xattn_q_b"])
    K = pallas_linear(c, params["xattn_k_w"], params["xattn_k_b"])
    V = pallas_linear(c, params["xattn_v_w"], params["xattn_v_b"])

    Nx, Nc = Q.shape[0], K.shape[0]
    TM = _pick_tile(Nx, 8, 64)                    # bounded VMEM for the (TM,TK,D) temps
    TK = _pick_tile(Nc, 8, 64)
    Np, Ncp = _round_up(Nx, TM), _round_up(Nc, TK)
    if Np != Nx:
        Q = jnp.pad(Q, ((0, Np - Nx), (0, 0)))
    if Ncp != Nc:
        K = jnp.pad(K, ((0, Ncp - Nc), (0, 0)))
        V = jnp.pad(V, ((0, Ncp - Nc), (0, 0)))

    out = pl.pallas_call(
        functools.partial(_topo_xattn_kernel, scale=1.0 / math.sqrt(df),
                          n_ctx=Nc, need_mask=(Ncp != Nc)),
        out_shape=jax.ShapeDtypeStruct((Np, D), jnp.float32),
        grid=(Np // TM, Ncp // TK),
        in_specs=[
            pl.BlockSpec((TM, D), lambda i, j: (i, 0)),
            pl.BlockSpec((TK, D), lambda i, j: (j, 0)),
            pl.BlockSpec((TK, D), lambda i, j: (j, 0)),
        ],
        out_specs=pl.BlockSpec((TM, D), lambda i, j: (i, 0)),
        scratch_shapes=[pltpu.VMEM((TM, D), jnp.float32),
                        pltpu.VMEM((TM, D), jnp.float32),
                        pltpu.VMEM((TM, D), jnp.float32)],
        compiler_params=pltpu.CompilerParams(
            dimension_semantics=("parallel", "arbitrary")),
    )(Q, K, V)
    out = out[:Nx]
    if len(shape) == 3:
        out = out.reshape(shape)
    return out


# ----------------------------- plain-JAX glue --------------------------------
def get_timestep_embedding(timesteps, embedding_dim, max_positions=10000):
    # (kept for reference; consumed only by the conditional temb MLP, which feeds
    #  the skipped HybridBlock)
    half_dim = embedding_dim // 2
    emb = math.log(max_positions) / (half_dim - 1)
    emb = jnp.exp(jnp.arange(half_dim, dtype=jnp.float32) * -emb)
    emb = timesteps.astype(jnp.float32)[:, None] * emb[None, :]
    emb = jnp.concatenate([jnp.sin(emb), jnp.cos(emb)], axis=1)
    if embedding_dim % 2 == 1:
        emb = jnp.pad(emb, ((0, 0), (0, 1)))
    return emb


def get_rw_feat(k_step, dense_adj):
    """Random-walk landing probs + truncated-SPD class index (GraphGDP utils.get_rw_feat).
    Returns rw_landing (B,N,k) and spd_ind (B,N,N) int32; the one-hot is rebuilt
    inside the fused edge kernel (never materialised in HBM)."""
    deg = dense_adj.sum(-1, keepdims=True)
    AD = dense_adj / (deg + 1e-8)
    rw_list = [AD]
    for _ in range(k_step):
        rw_list.append(jnp.einsum("bij,bjk->bik", rw_list[-1], AD))
    rw_map = jnp.stack(rw_list[1:], axis=1)                              # (B, k, N, N)
    rw_landing = jnp.transpose(jnp.diagonal(rw_map, axis1=2, axis2=3), (0, 2, 1))
    tmp_rw = jnp.sort(rw_map, axis=1)
    spd_ind = jnp.sum((tmp_rw <= 0.0).astype(jnp.int32), axis=1)         # (B, N, N)
    return rw_landing, spd_ind


# ----------------------------- parameters ------------------------------------
def init_params(key):
    params = {}

    def add_linear(name, fan_in, fan_out):
        nonlocal key
        key, k = jax.random.split(key)
        params[name + "_w"] = (
            jax.random.normal(k, (fan_in, fan_out), jnp.float32) / math.sqrt(fan_in)
        )
        params[name + "_b"] = jnp.zeros((fan_out,), jnp.float32)

    add_linear("temb0", NF, NF * 2)                       # nn.Linear(embed_dim, nf*2)
    add_linear("temb1", NF * 2, NF)                       # nn.Linear(nf*2, nf)
    add_linear("conv_exist", BOND_CH, BOND_SE_CH)         # conv1x1(1, bond_se_ch)
    add_linear("conv_spd", RW_DEPTH + 1, BOND_SE_CH)      # conv1x1(rw_depth+1, bond_se_ch)
    add_linear("edge_mix", BOND_SE_CH * 2, NF)            # nn.Linear(bond_se_ch*2, nf)
    add_linear("atom_deg", BOND_CH, ATOM_SE_CH)           # nn.Linear(bond_ch, atom_se_ch)
    add_linear("atom_cate", ATOM_CH, ATOM_TYPE_CH)        # nn.Linear(atom_ch, atom_type_ch)
    add_linear("x_rwl", RW_DEPTH, ATOM_SE_CH)             # nn.Linear(rw_depth, atom_se_ch)
    add_linear("x_atom", ATOM_TYPE_CH + 2 * ATOM_SE_CH, NF)
    for l in range(NUM_HYBRID_LAYERS):
        add_linear(f"atom_hid{l}", NF, CAT_DIM)
        add_linear(f"bond_hid{l}", NF, CAT_DIM)
    add_linear("atom_out0", CAT_DIM * NUM_HYBRID_LAYERS + ATOM_TYPE_CH, NF)
    add_linear("atom_out1", NF, NF // 2)
    add_linear("atom_out2", NF // 2, ATOM_CH)
    add_linear("bond_out0", CAT_DIM * NUM_HYBRID_LAYERS + BOND_SE_CH, NF)   # conv1x1
    add_linear("bond_out1", NF, NF // 2)                                    # conv1x1
    add_linear("bond_out2", NF // 2, 1)                                     # conv1x1
    add_linear("urban_emb", 14, NF)                       # linear_urban_emb
    add_linear("xattn_q", NF, NF)                         # topo_CrossAttention q/k/v
    add_linear("xattn_k", NF, NF)
    add_linear("xattn_v", NF, NF)
    return params


# ----------------------------- AF2CG forward ----------------------------------
def af2cg_forward(params, atom_feat, bond_feat, time_cond, atom_mask, bond_mask, urban_attr):
    B, _, N, _ = bond_feat.shape
    m_edge_cnt = B * N * N
    m_atom_cnt = B * N
    edge_exist = bond_feat                                # original (pre-centering), NCHW

    # TODO(synk): the conditional temb MLP and linear_urban_emb only feed HybridBlock,
    # whose internals are not provided in the reference -> skipped (would be DCE'd).

    if not CENTERED:
        atom_feat = atom_feat * 2.0 - 1.0
        bond_feat = bond_feat * 2.0 - 1.0                 # edge_exist keeps original values

    # adjacency (thresholded, masked) -> random-walk structural features (plain-JAX glue)
    adj = jnp.where(jnp.squeeze(edge_exist, 1) >= 0.0, 1.0, 0.0) * jnp.squeeze(bond_mask, 1)
    rw_landing, spd_ind = get_rw_feat(RW_DEPTH, adj)

    # ---- fused edge chain: channel-first (C, B*N*N) slabs, lane-dense output ----
    x_ex = edge_exist.reshape(1, m_edge_cnt)              # (B,1,N,N) -> (1, M)  (free)
    spd_idx = spd_ind.reshape(1, m_edge_cnt)              # int32 SPD class per pixel
    m_edge = bond_mask.reshape(1, m_edge_cnt)
    exist_flat = _edge_chain(params, x_ex, spd_idx, m_edge)          # (1, B*N*N)

    # ---- fused atom chain: channel-first (C, B*N) slabs, lane-dense output ----
    atom_deg = jnp.sum(bond_feat, axis=-1).reshape(1, m_atom_cnt)    # (B,1,N) -> (1,B*N) free
    af_cf = atom_feat.reshape(m_atom_cnt, ATOM_CH).T                 # tiny host transpose
    rwl_cf = rw_landing.reshape(m_atom_cnt, RW_DEPTH).T
    m_atom = atom_mask.reshape(1, m_atom_cnt)
    atom_score_cf = _atom_chain(params, atom_deg, af_cf, rwl_cf, m_atom)   # (ATOM_CH, B*N)
    atom_score = atom_score_cf.T.reshape(B, N, ATOM_CH)

    # symmetrize + mask the bond score (tiny, plain JAX)
    es = exist_flat.reshape(B, N, N)
    es = 0.5 * (es + jnp.transpose(es, (0, 2, 1)))
    bond_score = (es * jnp.squeeze(bond_mask, 1))[:, None, :, :]      # NCHW (B,1,N,N)

    return atom_score, bond_score


# ----------------------------- demo -------------------------------------------
if __name__ == "__main__":
    B, N = 2, 16
    params = init_params(jax.random.PRNGKey(1))

    key = jax.random.PRNGKey(0)
    k1, k2, k3, k4, k5, k6 = jax.random.split(key, 6)

    atom_feat = jax.random.uniform(k1, (B, N, ATOM_CH), jnp.float32)
    b_raw = jax.random.uniform(k2, (B, 1, N, N), jnp.float32, minval=-1.0, maxval=1.0)
    bond_feat = (b_raw + jnp.transpose(b_raw, (0, 1, 3, 2))) / 2.0
    time_cond = jax.random.uniform(k3, (B,), jnp.float32, maxval=999.0)
    atom_mask = (jnp.arange(N)[None, :] < jnp.array([[N], [N - 3]])).astype(jnp.float32)  # (B, N)
    bond_mask = atom_mask[:, None, :, None] * atom_mask[:, None, None, :]                 # (B,1,N,N)
    urban_attr = jax.random.normal(k4, (B, N, 14), jnp.float32)

    fwd = jax.jit(af2cg_forward)
    atom_score, bond_score = fwd(params, atom_feat, bond_feat, time_cond,
                                 atom_mask, bond_mask, urban_attr)
    jax.block_until_ready((atom_score, bond_score))
    assert atom_score.shape == (B, N, ATOM_CH)
    assert bond_score.shape == (B, 1, N, N)

    # exercise the (provided) topo_CrossAttention submodule as its own Pallas kernel
    xc = jax.random.normal(k5, (B, N, NF), jnp.float32)
    cc = jax.random.normal(k6, (B, N, NF), jnp.float32)
    y = jax.jit(topo_cross_attention)(params, xc, cc)
    jax.block_until_ready(y)
    assert y.shape == (B, N, NF)

    print("KERNEL_OK")
</pallas_src>

<mosaic_0001>
module attributes {stable_mosaic.version = 11 : i64} {
  func.func @_edge_chain_kernel(%arg0: i32, %arg1: memref<1x256xf32, #tpu.memory_space<vmem>>, %arg2: memref<1x256xi32, #tpu.memory_space<vmem>>, %arg3: memref<1x256xf32, #tpu.memory_space<vmem>>, %arg4: memref<16x1xf32, #tpu.memory_space<vmem>>, %arg5: memref<16x1xf32, #tpu.memory_space<vmem>>, %arg6: memref<16x16xf32, #tpu.memory_space<vmem>>, %arg7: memref<16x1xf32, #tpu.memory_space<vmem>>, %arg8: memref<32x16xf32, #tpu.memory_space<vmem>>, %arg9: memref<32x16xf32, #tpu.memory_space<vmem>>, %arg10: memref<32x1xf32, #tpu.memory_space<vmem>>, %arg11: memref<32x32xf32, #tpu.memory_space<vmem>>, %arg12: memref<32x1xf32, #tpu.memory_space<vmem>>, %arg13: memref<32x32xf32, #tpu.memory_space<vmem>>, %arg14: memref<32x1xf32, #tpu.memory_space<vmem>>, %arg15: memref<32x16xf32, #tpu.memory_space<vmem>>, %arg16: memref<32x32xf32, #tpu.memory_space<vmem>>, %arg17: memref<32x32xf32, #tpu.memory_space<vmem>>, %arg18: memref<32x1xf32, #tpu.memory_space<vmem>>, %arg19: memref<16x32xf32, #tpu.memory_space<vmem>>, %arg20: memref<16x1xf32, #tpu.memory_space<vmem>>, %arg21: memref<16x1xf32, #tpu.memory_space<vmem>>, %arg22: memref<1x1xf32, #tpu.memory_space<vmem>>, %arg23: memref<1x256xf32, #tpu.memory_space<vmem>>) attributes {dimension_semantics = [#tpu.dimension_semantics<parallel>], iteration_bounds = array<i64: 2>, scalar_prefetch = 0 : i64, scratch_operands = 0 : i64, tpu.core_type = #tpu.core_type<tc>, window_params = [{transform_indices = @transform_0, window_bounds = array<i64: 1, 256>}, {transform_indices = @transform_1, window_bounds = array<i64: 1, 256>}, {transform_indices = @transform_2, window_bounds = array<i64: 1, 256>}, {pipeline_mode = #tpu.pipeline_mode<synchronous>, transform_indices = @transform_3, window_bounds = array<i64: 16, 1>}, {pipeline_mode = #tpu.pipeline_mode<synchronous>, transform_indices = @transform_4, window_bounds = array<i64: 16, 1>}, {pipeline_mode = #tpu.pipeline_mode<synchronous>, transform_indices = @transform_5, window_bounds = array<i64: 16, 16>}, {pipeline_mode = #tpu.pipeline_mode<synchronous>, transform_indices = @transform_6, window_bounds = array<i64: 16, 1>}, {pipeline_mode = #tpu.pipeline_mode<synchronous>, transform_indices = @transform_7, window_bounds = array<i64: 32, 16>}, {pipeline_mode = #tpu.pipeline_mode<synchronous>, transform_indices = @transform_8, window_bounds = array<i64: 32, 16>}, {pipeline_mode = #tpu.pipeline_mode<synchronous>, transform_indices = @transform_9, window_bounds = array<i64: 32, 1>}, {pipeline_mode = #tpu.pipeline_mode<synchronous>, transform_indices = @transform_10, window_bounds = array<i64: 32, 32>}, {pipeline_mode = #tpu.pipeline_mode<synchronous>, transform_indices = @transform_11, window_bounds = array<i64: 32, 1>}, {pipeline_mode = #tpu.pipeline_mode<synchronous>, transform_indices = @transform_12, window_bounds = array<i64: 32, 32>}, {pipeline_mode = #tpu.pipeline_mode<synchronous>, transform_indices = @transform_13, window_bounds = array<i64: 32, 1>}, {pipeline_mode = #tpu.pipeline_mode<synchronous>, transform_indices = @transform_14, window_bounds = array<i64: 32, 16>}, {pipeline_mode = #tpu.pipeline_mode<synchronous>, transform_indices = @transform_15, window_bounds = array<i64: 32, 32>}, {pipeline_mode = #tpu.pipeline_mode<synchronous>, transform_indices = @transform_16, window_bounds = array<i64: 32, 32>}, {pipeline_mode = #tpu.pipeline_mode<synchronous>, transform_indices = @transform_17, window_bounds = array<i64: 32, 1>}, {pipeline_mode = #tpu.pipeline_mode<synchronous>, transform_indices = @transform_18, window_bounds = array<i64: 16, 32>}, {pipeline_mode = #tpu.pipeline_mode<synchronous>, transform_indices = @transform_19, window_bounds = array<i64: 16, 1>}, {pipeline_mode = #tpu.pipeline_mode<synchronous>, transform_indices = @transform_20, window_bounds = array<i64: 16, 1>}, {pipeline_mode = #tpu.pipeline_mode<synchronous>, transform_indices = @transform_21, window_bounds = array<i64: 1, 1>}, {transform_indices = @transform_22, window_bounds = array<i64: 1, 256>}]} {
    %c0 = arith.constant 0 : index
    %c0_0 = arith.constant 0 : index
    %0 = vector.load %arg3[%c0, %c0_0] : memref<1x256xf32, #tpu.memory_space<vmem>>, vector<1x256xf32>
    %c0_1 = arith.constant 0 : index
    %c0_2 = arith.constant 0 : index
    %1 = vector.load %arg1[%c0_1, %c0_2] : memref<1x256xf32, #tpu.memory_space<vmem>>, vector<1x256xf32>
    %2 = tpu.iota {dimensions = array<i32: 0>} : vector<16x1xi32>
    %c0_3 = arith.constant 0 : index
    %c0_4 = arith.constant 0 : index
    %3 = vector.load %arg2[%c0_3, %c0_4] : memref<1x256xi32, #tpu.memory_space<vmem>>, vector<1x256xi32>
    %4 = vector.broadcast %3 : vector<1x256xi32> to vector<16x256xi32>
    %5 = vector.broadcast %2 : vector<16x1xi32> to vector<16x256xi32>
    %6 = arith.cmpi eq, %4, %5 : vector<16x256xi32>
    %7 = arith.extui %6 : vector<16x256xi1> to vector<16x256xi32>
    %8 = arith.sitofp %7 : vector<16x256xi32> to vector<16x256xf32>
    %c0_5 = arith.constant 0 : index
    %c0_6 = arith.constant 0 : index
    %9 = vector.load %arg4[%c0_5, %c0_6] : memref<16x1xf32, #tpu.memory_space<vmem>>, vector<16x1xf32>
    %10 = vector.broadcast %9 : vector<16x1xf32> to vector<16x256xf32>
    %11 = vector.broadcast %1 : vector<1x256xf32> to vector<16x256xf32>
    %12 = arith.mulf %10, %11 : vector<16x256xf32>
    %c0_7 = arith.constant 0 : index
    %c0_8 = arith.constant 0 : index
    %13 = vector.load %arg5[%c0_7, %c0_8] : memref<16x1xf32, #tpu.memory_space<vmem>>, vector<16x1xf32>
    %14 = vector.broadcast %13 : vector<16x1xf32> to vector<16x256xf32>
    %15 = arith.addf %12, %14 : vector<16x256xf32>
    %16 = vector.broadcast %0 : vector<1x256xf32> to vector<16x256xf32>
    %17 = arith.mulf %15, %16 : vector<16x256xf32>
    %c0_9 = arith.constant 0 : index
    %c0_10 = arith.constant 0 : index
    %18 = vector.load %arg6[%c0_9, %c0_10] : memref<16x16xf32, #tpu.memory_space<vmem>>, vector<16x16xf32>
    %cst = arith.constant dense<0.000000e+00> : vector<16x256xf32>
    %19 = tpu.matmul %18, %8, %cst {dimension_numbers = #tpu.dot_dimension_numbers<[1], [0], [0], [1], [0, 0, 1, 1], [], []>} : vector<16x16xf32>, vector<16x256xf32>, vector<16x256xf32> -> vector<16x256xf32>
    %c0_11 = arith.constant 0 : index
    %c0_12 = arith.constant 0 : index
    %20 = vector.load %arg7[%c0_11, %c0_12] : memref<16x1xf32, #tpu.memory_space<vmem>>, vector<16x1xf32>
    %21 = vector.broadcast %20 : vector<16x1xf32> to vector<16x256xf32>
    %22 = arith.addf %19, %21 : vector<16x256xf32>
    %23 = vector.broadcast %0 : vector<1x256xf32> to vector<16x256xf32>
    %24 = arith.mulf %22, %23 : vector<16x256xf32>
    %c0_13 = arith.constant 0 : index
    %c0_14 = arith.constant 0 : index
    %25 = vector.load %arg8[%c0_13, %c0_14] : memref<32x16xf32, #tpu.memory_space<vmem>>, vector<32x16xf32>
    %cst_15 = arith.constant dense<0.000000e+00> : vector<32x256xf32>
    %26 = tpu.matmul %25, %17, %cst_15 {dimension_numbers = #tpu.dot_dimension_numbers<[1], [0], [0], [1], [0, 0, 1, 1], [], []>} : vector<32x16xf32>, vector<16x256xf32>, vector<32x256xf32> -> vector<32x256xf32>
    %c0_16 = arith.constant 0 : index
    %c0_17 = arith.constant 0 : index
    %27 = vector.load %arg9[%c0_16, %c0_17] : memref<32x16xf32, #tpu.memory_space<vmem>>, vector<32x16xf32>
    %cst_18 = arith.constant dense<0.000000e+00> : vector<32x256xf32>
    %28 = tpu.matmul %27, %24, %cst_18 {dimension_numbers = #tpu.dot_dimension_numbers<[1], [0], [0], [1], [0, 0, 1, 1], [], []>} : vector<32x16xf32>, vector<16x256xf32>, vector<32x256xf32> -> vector<32x256xf32>
    %29 = arith.addf %26, %28 : vector<32x256xf32>
    %c0_19 = arith.constant 0 : index
    %c0_20 = arith.constant 0 : index
    %30 = vector.load %arg10[%c0_19, %c0_20] : memref<32x1xf32, #tpu.memory_space<vmem>>, vector<32x1xf32>
    %31 = vector.broadcast %30 : vector<32x1xf32> to vector<32x256xf32>
    %32 = arith.addf %29, %31 : vector<32x256xf32>
    %33 = vector.broadcast %0 : vector<1x256xf32> to vector<32x256xf32>
    %34 = arith.mulf %32, %33 : vector<32x256xf32>
    %c0_21 = arith.constant 0 : index
    %c0_22 = arith.constant 0 : index
    %35 = vector.load %arg11[%c0_21, %c0_22] : memref<32x32xf32, #tpu.memory_space<vmem>>, vector<32x32xf32>
    %cst_23 = arith.constant dense<0.000000e+00> : vector<32x256xf32>
    %36 = tpu.matmul %35, %34, %cst_23 {dimension_numbers = #tpu.dot_dimension_numbers<[1], [0], [0], [1], [0, 0, 1, 1], [], []>} : vector<32x32xf32>, vector<32x256xf32>, vector<32x256xf32> -> vector<32x256xf32>
    %c0_24 = arith.constant 0 : index
    %c0_25 = arith.constant 0 : index
    %37 = vector.load %arg12[%c0_24, %c0_25] : memref<32x1xf32, #tpu.memory_space<vmem>>, vector<32x1xf32>
    %38 = vector.broadcast %37 : vector<32x1xf32> to vector<32x256xf32>
    %39 = arith.addf %36, %38 : vector<32x256xf32>
    %c0_26 = arith.constant 0 : index
    %c0_27 = arith.constant 0 : index
    %40 = vector.load %arg13[%c0_26, %c0_27] : memref<32x32xf32, #tpu.memory_space<vmem>>, vector<32x32xf32>
    %cst_28 = arith.constant dense<0.000000e+00> : vector<32x256xf32>
    %41 = tpu.matmul %40, %34, %cst_28 {dimension_numbers = #tpu.dot_dimension_numbers<[1], [0], [0], [1], [0, 0, 1, 1], [], []>} : vector<32x32xf32>, vector<32x256xf32>, vector<32x256xf32> -> vector<32x256xf32>
    %c0_29 = arith.constant 0 : index
    %c0_30 = arith.constant 0 : index
    %42 = vector.load %arg14[%c0_29, %c0_30] : memref<32x1xf32, #tpu.memory_space<vmem>>, vector<32x1xf32>
    %43 = vector.broadcast %42 : vector<32x1xf32> to vector<32x256xf32>
    %44 = arith.addf %41, %43 : vector<32x256xf32>
    %c0_31 = arith.constant 0 : index
    %c0_32 = arith.constant 0 : index
    %45 = vector.load %arg15[%c0_31, %c0_32] : memref<32x16xf32, #tpu.memory_space<vmem>>, vector<32x16xf32>
    %cst_33 = arith.constant dense<0.000000e+00> : vector<32x256xf32>
    %46 = tpu.matmul %45, %17, %cst_33 {dimension_numbers = #tpu.dot_dimension_numbers<[1], [0], [0], [1], [0, 0, 1, 1], [], []>} : vector<32x16xf32>, vector<16x256xf32>, vector<32x256xf32> -> vector<32x256xf32>
    %c0_34 = arith.constant 0 : index
    %c0_35 = arith.constant 0 : index
    %47 = vector.load %arg16[%c0_34, %c0_35] : memref<32x32xf32, #tpu.memory_space<vmem>>, vector<32x32xf32>
    %cst_36 = arith.constant dense<0.000000e+00> : vector<32x256xf32>
    %48 = tpu.matmul %47, %39, %cst_36 {dimension_numbers = #tpu.dot_dimension_numbers<[1], [0], [0], [1], [0, 0, 1, 1], [], []>} : vector<32x32xf32>, vector<32x256xf32>, vector<32x256xf32> -> vector<32x256xf32>
    %49 = arith.addf %46, %48 : vector<32x256xf32>
    %c0_37 = arith.constant 0 : index
    %c0_38 = arith.constant 0 : index
    %50 = vector.load %arg17[%c0_37, %c0_38] : memref<32x32xf32, #tpu.memory_space<vmem>>, vector<32x32xf32>
    %cst_39 = arith.constant dense<0.000000e+00> : vector<32x256xf32>
    %51 = tpu.matmul %50, %44, %cst_39 {dimension_numbers = #tpu.dot_dimension_numbers<[1], [0], [0], [1], [0, 0, 1, 1], [], []>} : vector<32x32xf32>, vector<32x256xf32>, vector<32x256xf32> -> vector<32x256xf32>
    %52 = arith.addf %49, %51 : vector<32x256xf32>
    %c0_40 = arith.constant 0 : index
    %c0_41 = arith.constant 0 : index
    %53 = vector.load %arg18[%c0_40, %c0_41] : memref<32x1xf32, #tpu.memory_space<vmem>>, vector<32x1xf32>
    %54 = vector.broadcast %53 : vector<32x1xf32> to vector<32x256xf32>
    %55 = arith.addf %52, %54 : vector<32x256xf32>
    %56 = arith.negf %55 : vector<32x256xf32>
    %57 = math.exp %56 : vector<32x256xf32>
    %cst_42 = arith.constant 1.000000e+00 : f32
    %58 = vector.broadcast %cst_42 : f32 to vector<32x256xf32>
    %59 = arith.addf %58, %57 : vector<32x256xf32>
    %60 = arith.divf %58, %59 : vector<32x256xf32>
    %61 = arith.mulf %55, %60 : vector<32x256xf32>
    %62 = vector.broadcast %0 : vector<1x256xf32> to vector<32x256xf32>
    %63 = arith.mulf %61, %62 : vector<32x256xf32>
    %c0_43 = arith.constant 0 : index
    %c0_44 = arith.constant 0 : index
    %64 = vector.load %arg19[%c0_43, %c0_44] : memref<16x32xf32, #tpu.memory_space<vmem>>, vector<16x32xf32>
    %cst_45 = arith.constant dense<0.000000e+00> : vector<16x256xf32>
    %65 = tpu.matmul %64, %63, %cst_45 {dimension_numbers = #tpu.dot_dimension_numbers<[1], [0], [0], [1], [0, 0, 1, 1], [], []>} : vector<16x32xf32>, vector<32x256xf32>, vector<16x256xf32> -> vector<16x256xf32>
    %c0_46 = arith.constant 0 : index
    %c0_47 = arith.constant 0 : index
    %66 = vector.load %arg20[%c0_46, %c0_47] : memref<16x1xf32, #tpu.memory_space<vmem>>, vector<16x1xf32>
    %67 = vector.broadcast %66 : vector<16x1xf32> to vector<16x256xf32>
    %68 = arith.addf %65, %67 : vector<16x256xf32>
    %69 = arith.negf %68 : vector<16x256xf32>
    %70 = math.exp %69 : vector<16x256xf32>
    %cst_48 = arith.constant 1.000000e+00 : f32
    %71 = vector.broadcast %cst_48 : f32 to vector<16x256xf32>
    %72 = arith.addf %71, %70 : vector<16x256xf32>
    %73 = arith.divf %71, %72 : vector<16x256xf32>
    %74 = arith.mulf %68, %73 : vector<16x256xf32>
    %c0_49 = arith.constant 0 : index
    %c0_50 = arith.constant 0 : index
    %75 = vector.load %arg21[%c0_49, %c0_50] : memref<16x1xf32, #tpu.memory_space<vmem>>, vector<16x1xf32>
    %76 = vector.broadcast %75 : vector<16x1xf32> to vector<16x256xf32>
    %77 = arith.mulf %76, %74 : vector<16x256xf32>
    %cst_51 = arith.constant dense<0.000000e+00> : vector<256xf32>
    %78 = vector.multi_reduction <add>, %77, %cst_51 [0] : vector<16x256xf32> to vector<256xf32>
    %79 = vector.shape_cast %78 : vector<256xf32> to vector<1x256xf32>
    %c0_52 = arith.constant 0 : index
    %c0_53 = arith.constant 0 : index
    %80 = vector.load %arg22[%c0_52, %c0_53] : memref<1x1xf32, #tpu.memory_space<vmem>>, vector<1x1xf32>
    %81 = vector.broadcast %80 : vector<1x1xf32> to vector<1x256xf32>
    %82 = arith.addf %79, %81 : vector<1x256xf32>
    %c0_54 = arith.constant 0 : index
    %c0_55 = arith.constant 0 : index
    %83 = vector.load %arg23[%c0_54, %c0_55] : memref<1x256xf32, #tpu.memory_space<vmem>>, vector<1x256xf32>
    tpu.vector_store %arg23[%c0_54, %c0_55], %82 {strides = array<i32>} : memref<1x256xf32, #tpu.memory_space<vmem>>, vector<1x256xf32>,
    return
  }
  func.func @transform_0(%arg0: i32) -> (i32, i32) {
    %c0_i32 = arith.constant 0 : i32
    %c0_i32_0 = arith.constant 0 : i32
    return %c0_i32, %arg0 : i32, i32
  }
  func.func @transform_1(%arg0: i32) -> (i32, i32) {
    %c0_i32 = arith.constant 0 : i32
    %c0_i32_0 = arith.constant 0 : i32
    return %c0_i32, %arg0 : i32, i32
  }
  func.func @transform_2(%arg0: i32) -> (i32, i32) {
    %c0_i32 = arith.constant 0 : i32
    %c0_i32_0 = arith.constant 0 : i32
    return %c0_i32, %arg0 : i32, i32
  }
  func.func @transform_3(%arg0: i32) -> (i32, i32) {
    %c0_i32 = arith.constant 0 : i32
    %c0_i32_0 = arith.constant 0 : i32
    %c0_i32_1 = arith.constant 0 : i32
    return %c0_i32, %c0_i32_0 : i32, i32
  }
  func.func @transform_4(%arg0: i32) -> (i32, i32) {
    %c0_i32 = arith.constant 0 : i32
    %c0_i32_0 = arith.constant 0 : i32
    %c0_i32_1 = arith.constant 0 : i32
    return %c0_i32, %c0_i32_0 : i32, i32
  }
  func.func @transform_5(%arg0: i32) -> (i32, i32) {
    %c0_i32 = arith.constant 0 : i32
    %c0_i32_0 = arith.constant 0 : i32
    %c0_i32_1 = arith.constant 0 : i32
    return %c0_i32, %c0_i32_0 : i32, i32
  }
  func.func @transform_6(%arg0: i32) -> (i32, i32) {
    %c0_i32 = arith.constant 0 : i32
    %c0_i32_0 = arith.constant 0 : i32
    %c0_i32_1 = arith.constant 0 : i32
    return %c0_i32, %c0_i32_0 : i32, i32
  }
  func.func @transform_7(%arg0: i32) -> (i32, i32) {
    %c0_i32 = arith.constant 0 : i32
    %c0_i32_0 = arith.constant 0 : i32
    %c0_i32_1 = arith.constant 0 : i32
    return %c0_i32, %c0_i32_0 : i32, i32
  }
  func.func @transform_8(%arg0: i32) -> (i32, i32) {
    %c0_i32 = arith.constant 0 : i32
    %c0_i32_0 = arith.constant 0 : i32
    %c0_i32_1 = arith.constant 0 : i32
    return %c0_i32, %c0_i32_0 : i32, i32
  }
  func.func @transform_9(%arg0: i32) -> (i32, i32) {
    %c0_i32 = arith.constant 0 : i32
    %c0_i32_0 = arith.constant 0 : i32
    %c0_i32_1 = arith.constant 0 : i32
    return %c0_i32, %c0_i32_0 : i32, i32
  }
  func.func @transform_10(%arg0: i32) -> (i32, i32) {
    %c0_i32 = arith.constant 0 : i32
    %c0_i32_0 = arith.constant 0 : i32
    %c0_i32_1 = arith.constant 0 : i32
    return %c0_i32, %c0_i32_0 : i32, i32
  }
  func.func @transform_11(%arg0: i32) -> (i32, i32) {
    %c0_i32 = arith.constant 0 : i32
    %c0_i32_0 = arith.constant 0 : i32
    %c0_i32_1 = arith.constant 0 : i32
    return %c0_i32, %c0_i32_0 : i32, i32
  }
  func.func @transform_12(%arg0: i32) -> (i32, i32) {
    %c0_i32 = arith.constant 0 : i32
    %c0_i32_0 = arith.constant 0 : i32
    %c0_i32_1 = arith.constant 0 : i32
    return %c0_i32, %c0_i32_0 : i32, i32
  }
  func.func @transform_13(%arg0: i32) -> (i32, i32) {
    %c0_i32 = arith.constant 0 : i32
    %c0_i32_0 = arith.constant 0 : i32
    %c0_i32_1 = arith.constant 0 : i32
    return %c0_i32, %c0_i32_0 : i32, i32
  }
  func.func @transform_14(%arg0: i32) -> (i32, i32) {
    %c0_i32 = arith.constant 0 : i32
    %c0_i32_0 = arith.constant 0 : i32
    %c0_i32_1 = arith.constant 0 : i32
    return %c0_i32, %c0_i32_0 : i32, i32
  }
  func.func @transform_15(%arg0: i32) -> (i32, i32) {
    %c0_i32 = arith.constant 0 : i32
    %c0_i32_0 = arith.constant 0 : i32
    %c0_i32_1 = arith.constant 0 : i32
    return %c0_i32, %c0_i32_0 : i32, i32
  }
  func.func @transform_16(%arg0: i32) -> (i32, i32) {
    %c0_i32 = arith.constant 0 : i32
    %c0_i32_0 = arith.constant 0 : i32
    %c0_i32_1 = arith.constant 0 : i32
    return %c0_i32, %c0_i32_0 : i32, i32
  }
  func.func @transform_17(%arg0: i32) -> (i32, i32) {
    %c0_i32 = arith.constant 0 : i32
    %c0_i32_0 = arith.constant 0 : i32
    %c0_i32_1 = arith.constant 0 : i32
    return %c0_i32, %c0_i32_0 : i32, i32
  }
  func.func @transform_18(%arg0: i32) -> (i32, i32) {
    %c0_i32 = arith.constant 0 : i32
    %c0_i32_0 = arith.constant 0 : i32
    %c0_i32_1 = arith.constant 0 : i32
    return %c0_i32, %c0_i32_0 : i32, i32
  }
  func.func @transform_19(%arg0: i32) -> (i32, i32) {
    %c0_i32 = arith.constant 0 : i32
    %c0_i32_0 = arith.constant 0 : i32
    %c0_i32_1 = arith.constant 0 : i32
    return %c0_i32, %c0_i32_0 : i32, i32
  }
  func.func @transform_20(%arg0: i32) -> (i32, i32) {
    %c0_i32 = arith.constant 0 : i32
    %c0_i32_0 = arith.constant 0 : i32
    %c0_i32_1 = arith.constant 0 : i32
    return %c0_i32, %c0_i32_0 : i32, i32
  }
  func.func @transform_21(%arg0: i32) -> (i32, i32) {
    %c0_i32 = arith.constant 0 : i32
    %c0_i32_0 = arith.constant 0 : i32
    %c0_i32_1 = arith.constant 0 : i32
    return %c0_i32, %c0_i32_0 : i32, i32
  }
  func.func @transform_22(%arg0: i32) -> (i32, i32) {
    %c0_i32 = arith.constant 0 : i32
    %c0_i32_0 = arith.constant 0 : i32
    return %c0_i32, %arg0 : i32, i32
  }
}

module attributes {stable_mosaic.version = 11 : i64} {
  func.func @_atom_chain_kernel(%arg0: i32, %arg1: memref<1x128xf32, #tpu.memory_space<vmem>>, %arg2: memref<8x128xf32, #tpu.memory_space<vmem>>, %arg3: memref<8x128xf32, #tpu.memory_space<vmem>>, %arg4: memref<1x128xf32, #tpu.memory_space<vmem>>, %arg5: memref<8x1xf32, #tpu.memory_space<vmem>>, %arg6: memref<8x1xf32, #tpu.memory_space<vmem>>, %arg7: memref<24x8xf32, #tpu.memory_space<vmem>>, %arg8: memref<24x1xf32, #tpu.memory_space<vmem>>, %arg9: memref<8x8xf32, #tpu.memory_space<vmem>>, %arg10: memref<8x1xf32, #tpu.memory_space<vmem>>, %arg11: memref<32x8xf32, #tpu.memory_space<vmem>>, %arg12: memref<32x24xf32, #tpu.memory_space<vmem>>, %arg13: memref<32x8xf32, #tpu.memory_space<vmem>>, %arg14: memref<32x1xf32, #tpu.memory_space<vmem>>, %arg15: memref<32x32xf32, #tpu.memory_space<vmem>>, %arg16: memref<32x1xf32, #tpu.memory_space<vmem>>, %arg17: memref<32x32xf32, #tpu.memory_space<vmem>>, %arg18: memref<32x1xf32, #tpu.memory_space<vmem>>, %arg19: memref<32x24xf32, #tpu.memory_space<vmem>>, %arg20: memref<32x32xf32, #tpu.memory_space<vmem>>, %arg21: memref<32x32xf32, #tpu.memory_space<vmem>>, %arg22: memref<32x1xf32, #tpu.memory_space<vmem>>, %arg23: memref<16x32xf32, #tpu.memory_space<vmem>>, %arg24: memref<16x1xf32, #tpu.memory_space<vmem>>, %arg25: memref<8x16xf32, #tpu.memory_space<vmem>>, %arg26: memref<8x1xf32, #tpu.memory_space<vmem>>, %arg27: memref<8x128xf32, #tpu.memory_space<vmem>>) attributes {dimension_semantics = [#tpu.dimension_semantics<parallel>], iteration_bounds = array<i64: 1>, scalar_prefetch = 0 : i64, scratch_operands = 0 : i64, tpu.core_type = #tpu.core_type<tc>, window_params = [{transform_indices = @transform_0, window_bounds = array<i64: 1, 128>}, {transform_indices = @transform_1, window_bounds = array<i64: 8, 128>}, {transform_indices = @transform_2, window_bounds = array<i64: 8, 128>}, {transform_indices = @transform_3, window_bounds = array<i64: 1, 128>}, {pipeline_mode = #tpu.pipeline_mode<synchronous>, transform_indices = @transform_4, window_bounds = array<i64: 8, 1>}, {pipeline_mode = #tpu.pipeline_mode<synchronous>, transform_indices = @transform_5, window_bounds = array<i64: 8, 1>}, {pipeline_mode = #tpu.pipeline_mode<synchronous>, transform_indices = @transform_6, window_bounds = array<i64: 24, 8>}, {pipeline_mode = #tpu.pipeline_mode<synchronous>, transform_indices = @transform_7, window_bounds = array<i64: 24, 1>}, {pipeline_mode = #tpu.pipeline_mode<synchronous>, transform_indices = @transform_8, window_bounds = array<i64: 8, 8>}, {pipeline_mode = #tpu.pipeline_mode<synchronous>, transform_indices = @transform_9, window_bounds = array<i64: 8, 1>}, {pipeline_mode = #tpu.pipeline_mode<synchronous>, transform_indices = @transform_10, window_bounds = array<i64: 32, 8>}, {pipeline_mode = #tpu.pipeline_mode<synchronous>, transform_indices = @transform_11, window_bounds = array<i64: 32, 24>}, {pipeline_mode = #tpu.pipeline_mode<synchronous>, transform_indices = @transform_12, window_bounds = array<i64: 32, 8>}, {pipeline_mode = #tpu.pipeline_mode<synchronous>, transform_indices = @transform_13, window_bounds = array<i64: 32, 1>}, {pipeline_mode = #tpu.pipeline_mode<synchronous>, transform_indices = @transform_14, window_bounds = array<i64: 32, 32>}, {pipeline_mode = #tpu.pipeline_mode<synchronous>, transform_indices = @transform_15, window_bounds = array<i64: 32, 1>}, {pipeline_mode = #tpu.pipeline_mode<synchronous>, transform_indices = @transform_16, window_bounds = array<i64: 32, 32>}, {pipeline_mode = #tpu.pipeline_mode<synchronous>, transform_indices = @transform_17, window_bounds = array<i64: 32, 1>}, {pipeline_mode = #tpu.pipeline_mode<synchronous>, transform_indices = @transform_18, window_bounds = array<i64: 32, 24>}, {pipeline_mode = #tpu.pipeline_mode<synchronous>, transform_indices = @transform_19, window_bounds = array<i64: 32, 32>}, {pipeline_mode = #tpu.pipeline_mode<synchronous>, transform_indices = @transform_20, window_bounds = array<i64: 32, 32>}, {pipeline_mode = #tpu.pipeline_mode<synchronous>, transform_indices = @transform_21, window_bounds = array<i64: 32, 1>}, {pipeline_mode = #tpu.pipeline_mode<synchronous>, transform_indices = @transform_22, window_bounds = array<i64: 16, 32>}, {pipeline_mode = #tpu.pipeline_mode<synchronous>, transform_indices = @transform_23, window_bounds = array<i64: 16, 1>}, {pipeline_mode = #tpu.pipeline_mode<synchronous>, transform_indices = @transform_24, window_bounds = array<i64: 8, 16>}, {pipeline_mode = #tpu.pipeline_mode<synchronous>, transform_indices = @transform_25, window_bounds = array<i64: 8, 1>}, {transform_indices = @transform_26, window_bounds = array<i64: 8, 128>}]} {
    %c0 = arith.constant 0 : index
    %c0_0 = arith.constant 0 : index
    %0 = vector.load %arg4[%c0, %c0_0] : memref<1x128xf32, #tpu.memory_space<vmem>>, vector<1x128xf32>
    %c0_1 = arith.constant 0 : index
    %c0_2 = arith.constant 0 : index
    %1 = vector.load %arg5[%c0_1, %c0_2] : memref<8x1xf32, #tpu.memory_space<vmem>>, vector<8x1xf32>
    %c0_3 = arith.constant 0 : index
    %c0_4 = arith.constant 0 : index
    %2 = vector.load %arg1[%c0_3, %c0_4] : memref<1x128xf32, #tpu.memory_space<vmem>>, vector<1x128xf32>
    %3 = vector.broadcast %1 : vector<8x1xf32> to vector<8x128xf32>
    %4 = vector.broadcast %2 : vector<1x128xf32> to vector<8x128xf32>
    %5 = arith.mulf %3, %4 : vector<8x128xf32>
    %c0_5 = arith.constant 0 : index
    %c0_6 = arith.constant 0 : index
    %6 = vector.load %arg6[%c0_5, %c0_6] : memref<8x1xf32, #tpu.memory_space<vmem>>, vector<8x1xf32>
    %7 = vector.broadcast %6 : vector<8x1xf32> to vector<8x128xf32>
    %8 = arith.addf %5, %7 : vector<8x128xf32>
    %c0_7 = arith.constant 0 : index
    %c0_8 = arith.constant 0 : index
    %9 = vector.load %arg7[%c0_7, %c0_8] : memref<24x8xf32, #tpu.memory_space<vmem>>, vector<24x8xf32>
    %c0_9 = arith.constant 0 : index
    %c0_10 = arith.constant 0 : index
    %10 = vector.load %arg2[%c0_9, %c0_10] : memref<8x128xf32, #tpu.memory_space<vmem>>, vector<8x128xf32>
    %cst = arith.constant dense<0.000000e+00> : vector<24x128xf32>
    %11 = tpu.matmul %9, %10, %cst {dimension_numbers = #tpu.dot_dimension_numbers<[1], [0], [0], [1], [0, 0, 1, 1], [], []>} : vector<24x8xf32>, vector<8x128xf32>, vector<24x128xf32> -> vector<24x128xf32>
    %c0_11 = arith.constant 0 : index
    %c0_12 = arith.constant 0 : index
    %12 = vector.load %arg8[%c0_11, %c0_12] : memref<24x1xf32, #tpu.memory_space<vmem>>, vector<24x1xf32>
    %13 = vector.broadcast %12 : vector<24x1xf32> to vector<24x128xf32>
    %14 = arith.addf %11, %13 : vector<24x128xf32>
    %c0_13 = arith.constant 0 : index
    %c0_14 = arith.constant 0 : index
    %15 = vector.load %arg9[%c0_13, %c0_14] : memref<8x8xf32, #tpu.memory_space<vmem>>, vector<8x8xf32>
    %c0_15 = arith.constant 0 : index
    %c0_16 = arith.constant 0 : index
    %16 = vector.load %arg3[%c0_15, %c0_16] : memref<8x128xf32, #tpu.memory_space<vmem>>, vector<8x128xf32>
    %cst_17 = arith.constant dense<0.000000e+00> : vector<8x128xf32>
    %17 = tpu.matmul %15, %16, %cst_17 {dimension_numbers = #tpu.dot_dimension_numbers<[1], [0], [0], [1], [0, 0, 1, 1], [], []>} : vector<8x8xf32>, vector<8x128xf32>, vector<8x128xf32> -> vector<8x128xf32>
    %c0_18 = arith.constant 0 : index
    %c0_19 = arith.constant 0 : index
    %18 = vector.load %arg10[%c0_18, %c0_19] : memref<8x1xf32, #tpu.memory_space<vmem>>, vector<8x1xf32>
    %19 = vector.broadcast %18 : vector<8x1xf32> to vector<8x128xf32>
    %20 = arith.addf %17, %19 : vector<8x128xf32>
    %c0_20 = arith.constant 0 : index
    %c0_21 = arith.constant 0 : index
    %21 = vector.load %arg11[%c0_20, %c0_21] : memref<32x8xf32, #tpu.memory_space<vmem>>, vector<32x8xf32>
    %cst_22 = arith.constant dense<0.000000e+00> : vector<32x128xf32>
    %22 = tpu.matmul %21, %8, %cst_22 {dimension_numbers = #tpu.dot_dimension_numbers<[1], [0], [0], [1], [0, 0, 1, 1], [], []>} : vector<32x8xf32>, vector<8x128xf32>, vector<32x128xf32> -> vector<32x128xf32>
    %c0_23 = arith.constant 0 : index
    %c0_24 = arith.constant 0 : index
    %23 = vector.load %arg12[%c0_23, %c0_24] : memref<32x24xf32, #tpu.memory_space<vmem>>, vector<32x24xf32>
    %cst_25 = arith.constant dense<0.000000e+00> : vector<32x128xf32>
    %24 = tpu.matmul %23, %14, %cst_25 {dimension_numbers = #tpu.dot_dimension_numbers<[1], [0], [0], [1], [0, 0, 1, 1], [], []>} : vector<32x24xf32>, vector<24x128xf32>, vector<32x128xf32> -> vector<32x128xf32>
    %25 = arith.addf %22, %24 : vector<32x128xf32>
    %c0_26 = arith.constant 0 : index
    %c0_27 = arith.constant 0 : index
    %26 = vector.load %arg13[%c0_26, %c0_27] : memref<32x8xf32, #tpu.memory_space<vmem>>, vector<32x8xf32>
    %cst_28 = arith.constant dense<0.000000e+00> : vector<32x128xf32>
    %27 = tpu.matmul %26, %20, %cst_28 {dimension_numbers = #tpu.dot_dimension_numbers<[1], [0], [0], [1], [0, 0, 1, 1], [], []>} : vector<32x8xf32>, vector<8x128xf32>, vector<32x128xf32> -> vector<32x128xf32>
    %28 = arith.addf %25, %27 : vector<32x128xf32>
    %c0_29 = arith.constant 0 : index
    %c0_30 = arith.constant 0 : index
    %29 = vector.load %arg14[%c0_29, %c0_30] : memref<32x1xf32, #tpu.memory_space<vmem>>, vector<32x1xf32>
    %30 = vector.broadcast %29 : vector<32x1xf32> to vector<32x128xf32>
    %31 = arith.addf %28, %30 : vector<32x128xf32>
    %c0_31 = arith.constant 0 : index
    %c0_32 = arith.constant 0 : index
    %32 = vector.load %arg15[%c0_31, %c0_32] : memref<32x32xf32, #tpu.memory_space<vmem>>, vector<32x32xf32>
    %cst_33 = arith.constant dense<0.000000e+00> : vector<32x128xf32>
    %33 = tpu.matmul %32, %31, %cst_33 {dimension_numbers = #tpu.dot_dimension_numbers<[1], [0], [0], [1], [0, 0, 1, 1], [], []>} : vector<32x32xf32>, vector<32x128xf32>, vector<32x128xf32> -> vector<32x128xf32>
    %c0_34 = arith.constant 0 : index
    %c0_35 = arith.constant 0 : index
    %34 = vector.load %arg16[%c0_34, %c0_35] : memref<32x1xf32, #tpu.memory_space<vmem>>, vector<32x1xf32>
    %35 = vector.broadcast %34 : vector<32x1xf32> to vector<32x128xf32>
    %36 = arith.addf %33, %35 : vector<32x128xf32>
    %c0_36 = arith.constant 0 : index
    %c0_37 = arith.constant 0 : index
    %37 = vector.load %arg17[%c0_36, %c0_37] : memref<32x32xf32, #tpu.memory_space<vmem>>, vector<32x32xf32>
    %cst_38 = arith.constant dense<0.000000e+00> : vector<32x128xf32>
    %38 = tpu.matmul %37, %31, %cst_38 {dimension_numbers = #tpu.dot_dimension_numbers<[1], [0], [0], [1], [0, 0, 1, 1], [], []>} : vector<32x32xf32>, vector<32x128xf32>, vector<32x128xf32> -> vector<32x128xf32>
    %c0_39 = arith.constant 0 : index
    %c0_40 = arith.constant 0 : index
    %39 = vector.load %arg18[%c0_39, %c0_40] : memref<32x1xf32, #tpu.memory_space<vmem>>, vector<32x1xf32>
    %40 = vector.broadcast %39 : vector<32x1xf32> to vector<32x128xf32>
    %41 = arith.addf %38, %40 : vector<32x128xf32>
    %c0_41 = arith.constant 0 : index
    %c0_42 = arith.constant 0 : index
    %42 = vector.load %arg19[%c0_41, %c0_42] : memref<32x24xf32, #tpu.memory_space<vmem>>, vector<32x24xf32>
    %cst_43 = arith.constant dense<0.000000e+00> : vector<32x128xf32>
    %43 = tpu.matmul %42, %14, %cst_43 {dimension_numbers = #tpu.dot_dimension_numbers<[1], [0], [0], [1], [0, 0, 1, 1], [], []>} : vector<32x24xf32>, vector<24x128xf32>, vector<32x128xf32> -> vector<32x128xf32>
    %c0_44 = arith.constant 0 : index
    %c0_45 = arith.constant 0 : index
    %44 = vector.load %arg20[%c0_44, %c0_45] : memref<32x32xf32, #tpu.memory_space<vmem>>, vector<32x32xf32>
    %cst_46 = arith.constant dense<0.000000e+00> : vector<32x128xf32>
    %45 = tpu.matmul %44, %36, %cst_46 {dimension_numbers = #tpu.dot_dimension_numbers<[1], [0], [0], [1], [0, 0, 1, 1], [], []>} : vector<32x32xf32>, vector<32x128xf32>, vector<32x128xf32> -> vector<32x128xf32>
    %46 = arith.addf %43, %45 : vector<32x128xf32>
    %c0_47 = arith.constant 0 : index
    %c0_48 = arith.constant 0 : index
    %47 = vector.load %arg21[%c0_47, %c0_48] : memref<32x32xf32, #tpu.memory_space<vmem>>, vector<32x32xf32>
    %cst_49 = arith.constant dense<0.000000e+00> : vector<32x128xf32>
    %48 = tpu.matmul %47, %41, %cst_49 {dimension_numbers = #tpu.dot_dimension_numbers<[1], [0], [0], [1], [0, 0, 1, 1], [], []>} : vector<32x32xf32>, vector<32x128xf32>, vector<32x128xf32> -> vector<32x128xf32>
    %49 = arith.addf %46, %48 : vector<32x128xf32>
    %c0_50 = arith.constant 0 : index
    %c0_51 = arith.constant 0 : index
    %50 = vector.load %arg22[%c0_50, %c0_51] : memref<32x1xf32, #tpu.memory_space<vmem>>, vector<32x1xf32>
    %51 = vector.broadcast %50 : vector<32x1xf32> to vector<32x128xf32>
    %52 = arith.addf %49, %51 : vector<32x128xf32>
    %53 = arith.negf %52 : vector<32x128xf32>
    %54 = math.exp %53 : vector<32x128xf32>
    %cst_52 = arith.constant 1.000000e+00 : f32
    %55 = vector.broadcast %cst_52 : f32 to vector<32x128xf32>
    %56 = arith.addf %55, %54 : vector<32x128xf32>
    %57 = arith.divf %55, %56 : vector<32x128xf32>
    %58 = arith.mulf %52, %57 : vector<32x128xf32>
    %59 = vector.broadcast %0 : vector<1x128xf32> to vector<32x128xf32>
    %60 = arith.mulf %58, %59 : vector<32x128xf32>
    %c0_53 = arith.constant 0 : index
    %c0_54 = arith.constant 0 : index
    %61 = vector.load %arg23[%c0_53, %c0_54] : memref<16x32xf32, #tpu.memory_space<vmem>>, vector<16x32xf32>
    %cst_55 = arith.constant dense<0.000000e+00> : vector<16x128xf32>
    %62 = tpu.matmul %61, %60, %cst_55 {dimension_numbers = #tpu.dot_dimension_numbers<[1], [0], [0], [1], [0, 0, 1, 1], [], []>} : vector<16x32xf32>, vector<32x128xf32>, vector<16x128xf32> -> vector<16x128xf32>
    %c0_56 = arith.constant 0 : index
    %c0_57 = arith.constant 0 : index
    %63 = vector.load %arg24[%c0_56, %c0_57] : memref<16x1xf32, #tpu.memory_space<vmem>>, vector<16x1xf32>
    %64 = vector.broadcast %63 : vector<16x1xf32> to vector<16x128xf32>
    %65 = arith.addf %62, %64 : vector<16x128xf32>
    %66 = arith.negf %65 : vector<16x128xf32>
    %67 = math.exp %66 : vector<16x128xf32>
    %cst_58 = arith.constant 1.000000e+00 : f32
    %68 = vector.broadcast %cst_58 : f32 to vector<16x128xf32>
    %69 = arith.addf %68, %67 : vector<16x128xf32>
    %70 = arith.divf %68, %69 : vector<16x128xf32>
    %71 = arith.mulf %65, %70 : vector<16x128xf32>
    %c0_59 = arith.constant 0 : index
    %c0_60 = arith.constant 0 : index
    %72 = vector.load %arg25[%c0_59, %c0_60] : memref<8x16xf32, #tpu.memory_space<vmem>>, vector<8x16xf32>
    %cst_61 = arith.constant dense<0.000000e+00> : vector<8x128xf32>
    %73 = tpu.matmul %72, %71, %cst_61 {dimension_numbers = #tpu.dot_dimension_numbers<[1], [0], [0], [1], [0, 0, 1, 1], [], []>} : vector<8x16xf32>, vector<16x128xf32>, vector<8x128xf32> -> vector<8x128xf32>
    %c0_62 = arith.constant 0 : index
    %c0_63 = arith.constant 0 : index
    %74 = vector.load %arg26[%c0_62, %c0_63] : memref<8x1xf32, #tpu.memory_space<vmem>>, vector<8x1xf32>
    %75 = vector.broadcast %74 : vector<8x1xf32> to vector<8x128xf32>
    %76 = arith.addf %73, %75 : vector<8x128xf32>
    %77 = vector.broadcast %0 : vector<1x128xf32> to vector<8x128xf32>
    %78 = arith.mulf %76, %77 : vector<8x128xf32>
    %c0_64 = arith.constant 0 : index
    %c0_65 = arith.constant 0 : index
    %79 = vector.load %arg27[%c0_64, %c0_65] : memref<8x128xf32, #tpu.memory_space<vmem>>, vector<8x128xf32>
    tpu.vector_store %arg27[%c0_64, %c0_65], %78 {strides = array<i32>} : memref<8x128xf32, #tpu.memory_space<vmem>>, vector<8x128xf32>,
    return
  }
  func.func @transform_0(%arg0: i32) -> (i32, i32) {
    %c0_i32 = arith.constant 0 : i32
    %c0_i32_0 = arith.constant 0 : i32
    return %c0_i32, %arg0 : i32, i32
  }
  func.func @transform_1(%arg0: i32) -> (i32, i32) {
    %c0_i32 = arith.constant 0 : i32
    %c0_i32_0 = arith.constant 0 : i32
    return %c0_i32, %arg0 : i32, i32
  }
  func.func @transform_2(%arg0: i32) -> (i32, i32) {
    %c0_i32 = arith.constant 0 : i32
    %c0_i32_0 = arith.constant 0 : i32
    return %c0_i32, %arg0 : i32, i32
  }
  func.func @transform_3(%arg0: i32) -> (i32, i32) {
    %c0_i32 = arith.constant 0 : i32
    %c0_i32_0 = arith.constant 0 : i32
    return %c0_i32, %arg0 : i32, i32
  }
  func.func @transform_4(%arg0: i32) -> (i32, i32) {
    %c0_i32 = arith.constant 0 : i32
    %c0_i32_0 = arith.constant 0 : i32
    %c0_i32_1 = arith.constant 0 : i32
    return %c0_i32, %c0_i32_0 : i32, i32
  }
  func.func @transform_5(%arg0: i32) -> (i32, i32) {
    %c0_i32 = arith.constant 0 : i32
    %c0_i32_0 = arith.constant 0 : i32
    %c0_i32_1 = arith.constant 0 : i32
    return %c0_i32, %c0_i32_0 : i32, i32
  }
  func.func @transform_6(%arg0: i32) -> (i32, i32) {
    %c0_i32 = arith.constant 0 : i32
    %c0_i32_0 = arith.constant 0 : i32
    %c0_i32_1 = arith.constant 0 : i32
    return %c0_i32, %c0_i32_0 : i32, i32
  }
  func.func @transform_7(%arg0: i32) -> (i32, i32) {
    %c0_i32 = arith.constant 0 : i32
    %c0_i32_0 = arith.constant 0 : i32
    %c0_i32_1 = arith.constant 0 : i32
    return %c0_i32, %c0_i32_0 : i32, i32
  }
  func.func @transform_8(%arg0: i32) -> (i32, i32) {
    %c0_i32 = arith.constant 0 : i32
    %c0_i32_0 = arith.constant 0 : i32
    %c0_i32_1 = arith.constant 0 : i32
    return %c0_i32, %c0_i32_0 : i32, i32
  }
  func.func @transform_9(%arg0: i32) -> (i32, i32) {
    %c0_i32 = arith.constant 0 : i32
    %c0_i32_0 = arith.constant 0 : i32
    %c0_i32_1 = arith.constant 0 : i32
    return %c0_i32, %c0_i32_0 : i32, i32
  }
  func.func @transform_10(%arg0: i32) -> (i32, i32) {
    %c0_i32 = arith.constant 0 : i32
    %c0_i32_0 = arith.constant 0 : i32
    %c0_i32_1 = arith.constant 0 : i32
    return %c0_i32, %c0_i32_0 : i32, i32
  }
  func.func @transform_11(%arg0: i32) -> (i32, i32) {
    %c0_i32 = arith.constant 0 : i32
    %c0_i32_0 = arith.constant 0 : i32
    %c0_i32_1 = arith.constant 0 : i32
    return %c0_i32, %c0_i32_0 : i32, i32
  }
  func.func @transform_12(%arg0: i32) -> (i32, i32) {
    %c0_i32 = arith.constant 0 : i32
    %c0_i32_0 = arith.constant 0 : i32
    %c0_i32_1 = arith.constant 0 : i32
    return %c0_i32, %c0_i32_0 : i32, i32
  }
  func.func @transform_13(%arg0: i32) -> (i32, i32) {
    %c0_i32 = arith.constant 0 : i32
    %c0_i32_0 = arith.constant 0 : i32
    %c0_i32_1 = arith.constant 0 : i32
    return %c0_i32, %c0_i32_0 : i32, i32
  }
  func.func @transform_14(%arg0: i32) -> (i32, i32) {
    %c0_i32 = arith.constant 0 : i32
    %c0_i32_0 = arith.constant 0 : i32
    %c0_i32_1 = arith.constant 0 : i32
    return %c0_i32, %c0_i32_0 : i32, i32
  }
  func.func @transform_15(%arg0: i32) -> (i32, i32) {
    %c0_i32 = arith.constant 0 : i32
    %c0_i32_0 = arith.constant 0 : i32
    %c0_i32_1 = arith.constant 0 : i32
    return %c0_i32, %c0_i32_0 : i32, i32
  }
  func.func @transform_16(%arg0: i32) -> (i32, i32) {
    %c0_i32 = arith.constant 0 : i32
    %c0_i32_0 = arith.constant 0 : i32
    %c0_i32_1 = arith.constant 0 : i32
    return %c0_i32, %c0_i32_0 : i32, i32
  }
  func.func @transform_17(%arg0: i32) -> (i32, i32) {
    %c0_i32 = arith.constant 0 : i32
    %c0_i32_0 = arith.constant 0 : i32
    %c0_i32_1 = arith.constant 0 : i32
    return %c0_i32, %c0_i32_0 : i32, i32
  }
  func.func @transform_18(%arg0: i32) -> (i32, i32) {
    %c0_i32 = arith.constant 0 : i32
    %c0_i32_0 = arith.constant 0 : i32
    %c0_i32_1 = arith.constant 0 : i32
    return %c0_i32, %c0_i32_0 : i32, i32
  }
  func.func @transform_19(%arg0: i32) -> (i32, i32) {
    %c0_i32 = arith.constant 0 : i32
    %c0_i32_0 = arith.constant 0 : i32
    %c0_i32_1 = arith.constant 0 : i32
    return %c0_i32, %c0_i32_0 : i32, i32
  }
  func.func @transform_20(%arg0: i32) -> (i32, i32) {
    %c0_i32 = arith.constant 0 : i32
    %c0_i32_0 = arith.constant 0 : i32
    %c0_i32_1 = arith.constant 0 : i32
    return %c0_i32, %c0_i32_0 : i32, i32
  }
  func.func @transform_21(%arg0: i32) -> (i32, i32) {
    %c0_i32 = arith.constant 0 : i32
    %c0_i32_0 = arith.constant 0 : i32
    %c0_i32_1 = arith.constant 0 : i32
    return %c0_i32, %c0_i32_0 : i32, i32
  }
  func.func @transform_22(%arg0: i32) -> (i32, i32) {
    %c0_i32 = arith.constant 0 : i32
    %c0_i32_0 = arith.constant 0 : i32
    %c0_i32_1 = arith.constant 0 : i32
    return %c0_i32, %c0_i32_0 : i32, i32
  }
  func.func @transform_23(%arg0: i32) -> (i32, i32) {
    %c0_i32 = arith.constant 0 : i32
    %c0_i32_0 = arith.constant 0 : i32
    %c0_i32_1 = arith.constant 0 : i32
    return %c0_i32, %c0_i32_0 : i32, i32
  }
  func.func @transform_24(%arg0: i32) -> (i32, i32) {
    %c0_i32 = arith.constant 0 : i32
    %c0_i32_0 = arith.constant 0 : i32
    %c0_i32_1 = arith.constant 0 : i32
    return %c0_i32, %c0_i32_0 : i32, i32
  }
  func.func @transform_25(%arg0: i32) -> (i32, i32) {
    %c0_i32 = arith.constant 0 : i32
    %c0_i32_0 = arith.constant 0 : i32
    %c0_i32_1 = arith.constant 0 : i32
    return %c0_i32, %c0_i32_0 : i32, i32
  }
  func.func @transform_26(%arg0: i32) -> (i32, i32) {
    %c0_i32 = arith.constant 0 : i32
    %c0_i32_0 = arith.constant 0 : i32
    return %c0_i32, %arg0 : i32, i32
  }
}

</mosaic_0001>

<llo_original>
// kernel: af2cg_forward.2
$region0: #{af2cg_forward.2}
  #allocation0 [shape = 'u32[]', space=smem, size = 0x4, offset = 0x4, fixed_abs, tag = 'smem constant byte address 0x4 - core index']
  #allocation1 [shape = 'u32[144,128]{1,0:T(1,128)}', space=vmem, size = 0x12000, scoped, tag = 'internal scratch']
  #allocation2 [shape = 'f32[1,1]{1,0:T(1,128)S(1)}', space=vmem, size = 0x200, scoped, tag = 'scoped memory for af2cg_forward.2']
  %s0 = inlined_call_operand.vmem [shape: f32[1,512], index: 0, kind: input, shape index: {}]
  %s1 = inlined_call_operand.vmem [shape: s32[1,512], index: 1, kind: input, shape index: {}]
  %s2 = inlined_call_operand.vmem [shape: f32[1,512], index: 2, kind: input, shape index: {}]
  %s3 = inlined_call_operand.vmem [shape: f32[16,1], index: 3, kind: input, shape index: {}]
  %s4 = inlined_call_operand.vmem [shape: f32[16,1], index: 4, kind: input, shape index: {}]
  %s5 = inlined_call_operand.vmem [shape: f32[16,16], index: 5, kind: input, shape index: {}]
  %s6 = inlined_call_operand.vmem [shape: f32[16,1], index: 6, kind: input, shape index: {}]
  %s7 = inlined_call_operand.vmem [shape: f32[32,16], index: 7, kind: input, shape index: {}]
  %s8 = inlined_call_operand.vmem [shape: f32[32,16], index: 8, kind: input, shape index: {}]
  %s9 = inlined_call_operand.vmem [shape: f32[32,1], index: 9, kind: input, shape index: {}]
  %s10 = inlined_call_operand.vmem [shape: f32[32,32], index: 10, kind: input, shape index: {}]
  %s11 = inlined_call_operand.vmem [shape: f32[32,1], index: 11, kind: input, shape index: {}]
  %s12 = inlined_call_operand.vmem [shape: f32[32,32], index: 12, kind: input, shape index: {}]
  %s13 = inlined_call_operand.vmem [shape: f32[32,1], index: 13, kind: input, shape index: {}]
  %s14 = inlined_call_operand.vmem [shape: f32[32,16], index: 14, kind: input, shape index: {}]
  %s15 = inlined_call_operand.vmem [shape: f32[32,32], index: 15, kind: input, shape index: {}]
  %s16 = inlined_call_operand.vmem [shape: f32[32,32], index: 16, kind: input, shape index: {}]
  %s17 = inlined_call_operand.vmem [shape: f32[32,1], index: 17, kind: input, shape index: {}]
  %s18 = inlined_call_operand.vmem [shape: f32[16,32], index: 18, kind: input, shape index: {}]
  %s19 = inlined_call_operand.vmem [shape: f32[16,1], index: 19, kind: input, shape index: {}]
  %s20 = inlined_call_operand.vmem [shape: f32[16,1], index: 20, kind: input, shape index: {}]
  %s21 = inlined_call_operand.<no memory space> [shape: f32[1,1], index: 21, kind: input, shape index: {}]
  %s22 = inlined_call_operand.vmem [shape: f32[1,512], index: 22, kind: output, shape index: {}]
  %s23 = sld [smem:[#allocation0]]
  $region121: #{af2cg_forward.2} parent=0
    _
  %s25 = ssub.s32 1, %s23
  %s26 = scalar_select 0, %s25, %s23
  %v27 = vstv %s21
  %28 = vst [vmem:[#allocation2] sm:$0x1] %v27
  loop: start=0, step=1, limit=4
  $region2: #{af2cg_forward.2} parent=0 // loop_pre_header
    _
  $region3: #{af2cg_forward.2} parent=0 // loop_header
    %s30 = sphi 0, %s34
    %p31 = scmp.ge.s32.totalorder %s30, 4
    %s40 = sphi 0, %s42
    %s43 = sphi 0, %s40
    %s44 = sphi 0, %s43
    %s60 = sphi 0, %s44
    %s66 = sphi 0, %s68
    %s69 = sphi 0, %s66
    %s70 = sphi 0, %s69
    %s86 = sphi 0, %s70
    %s92 = sphi 0, %s94
    %s95 = sphi 0, %s92
    %s96 = sphi 0, %s95
    %s112 = sphi 0, %s96
    %s116 = sphi 0, %s116
    %s118 = sphi 0, %s116
    %s119 = sphi 0, %s118
    %s133 = sphi 0, %s119
    %s137 = sphi 0, %s137
    %s139 = sphi 0, %s137
    %s140 = sphi 0, %s139
    %s154 = sphi 0, %s140
    %s158 = sphi 0, %s158
    %s160 = sphi 0, %s158
    %s161 = sphi 0, %s160
    %s175 = sphi 0, %s161
    %s179 = sphi 0, %s179
    %s181 = sphi 0, %s179
    %s182 = sphi 0, %s181
    %s196 = sphi 0, %s182
    %s200 = sphi 0, %s200
    %s202 = sphi 0, %s200
    %s203 = sphi 0, %s202
    %s217 = sphi 0, %s203
    %s221 = sphi 0, %s221
    %s223 = sphi 0, %s221
    %s224 = sphi 0, %s223
    %s238 = sphi 0, %s224
    %s242 = sphi 0, %s242
    %s244 = sphi 0, %s242
    %s245 = sphi 0, %s244
    %s259 = sphi 0, %s245
    %s263 = sphi 0, %s263
    %s265 = sphi 0, %s263
    %s266 = sphi 0, %s265
    %s280 = sphi 0, %s266
    %s284 = sphi 0, %s284
    %s286 = sphi 0, %s284
    %s287 = sphi 0, %s286
    %s301 = sphi 0, %s287
    %s305 = sphi 0, %s305
    %s307 = sphi 0, %s305
    %s308 = sphi 0, %s307
    %s322 = sphi 0, %s308
    %s326 = sphi 0, %s326
    %s328 = sphi 0, %s326
    %s329 = sphi 0, %s328
    %s343 = sphi 0, %s329
    %s347 = sphi 0, %s347
    %s349 = sphi 0, %s347
    %s350 = sphi 0, %s349
    %s364 = sphi 0, %s350
    %s368 = sphi 0, %s368
    %s370 = sphi 0, %s368
    %s371 = sphi 0, %s370
    %s385 = sphi 0, %s371
    %s389 = sphi 0, %s389
    %s391 = sphi 0, %s389
    %s392 = sphi 0, %s391
    %s406 = sphi 0, %s392
    %s410 = sphi 0, %s410
    %s412 = sphi 0, %s410
    %s413 = sphi 0, %s412
    %s427 = sphi 0, %s413
    %s431 = sphi 0, %s431
    %s433 = sphi 0, %s431
    %s434 = sphi 0, %s433
    %s448 = sphi 0, %s434
    %s452 = sphi 0, %s452
    %s454 = sphi 0, %s452
    %s455 = sphi 0, %s454
    %s469 = sphi 0, %s455
    %s473 = sphi 0, %s473
    %s475 = sphi 0, %s473
    %s476 = sphi 0, %s475
    %s490 = sphi 0, %s476
    %s494 = sphi 0, %s494
    %s496 = sphi 0, %s494
    %s497 = sphi 0, %s496
    %s511 = sphi 0, %s497
    %s517 = sphi 0, %s519
    %s520 = sphi 0, %s517
    %s521 = sphi 0, %s520
    %s537 = sphi 0, %s521
  $region4: #{af2cg_forward.2} parent=0 // loop_header_branch
    %33 = sbr.rel (%p31) target = $region8
  $region5: #{af2cg_forward.2} parent=0 // loop_body
    %s35 = ssub.s32 %s30, 1
    %s36 = ssub.s32 %s30, 2
    %s37 = sadd.s32 %s30, 1
    %s38 = ssub.s32 %s30, %s37
    %p39 = scmp.eq.s32.totalorder %s38, 0
    %s41 = sadd.s32 %s40, 1
    %s42 = scalar_select %p39, %s40, %s41
    %p45 = pneg %p39
    %p46 = scmp.eq.s32.totalorder %s30, 1
    %p47 = por %p45, %p46
    %p48 = scmp.ne.s32.totalorder %s40, %s43
    %p49 = scmp.eq.s32.totalorder %s30, 0
    %p50 = por %p48, %p49
    %p51 = scmp.ne.s32.totalorder %s40, %s43
    %p52 = scmp.eq.s32.totalorder %s35, 1
    %p53 = por %p51, %p52
    %p54 = scmp.ne.s32.totalorder %s43, %s44
    %p55 = scmp.eq.s32.totalorder %s35, 0
    %p56 = por %p54, %p55
    %p57 = scmp.ne.s32.totalorder %s43, %s44
    %p58 = scmp.eq.s32.totalorder %s36, 1
    %p59 = por %p57, %p58
    %p61 = scmp.ne.s32.totalorder %s44, %s60
    %p62 = scmp.eq.s32.totalorder %s36, 0
    %p63 = por %p61, %p62
    %s64 = ssub.s32 %s30, %s37
    %p65 = scmp.eq.s32.totalorder %s64, 0
    %s67 = sadd.s32 %s66, 1
    %s68 = scalar_select %p65, %s66, %s67
    %p71 = pneg %p65
    %p72 = scmp.eq.s32.totalorder %s30, 1
    %p73 = por %p71, %p72
    %p74 = scmp.ne.s32.totalorder %s66, %s69
    %p75 = scmp.eq.s32.totalorder %s30, 0
    %p76 = por %p74, %p75
    %p77 = scmp.ne.s32.totalorder %s66, %s69
    %p78 = scmp.eq.s32.totalorder %s35, 1
    %p79 = por %p77, %p78
    %p80 = scmp.ne.s32.totalorder %s69, %s70
    %p81 = scmp.eq.s32.totalorder %s35, 0
    %p82 = por %p80, %p81
    %p83 = scmp.ne.s32.totalorder %s69, %s70
    %p84 = scmp.eq.s32.totalorder %s36, 1
    %p85 = por %p83, %p84
    %p87 = scmp.ne.s32.totalorder %s70, %s86
    %p88 = scmp.eq.s32.totalorder %s36, 0
    %p89 = por %p87, %p88
    %s90 = ssub.s32 %s30, %s37
    %p91 = scmp.eq.s32.totalorder %s90, 0
    %s93 = sadd.s32 %s92, 1
    %s94 = scalar_select %p91, %s92, %s93
    %p97 = pneg %p91
    %p98 = scmp.eq.s32.totalorder %s30, 1
    %p99 = por %p97, %p98
    %p100 = scmp.ne.s32.totalorder %s92, %s95
    %p101 = scmp.eq.s32.totalorder %s30, 0
    %p102 = por %p100, %p101
    %p103 = scmp.ne.s32.totalorder %s92, %s95
    %p104 = scmp.eq.s32.totalorder %s35, 1
    %p105 = por %p103, %p104
    %p106 = scmp.ne.s32.totalorder %s95, %s96
    %p107 = scmp.eq.s32.totalorder %s35, 0
    %p108 = por %p106, %p107
    %p109 = scmp.ne.s32.totalorder %s95, %s96
    %p110 = scmp.eq.s32.totalorder %s36, 1
    %p111 = por %p109, %p110
    %p113 = scmp.ne.s32.totalorder %s96, %s112
    %p114 = scmp.eq.s32.totalorder %s36, 0
    %p115 = por %p113, %p114
    %s117 = sadd.s32 %s116, 1
    %p120 = scmp.eq.s32.totalorder %s30, 1
    %p121 = scmp.ne.s32.totalorder %s116, %s118
    %p122 = scmp.eq.s32.totalorder %s30, 0
    %p123 = por %p121, %p122
    %p124 = scmp.ne.s32.totalorder %s116, %s118
    %p125 = scmp.eq.s32.totalorder %s35, 1
    %p126 = por %p124, %p125
    %p127 = scmp.ne.s32.totalorder %s118, %s119
    %p128 = scmp.eq.s32.totalorder %s35, 0
    %p129 = por %p127, %p128
    %p130 = scmp.ne.s32.totalorder %s118, %s119
    %p131 = scmp.eq.s32.totalorder %s36, 1
    %p132 = por %p130, %p131
    %p134 = scmp.ne.s32.totalorder %s119, %s133
    %p135 = scmp.eq.s32.totalorder %s36, 0
    %p136 = por %p134, %p135
    %s138 = sadd.s32 %s137, 1
    %p141 = scmp.eq.s32.totalorder %s30, 1
    %p142 = scmp.ne.s32.totalorder %s137, %s139
    %p143 = scmp.eq.s32.totalorder %s30, 0
    %p144 = por %p142, %p143
    %p145 = scmp.ne.s32.totalorder %s137, %s139
    %p146 = scmp.eq.s32.totalorder %s35, 1
    %p147 = por %p145, %p146
    %p148 = scmp.ne.s32.totalorder %s139, %s140
    %p149 = scmp.eq.s32.totalorder %s35, 0
    %p150 = por %p148, %p149
    %p151 = scmp.ne.s32.totalorder %s139, %s140
    %p152 = scmp.eq.s32.totalorder %s36, 1
    %p153 = por %p151, %p152
    %p155 = scmp.ne.s32.totalorder %s140, %s154
    %p156 = scmp.eq.s32.totalorder %s36, 0
    %p157 = por %p155, %p156
    %s159 = sadd.s32 %s158, 1
    %p162 = scmp.eq.s32.totalorder %s30, 1
    %p163 = scmp.ne.s32.totalorder %s158, %s160
    %p164 = scmp.eq.s32.totalorder %s30, 0
    %p165 = por %p163, %p164
    %p166 = scmp.ne.s32.totalorder %s158, %s160
    %p167 = scmp.eq.s32.totalorder %s35, 1
    %p168 = por %p166, %p167
    %p169 = scmp.ne.s32.totalorder %s160, %s161
    %p170 = scmp.eq.s32.totalorder %s35, 0
    %p171 = por %p169, %p170
    %p172 = scmp.ne.s32.totalorder %s160, %s161
    %p173 = scmp.eq.s32.totalorder %s36, 1
    %p174 = por %p172, %p173
    %p176 = scmp.ne.s32.totalorder %s161, %s175
    %p177 = scmp.eq.s32.totalorder %s36, 0
    %p178 = por %p176, %p177
    %s180 = sadd.s32 %s179, 1
    %p183 = scmp.eq.s32.totalorder %s30, 1
    %p184 = scmp.ne.s32.totalorder %s179, %s181
    %p185 = scmp.eq.s32.totalorder %s30, 0
    %p186 = por %p184, %p185
    %p187 = scmp.ne.s32.totalorder %s179, %s181
    %p188 = scmp.eq.s32.totalorder %s35, 1
    %p189 = por %p187, %p188
    %p190 = scmp.ne.s32.totalorder %s181, %s182
    %p191 = scmp.eq.s32.totalorder %s35, 0
    %p192 = por %p190, %p191
    %p193 = scmp.ne.s32.totalorder %s181, %s182
    %p194 = scmp.eq.s32.totalorder %s36, 1
    %p195 = por %p193, %p194
    %p197 = scmp.ne.s32.totalorder %s182, %s196
    %p198 = scmp.eq.s32.totalorder %s36, 0
    %p199 = por %p197, %p198
    %s201 = sadd.s32 %s200, 1
    %p204 = scmp.eq.s32.totalorder %s30, 1
    %p205 = scmp.ne.s32.totalorder %s200, %s202
    %p206 = scmp.eq.s32.totalorder %s30, 0
    %p207 = por %p205, %p206
    %p208 = scmp.ne.s32.totalorder %s200, %s202
    %p209 = scmp.eq.s32.totalorder %s35, 1
    %p210 = por %p208, %p209
    %p211 = scmp.ne.s32.totalorder %s202, %s203
    %p212 = scmp.eq.s32.totalorder %s35, 0
    %p213 = por %p211, %p212
    %p214 = scmp.ne.s32.totalorder %s202, %s203
    %p215 = scmp.eq.s32.totalorder %s36, 1
    %p216 = por %p214, %p215
    %p218 = scmp.ne.s32.totalorder %s203, %s217
    %p219 = scmp.eq.s32.totalorder %s36, 0
    %p220 = por %p218, %p219
    %s222 = sadd.s32 %s221, 1
    %p225 = scmp.eq.s32.totalorder %s30, 1
    %p226 = scmp.ne.s32.totalorder %s221, %s223
    %p227 = scmp.eq.s32.totalorder %s30, 0
    %p228 = por %p226, %p227
    %p229 = scmp.ne.s32.totalorder %s221, %s223
    %p230 = scmp.eq.s32.totalorder %s35, 1
    %p231 = por %p229, %p230
    %p232 = scmp.ne.s32.totalorder %s223, %s224
    %p233 = scmp.eq.s32.totalorder %s35, 0
    %p234 = por %p232, %p233
    %p235 = scmp.ne.s32.totalorder %s223, %s224
    %p236 = scmp.eq.s32.totalorder %s36, 1
    %p237 = por %p235, %p236
    %p239 = scmp.ne.s32.totalorder %s224, %s238
    %p240 = scmp.eq.s32.totalorder %s36, 0
    %p241 = por %p239, %p240
    %s243 = sadd.s32 %s242, 1
    %p246 = scmp.eq.s32.totalorder %s30, 1
    %p247 = scmp.ne.s32.totalorder %s242, %s244
    %p248 = scmp.eq.s32.totalorder %s30, 0
    %p249 = por %p247, %p248
    %p250 = scmp.ne.s32.totalorder %s242, %s244
    %p251 = scmp.eq.s32.totalorder %s35, 1
    %p252 = por %p250, %p251
    %p253 = scmp.ne.s32.totalorder %s244, %s245
    %p254 = scmp.eq.s32.totalorder %s35, 0
    %p255 = por %p253, %p254
    %p256 = scmp.ne.s32.totalorder %s244, %s245
    %p257 = scmp.eq.s32.totalorder %s36, 1
    %p258 = por %p256, %p257
    %p260 = scmp.ne.s32.totalorder %s245, %s259
    %p261 = scmp.eq.s32.totalorder %s36, 0
    %p262 = por %p260, %p261
    %s264 = sadd.s32 %s263, 1
    %p267 = scmp.eq.s32.totalorder %s30, 1
    %p268 = scmp.ne.s32.totalorder %s263, %s265
    %p269 = scmp.eq.s32.totalorder %s30, 0
    %p270 = por %p268, %p269
    %p271 = scmp.ne.s32.totalorder %s263, %s265
    %p272 = scmp.eq.s32.totalorder %s35, 1
    %p273 = por %p271, %p272
    %p274 = scmp.ne.s32.totalorder %s265, %s266
    %p275 = scmp.eq.s32.totalorder %s35, 0
    %p276 = por %p274, %p275
    %p277 = scmp.ne.s32.totalorder %s265, %s266
    %p278 = scmp.eq.s32.totalorder %s36, 1
    %p279 = por %p277, %p278
    %p281 = scmp.ne.s32.totalorder %s266, %s280
    %p282 = scmp.eq.s32.totalorder %s36, 0
    %p283 = por %p281, %p282
    %s285 = sadd.s32 %s284, 1
    %p288 = scmp.eq.s32.totalorder %s30, 1
    %p289 = scmp.ne.s32.totalorder %s284, %s286
    %p290 = scmp.eq.s32.totalorder %s30, 0
    %p291 = por %p289, %p290
    %p292 = scmp.ne.s32.totalorder %s284, %s286
    %p293 = scmp.eq.s32.totalorder %s35, 1
    %p294 = por %p292, %p293
    %p295 = scmp.ne.s32.totalorder %s286, %s287
    %p296 = scmp.eq.s32.totalorder %s35, 0
    %p297 = por %p295, %p296
    %p298 = scmp.ne.s32.totalorder %s286, %s287
    %p299 = scmp.eq.s32.totalorder %s36, 1
    %p300 = por %p298, %p299
    %p302 = scmp.ne.s32.totalorder %s287, %s301
    %p303 = scmp.eq.s32.totalorder %s36, 0
    %p304 = por %p302, %p303
    %s306 = sadd.s32 %s305, 1
    %p309 = scmp.eq.s32.totalorder %s30, 1
    %p310 = scmp.ne.s32.totalorder %s305, %s307
    %p311 = scmp.eq.s32.totalorder %s30, 0
    %p312 = por %p310, %p311
    %p313 = scmp.ne.s32.totalorder %s305, %s307
    %p314 = scmp.eq.s32.totalorder %s35, 1
    %p315 = por %p313, %p314
    %p316 = scmp.ne.s32.totalorder %s307, %s308
    %p317 = scmp.eq.s32.totalorder %s35, 0
    %p318 = por %p316, %p317
    %p319 = scmp.ne.s32.totalorder %s307, %s308
    %p320 = scmp.eq.s32.totalorder %s36, 1
    %p321 = por %p319, %p320
    %p323 = scmp.ne.s32.totalorder %s308, %s322
    %p324 = scmp.eq.s32.totalorder %s36, 0
    %p325 = por %p323, %p324
    %s327 = sadd.s32 %s326, 1
    %p330 = scmp.eq.s32.totalorder %s30, 1
    %p331 = scmp.ne.s32.totalorder %s326, %s328
    %p332 = scmp.eq.s32.totalorder %s30, 0
    %p333 = por %p331, %p332
    %p334 = scmp.ne.s32.totalorder %s326, %s328
    %p335 = scmp.eq.s32.totalorder %s35, 1
    %p336 = por %p334, %p335
    %p337 = scmp.ne.s32.totalorder %s328, %s329
    %p338 = scmp.eq.s32.totalorder %s35, 0
    %p339 = por %p337, %p338
    %p340 = scmp.ne.s32.totalorder %s328, %s329
    %p341 = scmp.eq.s32.totalorder %s36, 1
    %p342 = por %p340, %p341
    %p344 = scmp.ne.s32.totalorder %s329, %s343
    %p345 = scmp.eq.s32.totalorder %s36, 0
    %p346 = por %p344, %p345
    %s348 = sadd.s32 %s347, 1
    %p351 = scmp.eq.s32.totalorder %s30, 1
    %p352 = scmp.ne.s32.totalorder %s347, %s349
    %p353 = scmp.eq.s32.totalorder %s30, 0
    %p354 = por %p352, %p353
    %p355 = scmp.ne.s32.totalorder %s347, %s349
    %p356 = scmp.eq.s32.totalorder %s35, 1
    %p357 = por %p355, %p356
    %p358 = scmp.ne.s32.totalorder %s349, %s350
    %p359 = scmp.eq.s32.totalorder %s35, 0
    %p360 = por %p358, %p359
    %p361 = scmp.ne.s32.totalorder %s349, %s350
    %p362 = scmp.eq.s32.totalorder %s36, 1
    %p363 = por %p361, %p362
    %p365 = scmp.ne.s32.totalorder %s350, %s364
    %p366 = scmp.eq.s32.totalorder %s36, 0
    %p367 = por %p365, %p366
    %s369 = sadd.s32 %s368, 1
    %p372 = scmp.eq.s32.totalorder %s30, 1
    %p373 = scmp.ne.s32.totalorder %s368, %s370
    %p374 = scmp.eq.s32.totalorder %s30, 0
    %p375 = por %p373, %p374
    %p376 = scmp.ne.s32.totalorder %s368, %s370
    %p377 = scmp.eq.s32.totalorder %s35, 1
    %p378 = por %p376, %p377
    %p379 = scmp.ne.s32.totalorder %s370, %s371
    %p380 = scmp.eq.s32.totalorder %s35, 0
    %p381 = por %p379, %p380
    %p382 = scmp.ne.s32.totalorder %s370, %s371
    %p383 = scmp.eq.s32.totalorder %s36, 1
    %p384 = por %p382, %p383
    %p386 = scmp.ne.s32.totalorder %s371, %s385
    %p387 = scmp.eq.s32.totalorder %s36, 0
    %p388 = por %p386, %p387
    %s390 = sadd.s32 %s389, 1
    %p393 = scmp.eq.s32.totalorder %s30, 1
    %p394 = scmp.ne.s32.totalorder %s389, %s391
    %p395 = scmp.eq.s32.totalorder %s30, 0
    %p396 = por %p394, %p395
    %p397 = scmp.ne.s32.totalorder %s389, %s391
    %p398 = scmp.eq.s32.totalorder %s35, 1
    %p399 = por %p397, %p398
    %p400 = scmp.ne.s32.totalorder %s391, %s392
    %p401 = scmp.eq.s32.totalorder %s35, 0
    %p402 = por %p400, %p401
    %p403 = scmp.ne.s32.totalorder %s391, %s392
    %p404 = scmp.eq.s32.totalorder %s36, 1
    %p405 = por %p403, %p404
    %p407 = scmp.ne.s32.totalorder %s392, %s406
    %p408 = scmp.eq.s32.totalorder %s36, 0
    %p409 = por %p407, %p408
    %s411 = sadd.s32 %s410, 1
    %p414 = scmp.eq.s32.totalorder %s30, 1
    %p415 = scmp.ne.s32.totalorder %s410, %s412
    %p416 = scmp.eq.s32.totalorder %s30, 0
    %p417 = por %p415, %p416
    %p418 = scmp.ne.s32.totalorder %s410, %s412
    %p419 = scmp.eq.s32.totalorder %s35, 1
    %p420 = por %p418, %p419
    %p421 = scmp.ne.s32.totalorder %s412, %s413
    %p422 = scmp.eq.s32.totalorder %s35, 0
    %p423 = por %p421, %p422
    %p424 = scmp.ne.s32.totalorder %s412, %s413
    %p425 = scmp.eq.s32.totalorder %s36, 1
    %p426 = por %p424, %p425
    %p428 = scmp.ne.s32.totalorder %s413, %s427
    %p429 = scmp.eq.s32.totalorder %s36, 0
    %p430 = por %p428, %p429
    %s432 = sadd.s32 %s431, 1
    %p435 = scmp.eq.s32.totalorder %s30, 1
    %p436 = scmp.ne.s32.totalorder %s431, %s433
    %p437 = scmp.eq.s32.totalorder %s30, 0
    %p438 = por %p436, %p437
    %p439 = scmp.ne.s32.totalorder %s431, %s433
    %p440 = scmp.eq.s32.totalorder %s35, 1
    %p441 = por %p439, %p440
    %p442 = scmp.ne.s32.totalorder %s433, %s434
    %p443 = scmp.eq.s32.totalorder %s35, 0
    %p444 = por %p442, %p443
    %p445 = scmp.ne.s32.totalorder %s433, %s434
    %p446 = scmp.eq.s32.totalorder %s36, 1
    %p447 = por %p445, %p446
    %p449 = scmp.ne.s32.totalorder %s434, %s448
    %p450 = scmp.eq.s32.totalorder %s36, 0
    %p451 = por %p449, %p450
    %s453 = sadd.s32 %s452, 1
    %p456 = scmp.eq.s32.totalorder %s30, 1
    %p457 = scmp.ne.s32.totalorder %s452, %s454
    %p458 = scmp.eq.s32.totalorder %s30, 0
    %p459 = por %p457, %p458
    %p460 = scmp.ne.s32.totalorder %s452, %s454
    %p461 = scmp.eq.s32.totalorder %s35, 1
    %p462 = por %p460, %p461
    %p463 = scmp.ne.s32.totalorder %s454, %s455
    %p464 = scmp.eq.s32.totalorder %s35, 0
    %p465 = por %p463, %p464
    %p466 = scmp.ne.s32.totalorder %s454, %s455
    %p467 = scmp.eq.s32.totalorder %s36, 1
    %p468 = por %p466, %p467
    %p470 = scmp.ne.s32.totalorder %s455, %s469
    %p471 = scmp.eq.s32.totalorder %s36, 0
    %p472 = por %p470, %p471
    %s474 = sadd.s32 %s473, 1
    %p477 = scmp.eq.s32.totalorder %s30, 1
    %p478 = scmp.ne.s32.totalorder %s473, %s475
    %p479 = scmp.eq.s32.totalorder %s30, 0
    %p480 = por %p478, %p479
    %p481 = scmp.ne.s32.totalorder %s473, %s475
    %p482 = scmp.eq.s32.totalorder %s35, 1
    %p483 = por %p481, %p482
    %p484 = scmp.ne.s32.totalorder %s475, %s476
    %p485 = scmp.eq.s32.totalorder %s35, 0
    %p486 = por %p484, %p485
    %p487 = scmp.ne.s32.totalorder %s475, %s476
    %p488 = scmp.eq.s32.totalorder %s36, 1
    %p489 = por %p487, %p488
    %p491 = scmp.ne.s32.totalorder %s476, %s490
    %p492 = scmp.eq.s32.totalorder %s36, 0
    %p493 = por %p491, %p492
    %s495 = sadd.s32 %s494, 1
    %p498 = scmp.eq.s32.totalorder %s30, 1
    %p499 = scmp.ne.s32.totalorder %s494, %s496
    %p500 = scmp.eq.s32.totalorder %s30, 0
    %p501 = por %p499, %p500
    %p502 = scmp.ne.s32.totalorder %s494, %s496
    %p503 = scmp.eq.s32.totalorder %s35, 1
    %p504 = por %p502, %p503
    %p505 = scmp.ne.s32.totalorder %s496, %s497
    %p506 = scmp.eq.s32.totalorder %s35, 0
    %p507 = por %p505, %p506
    %p508 = scmp.ne.s32.totalorder %s496, %s497
    %p509 = scmp.eq.s32.totalorder %s36, 1
    %p510 = por %p508, %p509
    %p512 = scmp.ne.s32.totalorder %s497, %s511
    %p513 = scmp.eq.s32.totalorder %s36, 0
    %p514 = por %p512, %p513
    %s515 = ssub.s32 %s30, %s37
    %p516 = scmp.eq.s32.totalorder %s515, 0
    %s518 = sadd.s32 %s517, 1
    %s519 = scalar_select %p516, %s517, %s518
    %p522 = pneg %p516
    %p523 = scmp.eq.s32.totalorder %s30, 1
    %p524 = por %p522, %p523
    %p525 = scmp.ne.s32.totalorder %s517, %s520
    %p526 = scmp.eq.s32.totalorder %s30, 0
    %p527 = por %p525, %p526
    %p528 = scmp.ne.s32.totalorder %s517, %s520
    %p529 = scmp.eq.s32.totalorder %s35, 1
    %p530 = por %p528, %p529
    %p531 = scmp.ne.s32.totalorder %s520, %s521
    %p532 = scmp.eq.s32.totalorder %s35, 0
    %p533 = por %p531, %p532
    %p534 = scmp.ne.s32.totalorder %s520, %s521
    %p535 = scmp.eq.s32.totalorder %s36, 1
    %p536 = por %p534, %p535
    %p538 = scmp.ne.s32.totalorder %s521, %s537
    %p539 = scmp.eq.s32.totalorder %s36, 0
    %p540 = por %p538, %p539
    %p541 = scmp.le.s32.totalorder 1, %s30
    %p542 = scmp.lt.s32.totalorder %s30, 3
    %p543 = pnand %p541, %p542
    %p544 = pneg %p543
    // Predicated region
    $region9: #{af2cg_forward.2} parent=5 // pred_check
      _
    $region10: #{af2cg_forward.2} parent=5 // pred_check_branch
      %546 = sbr.rel (%p543) target = $region12
    $region11: #{af2cg_forward.2} parent=5 // pred_region
      %s547 = ssub.s32 %s30, 1
      // Predicated region
      $region13: #{af2cg_forward.2} parent=11 // pred_check
        %p548 = pneg %p129
      $region14: #{af2cg_forward.2} parent=11 // pred_check_branch
        %550 = sbr.rel (%p548) target = $region16
      $region15: #{af2cg_forward.2} parent=11 // pred_region
        _
      $region16: #{af2cg_forward.2} parent=11 // pred_fallthru
        _
      // Predicated region
      $region17: #{af2cg_forward.2} parent=11 // pred_check
        %p551 = pneg %p150
      $region18: #{af2cg_forward.2} parent=11 // pred_check_branch
        %553 = sbr.rel (%p551) target = $region20
      $region19: #{af2cg_forward.2} parent=11 // pred_region
        _
      $region20: #{af2cg_forward.2} parent=11 // pred_fallthru
        _
      // Predicated region
      $region21: #{af2cg_forward.2} parent=11 // pred_check
        %p554 = pneg %p171
      $region22: #{af2cg_forward.2} parent=11 // pred_check_branch
        %556 = sbr.rel (%p554) target = $region24
      $region23: #{af2cg_forward.2} parent=11 // pred_region
        _
      $region24: #{af2cg_forward.2} parent=11 // pred_fallthru
        _
      // Predicated region
      $region25: #{af2cg_forward.2} parent=11 // pred_check
        %p557 = pneg %p192
      $region26: #{af2cg_forward.2} parent=11 // pred_check_branch
        %559 = sbr.rel (%p557) target = $region28
      $region27: #{af2cg_forward.2} parent=11 // pred_region
        _
      $region28: #{af2cg_forward.2} parent=11 // pred_fallthru
        _
      // Predicated region
      $region29: #{af2cg_forward.2} parent=11 // pred_check
        %p560 = pneg %p213
      $region30: #{af2cg_forward.2} parent=11 // pred_check_branch
        %562 = sbr.rel (%p560) target = $region32
      $region31: #{af2cg_forward.2} parent=11 // pred_region
        _
      $region32: #{af2cg_forward.2} parent=11 // pred_fallthru
        _
      // Predicated region
      $region33: #{af2cg_forward.2} parent=11 // pred_check
        %p563 = pneg %p234
      $region34: #{af2cg_forward.2} parent=11 // pred_check_branch
        %565 = sbr.rel (%p563) target = $region36
      $region35: #{af2cg_forward.2} parent=11 // pred_region
        _
      $region36: #{af2cg_forward.2} parent=11 // pred_fallthru
        _
      // Predicated region
      $region37: #{af2cg_forward.2} parent=11 // pred_check
        %p566 = pneg %p255
      $region38: #{af2cg_forward.2} parent=11 // pred_check_branch
        %568 = sbr.rel (%p566) target = $region40
      $region39: #{af2cg_forward.2} parent=11 // pred_region
        _
      $region40: #{af2cg_forward.2} parent=11 // pred_fallthru
        _
      // Predicated region
      $region41: #{af2cg_forward.2} parent=11 // pred_check
        %p569 = pneg %p276
      $region42: #{af2cg_forward.2} parent=11 // pred_check_branch
        %571 = sbr.rel (%p569) target = $region44
      $region43: #{af2cg_forward.2} parent=11 // pred_region
        _
      $region44: #{af2cg_forward.2} parent=11 // pred_fallthru
        _
      // Predicated region
      $region45: #{af2cg_forward.2} parent=11 // pred_check
        %p572 = pneg %p297
      $region46: #{af2cg_forward.2} parent=11 // pred_check_branch
        %574 = sbr.rel (%p572) target = $region48
      $region47: #{af2cg_forward.2} parent=11 // pred_region
        _
      $region48: #{af2cg_forward.2} parent=11 // pred_fallthru
        _
      // Predicated region
      $region49: #{af2cg_forward.2} parent=11 // pred_check
        %p575 = pneg %p318
      $region50: #{af2cg_forward.2} parent=11 // pred_check_branch
        %577 = sbr.rel (%p575) target = $region52
      $region51: #{af2cg_forward.2} parent=11 // pred_region
        _
      $region52: #{af2cg_forward.2} parent=11 // pred_fallthru
        _
      // Predicated region
      $region53: #{af2cg_forward.2} parent=11 // pred_check
        %p578 = pneg %p339
      $region54: #{af2cg_forward.2} parent=11 // pred_check_branch
        %580 = sbr.rel (%p578) target = $region56
      $region55: #{af2cg_forward.2} parent=11 // pred_region
        _
      $region56: #{af2cg_forward.2} parent=11 // pred_fallthru
        _
      // Predicated region
      $region57: #{af2cg_forward.2} parent=11 // pred_check
        %p581 = pneg %p360
      $region58: #{af2cg_forward.2} parent=11 // pred_check_branch
        %583 = sbr.rel (%p581) target = $region60
      $region59: #{af2cg_forward.2} parent=11 // pred_region
        _
      $region60: #{af2cg_forward.2} parent=11 // pred_fallthru
        _
      // Predicated region
      $region61: #{af2cg_forward.2} parent=11 // pred_check
        %p584 = pneg %p381
      $region62: #{af2cg_forward.2} parent=11 // pred_check_branch
        %586 = sbr.rel (%p584) target = $region64
      $region63: #{af2cg_forward.2} parent=11 // pred_region
        _
      $region64: #{af2cg_forward.2} parent=11 // pred_fallthru
        _
      // Predicated region
      $region65: #{af2cg_forward.2} parent=11 // pred_check
        %p587 = pneg %p402
      $region66: #{af2cg_forward.2} parent=11 // pred_check_branch
        %589 = sbr.rel (%p587) target = $region68
      $region67: #{af2cg_forward.2} parent=11 // pred_region
        _
      $region68: #{af2cg_forward.2} parent=11 // pred_fallthru
        _
      // Predicated region
      $region69: #{af2cg_forward.2} parent=11 // pred_check
        %p590 = pneg %p423
      $region70: #{af2cg_forward.2} parent=11 // pred_check_branch
        %592 = sbr.rel (%p590) target = $region72
      $region71: #{af2cg_forward.2} parent=11 // pred_region
        _
      $region72: #{af2cg_forward.2} parent=11 // pred_fallthru
        _
      // Predicated region
      $region73: #{af2cg_forward.2} parent=11 // pred_check
        %p593 = pneg %p444
      $region74: #{af2cg_forward.2} parent=11 // pred_check_branch
        %595 = sbr.rel (%p593) target = $region76
      $region75: #{af2cg_forward.2} parent=11 // pred_region
        _
      $region76: #{af2cg_forward.2} parent=11 // pred_fallthru
        _
      // Predicated region
      $region77: #{af2cg_forward.2} parent=11 // pred_check
        %p596 = pneg %p465
      $region78: #{af2cg_forward.2} parent=11 // pred_check_branch
        %598 = sbr.rel (%p596) target = $region80
      $region79: #{af2cg_forward.2} parent=11 // pred_region
        _
      $region80: #{af2cg_forward.2} parent=11 // pred_fallthru
        _
      // Predicated region
      $region81: #{af2cg_forward.2} parent=11 // pred_check
        %p599 = pneg %p486
      $region82: #{af2cg_forward.2} parent=11 // pred_check_branch
        %601 = sbr.rel (%p599) target = $region84
      $region83: #{af2cg_forward.2} parent=11 // pred_region
        _
      $region84: #{af2cg_forward.2} parent=11 // pred_fallthru
        _
      // Predicated region
      $region85: #{af2cg_forward.2} parent=11 // pred_check
        %p602 = pneg %p507
      $region86: #{af2cg_forward.2} parent=11 // pred_check_branch
        %604 = sbr.rel (%p602) target = $region88
      $region87: #{af2cg_forward.2} parent=11 // pred_region
        _
      $region88: #{af2cg_forward.2} parent=11 // pred_fallthru
        _
    $region12: #{af2cg_forward.2} parent=5 // pred_fallthru
      _
    %p605 = scmp.lt.s32.totalorder %s30, 2
    // Predicated region
    $region89: #{af2cg_forward.2} parent=5 // pred_check
      %p606 = pneg %p605
    $region90: #{af2cg_forward.2} parent=5 // pred_check_branch
      %608 = sbr.rel (%p606) target = $region92
    $region91: #{af2cg_forward.2} parent=5 // pred_region
      // Predicated region
      $region93: #{af2cg_forward.2} parent=91 // pred_check
        %p609 = pneg %p50
      $region94: #{af2cg_forward.2} parent=91 // pred_check_branch
        %611 = sbr.rel (%p609) target = $region96
      $region95: #{af2cg_forward.2} parent=91 // pred_region
        %s612 = smul.u32 2, %s30
        %p613 = scmp.lt.s32.totalorder %s612, 3
        %s614 = scalar_select %p613, %s612, 3
        %s615 = scalar_lea.vmem %s0, %s614
        %s616 = smul.u32 2, %s30
      $region96: #{af2cg_forward.2} parent=91 // pred_fallthru
        _
      // Predicated region
      $region97: #{af2cg_forward.2} parent=91 // pred_check
        %p617 = pneg %p76
      $region98: #{af2cg_forward.2} parent=91 // pred_check_branch
        %619 = sbr.rel (%p617) target = $region100
      $region99: #{af2cg_forward.2} parent=91 // pred_region
        %s620 = smul.u32 2, %s30
        %p621 = scmp.lt.s32.totalorder %s620, 3
        %s622 = scalar_select %p621, %s620, 3
        %s623 = scalar_lea.vmem %s1, %s622
        %s624 = smul.u32 2, %s30
      $region100: #{af2cg_forward.2} parent=91 // pred_fallthru
        _
      // Predicated region
      $region101: #{af2cg_forward.2} parent=91 // pred_check
        %p625 = pneg %p102
      $region102: #{af2cg_forward.2} parent=91 // pred_check_branch
        %627 = sbr.rel (%p625) target = $region104
      $region103: #{af2cg_forward.2} parent=91 // pred_region
        %s628 = smul.u32 2, %s30
        %p629 = scmp.lt.s32.totalorder %s628, 3
        %s630 = scalar_select %p629, %s628, 3
        %s631 = scalar_lea.vmem %s2, %s630
        %s632 = smul.u32 2, %s30
      $region104: #{af2cg_forward.2} parent=91 // pred_fallthru
        _
    $region92: #{af2cg_forward.2} parent=5 // pred_fallthru
      _
    %p633 = scmp.le.s32.totalorder 1, %s30
    %p634 = scmp.lt.s32.totalorder %s30, 3
    %p635 = pnand %p633, %p634
    %p636 = pneg %p635
    // Predicated region
    $region105: #{af2cg_forward.2} parent=5 // pred_check
      _
    $region106: #{af2cg_forward.2} parent=5 // pred_check_branch
      %638 = sbr.rel (%p635) target = $region108
    $region107: #{af2cg_forward.2} parent=5 // pred_region
      %s639 = ssub.s32 %s30, 1
      %s640 = smul.u32 2, %s35
      %p641 = scmp.lt.s32.totalorder %s640, 3
      %s642 = scalar_select %p641, %s640, 3
      %s643 = scalar_lea.vmem %s0, %s642
      %p644 = pneg %p56
      %p645 = pneg %p53
      %s646 = smul.u32 2, %s35
      %p647 = scmp.lt.s32.totalorder %s646, 3
      %s648 = scalar_select %p647, %s646, 3
      %s649 = scalar_lea.vmem %s1, %s648
      %p650 = pneg %p82
      %p651 = pneg %p79
      %s652 = smul.u32 2, %s35
      %p653 = scmp.lt.s32.totalorder %s652, 3
      %s654 = scalar_select %p653, %s652, 3
      %s655 = scalar_lea.vmem %s2, %s654
      %p656 = pneg %p108
      %p657 = pneg %p105
      %p658 = pneg %p129
      %p659 = pneg %p126
      %p660 = pneg %p150
      %p661 = pneg %p147
      %p662 = pneg %p171
      %p663 = pneg %p168
      %p664 = pneg %p192
      %p665 = pneg %p189
      %p666 = pneg %p213
      %p667 = pneg %p210
      %p668 = pneg %p234
      %p669 = pneg %p231
      %p670 = pneg %p255
      %p671 = pneg %p252
      %p672 = pneg %p276
      %p673 = pneg %p273
      %p674 = pneg %p297
      %p675 = pneg %p294
      %p676 = pneg %p318
      %p677 = pneg %p315
      %p678 = pneg %p339
      %p679 = pneg %p336
      %p680 = pneg %p360
      %p681 = pneg %p357
      %p682 = pneg %p381
      %p683 = pneg %p378
      %p684 = pneg %p402
      %p685 = pneg %p399
      %p686 = pneg %p423
      %p687 = pneg %p420
      %p688 = pneg %p444
      %p689 = pneg %p441
      %p690 = pneg %p465
      %p691 = pneg %p462
      %p692 = pneg %p486
      %p693 = pneg %p483
      %p694 = pneg %p507
      %p695 = pneg %p504
      %p696 = pneg %p533
      %p697 = pneg %p530
      %s698 = smul.u32 2, %s35
      %p699 = scmp.lt.s32.totalorder %s698, 3
      %s700 = scalar_select %p699, %s698, 3
      %s701 = scalar_lea.vmem %s22, %s700
      %s702 = smul.u32 2, %s35
      %p703 = scmp.lt.s32.totalorder %s702, 3
      %s704 = scalar_select %p703, %s702, 3
      %s705 = scalar_lea.vmem %s0, %s704
      %s706 = smul.u32 2, %s35
      %s707 = smul.u32 2, %s35
      %p708 = scmp.lt.s32.totalorder %s707, 3
      %s709 = scalar_select %p708, %s707, 3
      %s710 = scalar_lea.vmem %s1, %s709
      %s711 = smul.u32 2, %s35
      %s712 = smul.u32 2, %s35
      %p713 = scmp.lt.s32.totalorder %s712, 3
      %s714 = scalar_select %p713, %s712, 3
      %s715 = scalar_lea.vmem %s2, %s714
      %s716 = smul.u32 2, %s35
      %s717 = smul.u32 2, %s35
      %p718 = scmp.lt.s32.totalorder %s717, 3
      %s719 = scalar_select %p718, %s717, 3
      %s720 = scalar_lea.vmem %s22, %s719
      %s721 = smul.u32 2, %s35
      %v722 = vld [vmem:[%s715] sm:$0x3]
      %v723 = vld [vmem:[%s705] sm:$0x3]
      %v724 = vlaneseq
      %v725 = vshrl.u32 %v724, 7
      %v726 = vadd.s32 %v725, 8
      %v727 = vld [vmem:[%s710] sm:$0x3]
      %v728 = vlaneseq
      %v729 = vshrl.u32 %v728, 7
      %v730 = vsub.s32 0, %v729
      %v731 = vrot.slane %v727, %v730
      %v732 = vlaneseq
      %v733 = vshrl.u32 %v732, 7
      %v734 = vsub.s32 1, %v733
      %v735 = vrot.slane %v727, %v734
      %vm736 = vcmp.eq.s32.totalorder %v731, %v725
      %vm737 = vcmp.eq.s32.totalorder %v735, %v725
      %vm738 = vcmp.eq.s32.totalorder %v731, %v726
      %vm739 = vcmp.eq.s32.totalorder %v735, %v726
      %v740 = vsel %vm736, 1, 0
      %v741 = vsel %vm737, 1, 0
      %v742 = vsel %vm738, 1, 0
      %v743 = vsel %vm739, 1, 0
      %v744 = vcvt.s32.f32 %v740
      %v745 = vcvt.s32.f32 %v741
      %v746 = vcvt.s32.f32 %v742
      %v747 = vcvt.s32.f32 %v743
      %v748 = vld [vmem:[%s3] sm:$0xff]
      %v749 = vld [vmem:[%s3 + $0x8] sm:$0xff]
      %751 = vset.pattern.permute.xlu0 0
      %752 = vperm.xlu0 %751, %v748
      %v753 = vpop.permute.xlu0 %752
      %756 = vset.pattern.permute.xlu0 0
      %757 = vperm.xlu0 %756, %v749
      %v758 = vpop.permute.xlu0 %757
      %v761 = vlaneseq
      %v762 = vshrl.u32 %v761, 7
      %v763 = vsub.s32 0, %v762
      %v764 = vrot.slane %v723, %v763
      %v765 = vlaneseq
      %v766 = vshrl.u32 %v765, 7
      %v767 = vsub.s32 1, %v766
      %v768 = vrot.slane %v723, %v767
      %v771 = vmul.f32 %v753, %v764
      %v772 = vmul.f32 %v753, %v768
      %v773 = vmul.f32 %v758, %v764
      %v774 = vmul.f32 %v758, %v768
      %v775 = vld [vmem:[%s4] sm:$0xff]
      %v776 = vld [vmem:[%s4 + $0x8] sm:$0xff]
      %778 = vset.pattern.permute.xlu0 0
      %779 = vperm.xlu0 %778, %v775
      %v780 = vpop.permute.xlu0 %779
      %783 = vset.pattern.permute.xlu0 0
      %784 = vperm.xlu0 %783, %v776
      %v785 = vpop.permute.xlu0 %784
      %v787 = vadd.f32 %v771, %v780
      %v788 = vadd.f32 %v772, %v780
      %v789 = vadd.f32 %v773, %v785
      %v790 = vadd.f32 %v774, %v785
      %v792 = vlaneseq
      %v793 = vshrl.u32 %v792, 7
      %v794 = vsub.s32 0, %v793
      %v795 = vrot.slane %v722, %v794
      %v796 = vlaneseq
      %v797 = vshrl.u32 %v796, 7
      %v798 = vsub.s32 1, %v797
      %v799 = vrot.slane %v722, %v798
      %v802 = vmul.f32 %v787, %v795
      %v803 = vmul.f32 %v788, %v799
      %v804 = vmul.f32 %v789, %v795
      %v805 = vmul.f32 %v790, %v799
      %v806 = vld [vmem:[%s5] sm:$0xff]
      %v807 = vld [vmem:[%s5 + $0x8] sm:$0xff]
      %v808 = vld [vmem:[%s6] sm:$0xff]
      %v809 = vld [vmem:[%s6 + $0x8] sm:$0xff]
      %811 = vset.pattern.permute.xlu0 0
      %812 = vperm.xlu0 %811, %v808
      %v813 = vpop.permute.xlu0 %812
      %816 = vset.pattern.permute.xlu0 0
      %817 = vperm.xlu0 %816, %v809
      %v818 = vpop.permute.xlu0 %817
      %vm820 = vcmask 130048
      %v822 = vsel %vm820, %v806, 0
      %v825 = vsel %vm820, %v807, 0
      %827 = vmatprep.subr.mxu0 %v745
      %828 = vmatpush1.msra.mxu0 %v744
      %829 = vmatprep.subr.mxu0 %v747
      %830 = vmatpush1.msra.mxu0 %v746
      %831 = vmatprep.subr.mxu0 0.0
      %832 = vmatpush1.msra.mxu0 0.0
      %833 = vmatprep.subr.mxu0 0.0
      %834 = vmatpush1.msra.mxu0 0.0
      %835 = vmatprep.subr.mxu0 0.0
      %836 = vmatpush1.msra.mxu0 0.0
      %837 = vmatprep.subr.mxu0 0.0
      %838 = vmatpush1.msra.mxu0 0.0
      %839 = vmatprep.subr.mxu0 0.0
      %840 = vmatpush1.msra.mxu0 0.0
      %841 = vmatprep.subr.mxu0 0.0
      %842 = vmatpush1.msra.mxu0 0.0
      %843 = vmatprep.subr.mxu0 0.0
      %844 = vmatpush1.msra.mxu0 0.0
      %845 = vmatprep.subr.mxu0 0.0
      %846 = vmatpush1.msra.mxu0 0.0
      %847 = vmatprep.subr.mxu0 0.0
      %848 = vmatpush1.msra.mxu0 0.0
      %849 = vmatprep.subr.mxu0 0.0
      %850 = vmatpush1.msra.mxu0 0.0
      %851 = vmatprep.subr.mxu0 0.0
      %852 = vmatpush1.msra.mxu0 0.0
      %853 = vmatprep.subr.mxu0 0.0
      %854 = vmatpush1.msra.mxu0 0.0
      %855 = vmatprep.subr.mxu0 0.0
      %856 = vmatpush1.msra.mxu0 0.0
      %857 = vmatprep.subr.mxu0 0.0
      %858 = vmatpush1.msra.mxu0 0.0
      %859 = vmatprep.subr.mxu0 0.0
      %860 = vmatpush1.msra.mxu0 0.0
      %861 = vmatprep.subr.mxu0 0.0
      %862 = vmatpush1.msra.mxu0 0.0
      %863 = vmatprep.subr.mxu0 0.0
      %864 = vmatpush1.msra.mxu0 0.0
      %865 = vmatprep.subr.mxu0 0.0
      %866 = vmatpush1.msra.mxu0 0.0
      %867 = vmatprep.subr.mxu0 0.0
      %868 = vmatpush1.msra.mxu0 0.0
      %869 = vmatprep.subr.mxu0 0.0
      %870 = vmatpush1.msra.mxu0 0.0
      %871 = vmatprep.subr.mxu0 0.0
      %872 = vmatpush1.msra.mxu0 0.0
      %873 = vmatprep.subr.mxu0 0.0
      %874 = vmatpush1.msra.mxu0 0.0
      %875 = vmatprep.subr.mxu0 0.0
      %876 = vmatpush1.msra.mxu0 0.0
      %877 = vmatprep.subr.mxu0 0.0
      %878 = vmatpush1.msra.mxu0 0.0
      %879 = vmatprep.subr.mxu0 0.0
      %880 = vmatpush1.msra.mxu0 0.0
      %881 = vmatprep.subr.mxu0 0.0
      %882 = vmatpush1.msra.mxu0 0.0
      %883 = vmatprep.subr.mxu0 0.0
      %884 = vmatpush1.msra.mxu0 0.0
      %885 = vmatprep.subr.mxu0 0.0
      %886 = vmatpush1.msra.mxu0 0.0
      %887 = vmatprep.subr.mxu0 0.0
      %888 = vmatpush1.msra.mxu0 0.0
      %889 = vmatprep.subr.mxu0 0.0
      %890 = vmatpush1.msra.mxu0 0.0
      %891 = vmatprep.mubr.f32.mxu0 0.0
      %892 = vmatmul.mubr.f32.gmra.mrb[0].mxu0 %v822
      %v893 = vpop.f32.mrb[0].mxu0
      %v894 = vadd.f32 %v813, %v893
      %v895 = vpop.f32.mrb[0].mxu0
      %v896 = vadd.f32 %v813, %v895
      %897 = vmatprep.mubr.f32.mxu0 0.0
      %898 = vmatmul.mubr.f32.gmra.mrb[0].mxu0 %v825
      %v899 = vpop.f32.mrb[0].mxu0
      %v900 = vadd.f32 %v818, %v899
      %v901 = vpop.f32.mrb[0].mxu0
      %v902 = vadd.f32 %v818, %v901
      %903 = vdwg.mxu0
      %v904 = vmul.f32 %v894, %v795
      %v905 = vmul.f32 %v896, %v799
      %v906 = vmul.f32 %v900, %v795
      %v907 = vmul.f32 %v902, %v799
      %v908 = vld [vmem:[%s7] sm:$0xff]
      %v909 = vld [vmem:[%s7 + $0x8] sm:$0xff]
      %v910 = vld [vmem:[%s7 + $0x10] sm:$0xff]
      %v911 = vld [vmem:[%s7 + $0x18] sm:$0xff]
      %v912 = vld [vmem:[%s8] sm:$0xff]
      %v913 = vld [vmem:[%s8 + $0x8] sm:$0xff]
      %v914 = vld [vmem:[%s8 + $0x10] sm:$0xff]
      %v915 = vld [vmem:[%s8 + $0x18] sm:$0xff]
      %v917 = vsel %vm820, %v912, 0
      %v920 = vsel %vm820, %v913, 0
      %v923 = vsel %vm820, %v914, 0
      %v926 = vsel %vm820, %v915, 0
      %928 = vmatprep.subr.mxu0 %v905
      %929 = vmatpush1.msra.mxu0 %v904
      %930 = vmatprep.subr.mxu0 %v907
      %931 = vmatpush1.msra.mxu0 %v906
      %932 = vmatprep.subr.mxu0 0.0
      %933 = vmatpush1.msra.mxu0 0.0
      %934 = vmatprep.subr.mxu0 0.0
      %935 = vmatpush1.msra.mxu0 0.0
      %936 = vmatprep.subr.mxu0 0.0
      %937 = vmatpush1.msra.mxu0 0.0
      %938 = vmatprep.subr.mxu0 0.0
      %939 = vmatpush1.msra.mxu0 0.0
      %940 = vmatprep.subr.mxu0 0.0
      %941 = vmatpush1.msra.mxu0 0.0
      %942 = vmatprep.subr.mxu0 0.0
      %943 = vmatpush1.msra.mxu0 0.0
      %944 = vmatprep.subr.mxu0 0.0
      %945 = vmatpush1.msra.mxu0 0.0
      %946 = vmatprep.subr.mxu0 0.0
      %947 = vmatpush1.msra.mxu0 0.0
      %948 = vmatprep.subr.mxu0 0.0
      %949 = vmatpush1.msra.mxu0 0.0
      %950 = vmatprep.subr.mxu0 0.0
      %951 = vmatpush1.msra.mxu0 0.0
      %952 = vmatprep.subr.mxu0 0.0
      %953 = vmatpush1.msra.mxu0 0.0
      %954 = vmatprep.subr.mxu0 0.0
      %955 = vmatpush1.msra.mxu0 0.0
      %956 = vmatprep.subr.mxu0 0.0
      %957 = vmatpush1.msra.mxu0 0.0
      %958 = vmatprep.subr.mxu0 0.0
      %959 = vmatpush1.msra.mxu0 0.0
      %960 = vmatprep.subr.mxu0 0.0
      %961 = vmatpush1.msra.mxu0 0.0
      %962 = vmatprep.subr.mxu0 0.0
      %963 = vmatpush1.msra.mxu0 0.0
      %964 = vmatprep.subr.mxu0 0.0
      %965 = vmatpush1.msra.mxu0 0.0
      %966 = vmatprep.subr.mxu0 0.0
      %967 = vmatpush1.msra.mxu0 0.0
      %968 = vmatprep.subr.mxu0 0.0
      %969 = vmatpush1.msra.mxu0 0.0
      %970 = vmatprep.subr.mxu0 0.0
      %971 = vmatpush1.msra.mxu0 0.0
      %972 = vmatprep.subr.mxu0 0.0
      %973 = vmatpush1.msra.mxu0 0.0
      %974 = vmatprep.subr.mxu0 0.0
      %975 = vmatpush1.msra.mxu0 0.0
      %976 = vmatprep.subr.mxu0 0.0
      %977 = vmatpush1.msra.mxu0 0.0
      %978 = vmatprep.subr.mxu0 0.0
      %979 = vmatpush1.msra.mxu0 0.0
      %980 = vmatprep.subr.mxu0 0.0
      %981 = vmatpush1.msra.mxu0 0.0
      %982 = vmatprep.subr.mxu0 0.0
      %983 = vmatpush1.msra.mxu0 0.0
      %984 = vmatprep.subr.mxu0 0.0
      %985 = vmatpush1.msra.mxu0 0.0
      %986 = vmatprep.subr.mxu0 0.0
      %987 = vmatpush1.msra.mxu0 0.0
      %988 = vmatprep.subr.mxu0 0.0
      %989 = vmatpush1.msra.mxu0 0.0
      %990 = vmatprep.subr.mxu0 0.0
      %991 = vmatpush1.msra.mxu0 0.0
      %992 = vmatprep.mubr.f32.mxu0 0.0
      %993 = vmatmul.mubr.f32.gmra.mrb[0].mxu0 %v917
      %v994 = vpop.f32.mrb[0].mxu0
      %v995 = vadd.f32 0.0, %v994
      %v996 = vpop.f32.mrb[0].mxu0
      %v997 = vadd.f32 0.0, %v996
      %998 = vmatprep.mubr.f32.mxu0 0.0
      %999 = vmatmul.mubr.f32.gmra.mrb[0].mxu0 %v920
      %v1000 = vpop.f32.mrb[0].mxu0
      %v1001 = vadd.f32 0.0, %v1000
      %v1002 = vpop.f32.mrb[0].mxu0
      %v1003 = vadd.f32 0.0, %v1002
      %1004 = vmatprep.mubr.f32.mxu0 0.0
      %1005 = vmatmul.mubr.f32.gmra.mrb[0].mxu0 %v923
      %v1006 = vpop.f32.mrb[0].mxu0
      %v1007 = vadd.f32 0.0, %v1006
      %v1008 = vpop.f32.mrb[0].mxu0
      %v1009 = vadd.f32 0.0, %v1008
      %1010 = vmatprep.mubr.f32.mxu0 0.0
      %1011 = vmatmul.mubr.f32.gmra.mrb[0].mxu0 %v926
      %v1012 = vpop.f32.mrb[0].mxu0
      %v1013 = vadd.f32 0.0, %v1012
      %v1014 = vpop.f32.mrb[0].mxu0
      %v1015 = vadd.f32 0.0, %v1014
      %1016 = vdwg.mxu0
      %v1018 = vsel %vm820, %v908, 0
      %v1021 = vsel %vm820, %v909, 0
      %v1024 = vsel %vm820, %v910, 0
      %v1027 = vsel %vm820, %v911, 0
      %1029 = vmatprep.subr.mxu0 %v803
      %1030 = vmatpush1.msra.mxu0 %v802
      %1031 = vmatprep.subr.mxu0 %v805
      %1032 = vmatpush1.msra.mxu0 %v804
      %1033 = vmatprep.subr.mxu0 0.0
      %1034 = vmatpush1.msra.mxu0 0.0
      %1035 = vmatprep.subr.mxu0 0.0
      %1036 = vmatpush1.msra.mxu0 0.0
      %1037 = vmatprep.subr.mxu0 0.0
      %1038 = vmatpush1.msra.mxu0 0.0
      %1039 = vmatprep.subr.mxu0 0.0
      %1040 = vmatpush1.msra.mxu0 0.0
      %1041 = vmatprep.subr.mxu0 0.0
      %1042 = vmatpush1.msra.mxu0 0.0
      %1043 = vmatprep.subr.mxu0 0.0
      %1044 = vmatpush1.msra.mxu0 0.0
      %1045 = vmatprep.subr.mxu0 0.0
      %1046 = vmatpush1.msra.mxu0 0.0
      %1047 = vmatprep.subr.mxu0 0.0
      %1048 = vmatpush1.msra.mxu0 0.0
      %1049 = vmatprep.subr.mxu0 0.0
      %1050 = vmatpush1.msra.mxu0 0.0
      %1051 = vmatprep.subr.mxu0 0.0
      %1052 = vmatpush1.msra.mxu0 0.0
      %1053 = vmatprep.subr.mxu0 0.0
      %1054 = vmatpush1.msra.mxu0 0.0
      %1055 = vmatprep.subr.mxu0 0.0
      %1056 = vmatpush1.msra.mxu0 0.0
      %1057 = vmatprep.subr.mxu0 0.0
      %1058 = vmatpush1.msra.mxu0 0.0
      %1059 = vmatprep.subr.mxu0 0.0
      %1060 = vmatpush1.msra.mxu0 0.0
      %1061 = vmatprep.subr.mxu0 0.0
      %1062 = vmatpush1.msra.mxu0 0.0
      %1063 = vmatprep.subr.mxu0 0.0
      %1064 = vmatpush1.msra.mxu0 0.0
      %1065 = vmatprep.subr.mxu0 0.0
      %1066 = vmatpush1.msra.mxu0 0.0
      %1067 = vmatprep.subr.mxu0 0.0
      %1068 = vmatpush1.msra.mxu0 0.0
      %1069 = vmatprep.subr.mxu0 0.0
      %1070 = vmatpush1.msra.mxu0 0.0
      %1071 = vmatprep.subr.mxu0 0.0
      %1072 = vmatpush1.msra.mxu0 0.0
      %1073 = vmatprep.subr.mxu0 0.0
      %1074 = vmatpush1.msra.mxu0 0.0
      %1075 = vmatprep.subr.mxu0 0.0
      %1076 = vmatpush1.msra.mxu0 0.0
      %1077 = vmatprep.subr.mxu0 0.0
      %1078 = vmatpush1.msra.mxu0 0.0
      %1079 = vmatprep.subr.mxu0 0.0
      %1080 = vmatpush1.msra.mxu0 0.0
      %1081 = vmatprep.subr.mxu0 0.0
      %1082 = vmatpush1.msra.mxu0 0.0
      %1083 = vmatprep.subr.mxu0 0.0
      %1084 = vmatpush1.msra.mxu0 0.0
      %1085 = vmatprep.subr.mxu0 0.0
      %1086 = vmatpush1.msra.mxu0 0.0
      %1087 = vmatprep.subr.mxu0 0.0
      %1088 = vmatpush1.msra.mxu0 0.0
      %1089 = vmatprep.subr.mxu0 0.0
      %1090 = vmatpush1.msra.mxu0 0.0
      %1091 = vmatprep.subr.mxu0 0.0
      %1092 = vmatpush1.msra.mxu0 0.0
      %1093 = vmatprep.mubr.f32.mxu0 0.0
      %1094 = vmatmul.mubr.f32.gmra.mrb[0].mxu0 %v1018
      %v1095 = vpop.f32.mrb[0].mxu0
      %v1096 = vadd.f32 %v995, %v1095
      %v1097 = vpop.f32.mrb[0].mxu0
      %v1098 = vadd.f32 %v997, %v1097
      %1099 = vmatprep.mubr.f32.mxu0 0.0
      %1100 = vmatmul.mubr.f32.gmra.mrb[0].mxu0 %v1021
      %v1101 = vpop.f32.mrb[0].mxu0
      %v1102 = vadd.f32 %v1001, %v1101
      %v1103 = vpop.f32.mrb[0].mxu0
      %v1104 = vadd.f32 %v1003, %v1103
      %1105 = vmatprep.mubr.f32.mxu0 0.0
      %1106 = vmatmul.mubr.f32.gmra.mrb[0].mxu0 %v1024
      %v1107 = vpop.f32.mrb[0].mxu0
      %v1108 = vadd.f32 %v1007, %v1107
      %v1109 = vpop.f32.mrb[0].mxu0
      %v1110 = vadd.f32 %v1009, %v1109
      %1111 = vmatprep.mubr.f32.mxu0 0.0
      %1112 = vmatmul.mubr.f32.gmra.mrb[0].mxu0 %v1027
      %v1113 = vpop.f32.mrb[0].mxu0
      %v1114 = vadd.f32 %v1013, %v1113
      %v1115 = vpop.f32.mrb[0].mxu0
      %v1116 = vadd.f32 %v1015, %v1115
      %1117 = vdwg.mxu0
      %v1118 = vld [vmem:[%s9] sm:$0xff]
      %v1119 = vld [vmem:[%s9 + $0x8] sm:$0xff]
      %v1120 = vld [vmem:[%s9 + $0x10] sm:$0xff]
      %v1121 = vld [vmem:[%s9 + $0x18] sm:$0xff]
      %1123 = vset.pattern.permute.xlu0 0
      %1124 = vperm.xlu0 %1123, %v1118
      %v1125 = vpop.permute.xlu0 %1124
      %1128 = vset.pattern.permute.xlu0 0
      %1129 = vperm.xlu0 %1128, %v1119
      %v1130 = vpop.permute.xlu0 %1129
      %1133 = vset.pattern.permute.xlu0 0
      %1134 = vperm.xlu0 %1133, %v1120
      %v1135 = vpop.permute.xlu0 %1134
      %1138 = vset.pattern.permute.xlu0 0
      %1139 = vperm.xlu0 %1138, %v1121
      %v1140 = vpop.permute.xlu0 %1139
      %v1142 = vadd.f32 %v1096, %v1125
      %v1143 = vadd.f32 %v1098, %v1125
      %v1144 = vadd.f32 %v1102, %v1130
      %v1145 = vadd.f32 %v1104, %v1130
      %v1146 = vadd.f32 %v1108, %v1135
      %v1147 = vadd.f32 %v1110, %v1135
      %v1148 = vadd.f32 %v1114, %v1140
      %v1149 = vadd.f32 %v1116, %v1140
      %v1150 = vmul.f32 %v1142, %v795
      %v1151 = vmul.f32 %v1143, %v799
      %v1152 = vmul.f32 %v1144, %v795
      %v1153 = vmul.f32 %v1145, %v799
      %v1154 = vmul.f32 %v1146, %v795
      %v1155 = vmul.f32 %v1147, %v799
      %v1156 = vmul.f32 %v1148, %v795
      %v1157 = vmul.f32 %v1149, %v799
      %v1158 = vld [vmem:[%s10] sm:$0xff]
      %v1159 = vld [vmem:[%s10 + $0x8] sm:$0xff]
      %v1160 = vld [vmem:[%s10 + $0x10] sm:$0xff]
      %v1161 = vld [vmem:[%s10 + $0x18] sm:$0xff]
      %v1162 = vld [vmem:[%s11] sm:$0xff]
      %v1163 = vld [vmem:[%s11 + $0x8] sm:$0xff]
      %v1164 = vld [vmem:[%s11 + $0x10] sm:$0xff]
      %v1165 = vld [vmem:[%s11 + $0x18] sm:$0xff]
      %1167 = vset.pattern.permute.xlu0 0
      %1168 = vperm.xlu0 %1167, %v1162
      %v1169 = vpop.permute.xlu0 %1168
      %1172 = vset.pattern.permute.xlu0 0
      %1173 = vperm.xlu0 %1172, %v1163
      %v1174 = vpop.permute.xlu0 %1173
      %1177 = vset.pattern.permute.xlu0 0
      %1178 = vperm.xlu0 %1177, %v1164
      %v1179 = vpop.permute.xlu0 %1178
      %1182 = vset.pattern.permute.xlu0 0
      %1183 = vperm.xlu0 %1182, %v1165
      %v1184 = vpop.permute.xlu0 %1183
      %vm1186 = vcmask 261120
      %v1188 = vsel %vm1186, %v1158, 0
      %v1191 = vsel %vm1186, %v1159, 0
      %v1194 = vsel %vm1186, %v1160, 0
      %v1197 = vsel %vm1186, %v1161, 0
      %1199 = vmatprep.subr.mxu0 %v1151
      %1200 = vmatpush1.msra.mxu0 %v1150
      %1201 = vmatprep.subr.mxu0 %v1153
      %1202 = vmatpush1.msra.mxu0 %v1152
      %1203 = vmatprep.subr.mxu0 %v1155
      %1204 = vmatpush1.msra.mxu0 %v1154
      %1205 = vmatprep.subr.mxu0 %v1157
      %1206 = vmatpush1.msra.mxu0 %v1156
      %1207 = vmatprep.subr.mxu0 0.0
      %1208 = vmatpush1.msra.mxu0 0.0
      %1209 = vmatprep.subr.mxu0 0.0
      %1210 = vmatpush1.msra.mxu0 0.0
      %1211 = vmatprep.subr.mxu0 0.0
      %1212 = vmatpush1.msra.mxu0 0.0
      %1213 = vmatprep.subr.mxu0 0.0
      %1214 = vmatpush1.msra.mxu0 0.0
      %1215 = vmatprep.subr.mxu0 0.0
      %1216 = vmatpush1.msra.mxu0 0.0
      %1217 = vmatprep.subr.mxu0 0.0
      %1218 = vmatpush1.msra.mxu0 0.0
      %1219 = vmatprep.subr.mxu0 0.0
      %1220 = vmatpush1.msra.mxu0 0.0
      %1221 = vmatprep.subr.mxu0 0.0
      %1222 = vmatpush1.msra.mxu0 0.0
      %1223 = vmatprep.subr.mxu0 0.0
      %1224 = vmatpush1.msra.mxu0 0.0
      %1225 = vmatprep.subr.mxu0 0.0
      %1226 = vmatpush1.msra.mxu0 0.0
      %1227 = vmatprep.subr.mxu0 0.0
      %1228 = vmatpush1.msra.mxu0 0.0
      %1229 = vmatprep.subr.mxu0 0.0
      %1230 = vmatpush1.msra.mxu0 0.0
      %1231 = vmatprep.subr.mxu0 0.0
      %1232 = vmatpush1.msra.mxu0 0.0
      %1233 = vmatprep.subr.mxu0 0.0
      %1234 = vmatpush1.msra.mxu0 0.0
      %1235 = vmatprep.subr.mxu0 0.0
      %1236 = vmatpush1.msra.mxu0 0.0
      %1237 = vmatprep.subr.mxu0 0.0
      %1238 = vmatpush1.msra.mxu0 0.0
      %1239 = vmatprep.subr.mxu0 0.0
      %1240 = vmatpush1.msra.mxu0 0.0
      %1241 = vmatprep.subr.mxu0 0.0
      %1242 = vmatpush1.msra.mxu0 0.0
      %1243 = vmatprep.subr.mxu0 0.0
      %1244 = vmatpush1.msra.mxu0 0.0
      %1245 = vmatprep.subr.mxu0 0.0
      %1246 = vmatpush1.msra.mxu0 0.0
      %1247 = vmatprep.subr.mxu0 0.0
      %1248 = vmatpush1.msra.mxu0 0.0
      %1249 = vmatprep.subr.mxu0 0.0
      %1250 = vmatpush1.msra.mxu0 0.0
      %1251 = vmatprep.subr.mxu0 0.0
      %1252 = vmatpush1.msra.mxu0 0.0
      %1253 = vmatprep.subr.mxu0 0.0
      %1254 = vmatpush1.msra.mxu0 0.0
      %1255 = vmatprep.subr.mxu0 0.0
      %1256 = vmatpush1.msra.mxu0 0.0
      %1257 = vmatprep.subr.mxu0 0.0
      %1258 = vmatpush1.msra.mxu0 0.0
      %1259 = vmatprep.subr.mxu0 0.0
      %1260 = vmatpush1.msra.mxu0 0.0
      %1261 = vmatprep.subr.mxu0 0.0
      %1262 = vmatpush1.msra.mxu0 0.0
      %1263 = vmatprep.mubr.f32.mxu0 0.0
      %1264 = vmatmul.mubr.f32.gmra.mrb[0].mxu0 %v1188
      %v1265 = vpop.f32.mrb[0].mxu0
      %v1266 = vadd.f32 %v1169, %v1265
      %v1267 = vpop.f32.mrb[0].mxu0
      %v1268 = vadd.f32 %v1169, %v1267
      %1269 = vmatprep.mubr.f32.mxu0 0.0
      %1270 = vmatmul.mubr.f32.gmra.mrb[0].mxu0 %v1191
      %v1271 = vpop.f32.mrb[0].mxu0
      %v1272 = vadd.f32 %v1174, %v1271
      %v1273 = vpop.f32.mrb[0].mxu0
      %v1274 = vadd.f32 %v1174, %v1273
      %1275 = vmatprep.mubr.f32.mxu0 0.0
      %1276 = vmatmul.mubr.f32.gmra.mrb[0].mxu0 %v1194
      %v1277 = vpop.f32.mrb[0].mxu0
      %v1278 = vadd.f32 %v1179, %v1277
      %v1279 = vpop.f32.mrb[0].mxu0
      %v1280 = vadd.f32 %v1179, %v1279
      %1281 = vmatprep.mubr.f32.mxu0 0.0
      %1282 = vmatmul.mubr.f32.gmra.mrb[0].mxu0 %v1197
      %v1283 = vpop.f32.mrb[0].mxu0
      %v1284 = vadd.f32 %v1184, %v1283
      %v1285 = vpop.f32.mrb[0].mxu0
      %v1286 = vadd.f32 %v1184, %v1285
      %1287 = vdwg.mxu0
      %v1288 = vld [vmem:[%s12] sm:$0xff]
      %v1289 = vld [vmem:[%s12 + $0x8] sm:$0xff]
      %v1290 = vld [vmem:[%s12 + $0x10] sm:$0xff]
      %v1291 = vld [vmem:[%s12 + $0x18] sm:$0xff]
      %v1292 = vld [vmem:[%s13] sm:$0xff]
      %v1293 = vld [vmem:[%s13 + $0x8] sm:$0xff]
      %v1294 = vld [vmem:[%s13 + $0x10] sm:$0xff]
      %v1295 = vld [vmem:[%s13 + $0x18] sm:$0xff]
      %1297 = vset.pattern.permute.xlu0 0
      %1298 = vperm.xlu0 %1297, %v1292
      %v1299 = vpop.permute.xlu0 %1298
      %1302 = vset.pattern.permute.xlu0 0
      %1303 = vperm.xlu0 %1302, %v1293
      %v1304 = vpop.permute.xlu0 %1303
      %1307 = vset.pattern.permute.xlu0 0
      %1308 = vperm.xlu0 %1307, %v1294
      %v1309 = vpop.permute.xlu0 %1308
      %1312 = vset.pattern.permute.xlu0 0
      %1313 = vperm.xlu0 %1312, %v1295
      %v1314 = vpop.permute.xlu0 %1313
      %v1317 = vsel %vm1186, %v1288, 0
      %v1320 = vsel %vm1186, %v1289, 0
      %v1323 = vsel %vm1186, %v1290, 0
      %v1326 = vsel %vm1186, %v1291, 0
      %1328 = vmatprep.subr.mxu0 %v1151
      %1329 = vmatpush1.msra.mxu0 %v1150
      %1330 = vmatprep.subr.mxu0 %v1153
      %1331 = vmatpush1.msra.mxu0 %v1152
      %1332 = vmatprep.subr.mxu0 %v1155
      %1333 = vmatpush1.msra.mxu0 %v1154
      %1334 = vmatprep.subr.mxu0 %v1157
      %1335 = vmatpush1.msra.mxu0 %v1156
      %1336 = vmatprep.subr.mxu0 0.0
      %1337 = vmatpush1.msra.mxu0 0.0
      %1338 = vmatprep.subr.mxu0 0.0
      %1339 = vmatpush1.msra.mxu0 0.0
      %1340 = vmatprep.subr.mxu0 0.0
      %1341 = vmatpush1.msra.mxu0 0.0
      %1342 = vmatprep.subr.mxu0 0.0
      %1343 = vmatpush1.msra.mxu0 0.0
      %1344 = vmatprep.subr.mxu0 0.0
      %1345 = vmatpush1.msra.mxu0 0.0
      %1346 = vmatprep.subr.mxu0 0.0
      %1347 = vmatpush1.msra.mxu0 0.0
      %1348 = vmatprep.subr.mxu0 0.0
      %1349 = vmatpush1.msra.mxu0 0.0
      %1350 = vmatprep.subr.mxu0 0.0
      %1351 = vmatpush1.msra.mxu0 0.0
      %1352 = vmatprep.subr.mxu0 0.0
      %1353 = vmatpush1.msra.mxu0 0.0
      %1354 = vmatprep.subr.mxu0 0.0
      %1355 = vmatpush1.msra.mxu0 0.0
      %1356 = vmatprep.subr.mxu0 0.0
      %1357 = vmatpush1.msra.mxu0 0.0
      %1358 = vmatprep.subr.mxu0 0.0
      %1359 = vmatpush1.msra.mxu0 0.0
      %1360 = vmatprep.subr.mxu0 0.0
      %1361 = vmatpush1.msra.mxu0 0.0
      %1362 = vmatprep.subr.mxu0 0.0
      %1363 = vmatpush1.msra.mxu0 0.0
      %1364 = vmatprep.subr.mxu0 0.0
      %1365 = vmatpush1.msra.mxu0 0.0
      %1366 = vmatprep.subr.mxu0 0.0
      %1367 = vmatpush1.msra.mxu0 0.0
      %1368 = vmatprep.subr.mxu0 0.0
      %1369 = vmatpush1.msra.mxu0 0.0
      %1370 = vmatprep.subr.mxu0 0.0
      %1371 = vmatpush1.msra.mxu0 0.0
      %1372 = vmatprep.subr.mxu0 0.0
      %1373 = vmatpush1.msra.mxu0 0.0
      %1374 = vmatprep.subr.mxu0 0.0
      %1375 = vmatpush1.msra.mxu0 0.0
      %1376 = vmatprep.subr.mxu0 0.0
      %1377 = vmatpush1.msra.mxu0 0.0
      %1378 = vmatprep.subr.mxu0 0.0
      %1379 = vmatpush1.msra.mxu0 0.0
      %1380 = vmatprep.subr.mxu0 0.0
      %1381 = vmatpush1.msra.mxu0 0.0
      %1382 = vmatprep.subr.mxu0 0.0
      %1383 = vmatpush1.msra.mxu0 0.0
      %1384 = vmatprep.subr.mxu0 0.0
      %1385 = vmatpush1.msra.mxu0 0.0
      %1386 = vmatprep.subr.mxu0 0.0
      %1387 = vmatpush1.msra.mxu0 0.0
      %1388 = vmatprep.subr.mxu0 0.0
      %1389 = vmatpush1.msra.mxu0 0.0
      %1390 = vmatprep.subr.mxu0 0.0
      %1391 = vmatpush1.msra.mxu0 0.0
      %1392 = vmatprep.mubr.f32.mxu0 0.0
      %1393 = vmatmul.mubr.f32.gmra.mrb[0].mxu0 %v1317
      %v1394 = vpop.f32.mrb[0].mxu0
      %v1395 = vadd.f32 %v1299, %v1394
      %v1396 = vpop.f32.mrb[0].mxu0
      %v1397 = vadd.f32 %v1299, %v1396
      %1398 = vmatprep.mubr.f32.mxu0 0.0
      %1399 = vmatmul.mubr.f32.gmra.mrb[0].mxu0 %v1320
      %v1400 = vpop.f32.mrb[0].mxu0
      %v1401 = vadd.f32 %v1304, %v1400
      %v1402 = vpop.f32.mrb[0].mxu0
      %v1403 = vadd.f32 %v1304, %v1402
      %1404 = vmatprep.mubr.f32.mxu0 0.0
      %1405 = vmatmul.mubr.f32.gmra.mrb[0].mxu0 %v1323
      %v1406 = vpop.f32.mrb[0].mxu0
      %v1407 = vadd.f32 %v1309, %v1406
      %v1408 = vpop.f32.mrb[0].mxu0
      %v1409 = vadd.f32 %v1309, %v1408
      %1410 = vmatprep.mubr.f32.mxu0 0.0
      %1411 = vmatmul.mubr.f32.gmra.mrb[0].mxu0 %v1326
      %v1412 = vpop.f32.mrb[0].mxu0
      %v1413 = vadd.f32 %v1314, %v1412
      %v1414 = vpop.f32.mrb[0].mxu0
      %v1415 = vadd.f32 %v1314, %v1414
      %1416 = vdwg.mxu0
      %v1417 = vld [vmem:[%s14] sm:$0xff]
      %v1418 = vld [vmem:[%s14 + $0x8] sm:$0xff]
      %v1419 = vld [vmem:[%s14 + $0x10] sm:$0xff]
      %v1420 = vld [vmem:[%s14 + $0x18] sm:$0xff]
      %v1421 = vld [vmem:[%s15] sm:$0xff]
      %v1422 = vld [vmem:[%s15 + $0x8] sm:$0xff]
      %v1423 = vld [vmem:[%s15 + $0x10] sm:$0xff]
      %v1424 = vld [vmem:[%s15 + $0x18] sm:$0xff]
      %v1426 = vsel %vm1186, %v1421, 0
      %v1429 = vsel %vm1186, %v1422, 0
      %v1432 = vsel %vm1186, %v1423, 0
      %v1435 = vsel %vm1186, %v1424, 0
      %1437 = vmatprep.subr.mxu0 %v1268
      %1438 = vmatpush1.msra.mxu0 %v1266
      %1439 = vmatprep.subr.mxu0 %v1274
      %1440 = vmatpush1.msra.mxu0 %v1272
      %1441 = vmatprep.subr.mxu0 %v1280
      %1442 = vmatpush1.msra.mxu0 %v1278
      %1443 = vmatprep.subr.mxu0 %v1286
      %1444 = vmatpush1.msra.mxu0 %v1284
      %1445 = vmatprep.subr.mxu0 0.0
      %1446 = vmatpush1.msra.mxu0 0.0
      %1447 = vmatprep.subr.mxu0 0.0
      %1448 = vmatpush1.msra.mxu0 0.0
      %1449 = vmatprep.subr.mxu0 0.0
      %1450 = vmatpush1.msra.mxu0 0.0
      %1451 = vmatprep.subr.mxu0 0.0
      %1452 = vmatpush1.msra.mxu0 0.0
      %1453 = vmatprep.subr.mxu0 0.0
      %1454 = vmatpush1.msra.mxu0 0.0
      %1455 = vmatprep.subr.mxu0 0.0
      %1456 = vmatpush1.msra.mxu0 0.0
      %1457 = vmatprep.subr.mxu0 0.0
      %1458 = vmatpush1.msra.mxu0 0.0
      %1459 = vmatprep.subr.mxu0 0.0
      %1460 = vmatpush1.msra.mxu0 0.0
      %1461 = vmatprep.subr.mxu0 0.0
      %1462 = vmatpush1.msra.mxu0 0.0
      %1463 = vmatprep.subr.mxu0 0.0
      %1464 = vmatpush1.msra.mxu0 0.0
      %1465 = vmatprep.subr.mxu0 0.0
      %1466 = vmatpush1.msra.mxu0 0.0
      %1467 = vmatprep.subr.mxu0 0.0
      %1468 = vmatpush1.msra.mxu0 0.0
      %1469 = vmatprep.subr.mxu0 0.0
      %1470 = vmatpush1.msra.mxu0 0.0
      %1471 = vmatprep.subr.mxu0 0.0
      %1472 = vmatpush1.msra.mxu0 0.0
      %1473 = vmatprep.subr.mxu0 0.0
      %1474 = vmatpush1.msra.mxu0 0.0
      %1475 = vmatprep.subr.mxu0 0.0
      %1476 = vmatpush1.msra.mxu0 0.0
      %1477 = vmatprep.subr.mxu0 0.0
      %1478 = vmatpush1.msra.mxu0 0.0
      %1479 = vmatprep.subr.mxu0 0.0
      %1480 = vmatpush1.msra.mxu0 0.0
      %1481 = vmatprep.subr.mxu0 0.0
      %1482 = vmatpush1.msra.mxu0 0.0
      %1483 = vmatprep.subr.mxu0 0.0
      %1484 = vmatpush1.msra.mxu0 0.0
      %1485 = vmatprep.subr.mxu0 0.0
      %1486 = vmatpush1.msra.mxu0 0.0
      %1487 = vmatprep.subr.mxu0 0.0
      %1488 = vmatpush1.msra.mxu0 0.0
      %1489 = vmatprep.subr.mxu0 0.0
      %1490 = vmatpush1.msra.mxu0 0.0
      %1491 = vmatprep.subr.mxu0 0.0
      %1492 = vmatpush1.msra.mxu0 0.0
      %1493 = vmatprep.subr.mxu0 0.0
      %1494 = vmatpush1.msra.mxu0 0.0
      %1495 = vmatprep.subr.mxu0 0.0
      %1496 = vmatpush1.msra.mxu0 0.0
      %1497 = vmatprep.subr.mxu0 0.0
      %1498 = vmatpush1.msra.mxu0 0.0
      %1499 = vmatprep.subr.mxu0 0.0
      %1500 = vmatpush1.msra.mxu0 0.0
      %1501 = vmatprep.mubr.f32.mxu0 0.0
      %1502 = vmatmul.mubr.f32.gmra.mrb[0].mxu0 %v1426
      %v1503 = vpop.f32.mrb[0].mxu0
      %v1504 = vadd.f32 0.0, %v1503
      %v1505 = vpop.f32.mrb[0].mxu0
      %v1506 = vadd.f32 0.0, %v1505
      %1507 = vmatprep.mubr.f32.mxu0 0.0
      %1508 = vmatmul.mubr.f32.gmra.mrb[0].mxu0 %v1429
      %v1509 = vpop.f32.mrb[0].mxu0
      %v1510 = vadd.f32 0.0, %v1509
      %v1511 = vpop.f32.mrb[0].mxu0
      %v1512 = vadd.f32 0.0, %v1511
      %1513 = vmatprep.mubr.f32.mxu0 0.0
      %1514 = vmatmul.mubr.f32.gmra.mrb[0].mxu0 %v1432
      %v1515 = vpop.f32.mrb[0].mxu0
      %v1516 = vadd.f32 0.0, %v1515
      %v1517 = vpop.f32.mrb[0].mxu0
      %v1518 = vadd.f32 0.0, %v1517
      %1519 = vmatprep.mubr.f32.mxu0 0.0
      %1520 = vmatmul.mubr.f32.gmra.mrb[0].mxu0 %v1435
      %v1521 = vpop.f32.mrb[0].mxu0
      %v1522 = vadd.f32 0.0, %v1521
      %v1523 = vpop.f32.mrb[0].mxu0
      %v1524 = vadd.f32 0.0, %v1523
      %1525 = vdwg.mxu0
      %v1527 = vsel %vm820, %v1417, 0
      %v1530 = vsel %vm820, %v1418, 0
      %v1533 = vsel %vm820, %v1419, 0
      %v1536 = vsel %vm820, %v1420, 0
      %1538 = vmatprep.subr.mxu0 %v803
      %1539 = vmatpush1.msra.mxu0 %v802
      %1540 = vmatprep.subr.mxu0 %v805
      %1541 = vmatpush1.msra.mxu0 %v804
      %1542 = vmatprep.subr.mxu0 0.0
      %1543 = vmatpush1.msra.mxu0 0.0
      %1544 = vmatprep.subr.mxu0 0.0
      %1545 = vmatpush1.msra.mxu0 0.0
      %1546 = vmatprep.subr.mxu0 0.0
      %1547 = vmatpush1.msra.mxu0 0.0
      %1548 = vmatprep.subr.mxu0 0.0
      %1549 = vmatpush1.msra.mxu0 0.0
      %1550 = vmatprep.subr.mxu0 0.0
      %1551 = vmatpush1.msra.mxu0 0.0
      %1552 = vmatprep.subr.mxu0 0.0
      %1553 = vmatpush1.msra.mxu0 0.0
      %1554 = vmatprep.subr.mxu0 0.0
      %1555 = vmatpush1.msra.mxu0 0.0
      %1556 = vmatprep.subr.mxu0 0.0
      %1557 = vmatpush1.msra.mxu0 0.0
      %1558 = vmatprep.subr.mxu0 0.0
      %1559 = vmatpush1.msra.mxu0 0.0
      %1560 = vmatprep.subr.mxu0 0.0
      %1561 = vmatpush1.msra.mxu0 0.0
      %1562 = vmatprep.subr.mxu0 0.0
      %1563 = vmatpush1.msra.mxu0 0.0
      %1564 = vmatprep.subr.mxu0 0.0
      %1565 = vmatpush1.msra.mxu0 0.0
      %1566 = vmatprep.subr.mxu0 0.0
      %1567 = vmatpush1.msra.mxu0 0.0
      %1568 = vmatprep.subr.mxu0 0.0
      %1569 = vmatpush1.msra.mxu0 0.0
      %1570 = vmatprep.subr.mxu0 0.0
      %1571 = vmatpush1.msra.mxu0 0.0
      %1572 = vmatprep.subr.mxu0 0.0
      %1573 = vmatpush1.msra.mxu0 0.0
      %1574 = vmatprep.subr.mxu0 0.0
      %1575 = vmatpush1.msra.mxu0 0.0
      %1576 = vmatprep.subr.mxu0 0.0
      %1577 = vmatpush1.msra.mxu0 0.0
      %1578 = vmatprep.subr.mxu0 0.0
      %1579 = vmatpush1.msra.mxu0 0.0
      %1580 = vmatprep.subr.mxu0 0.0
      %1581 = vmatpush1.msra.mxu0 0.0
      %1582 = vmatprep.subr.mxu0 0.0
      %1583 = vmatpush1.msra.mxu0 0.0
      %1584 = vmatprep.subr.mxu0 0.0
      %1585 = vmatpush1.msra.mxu0 0.0
      %1586 = vmatprep.subr.mxu0 0.0
      %1587 = vmatpush1.msra.mxu0 0.0
      %1588 = vmatprep.subr.mxu0 0.0
      %1589 = vmatpush1.msra.mxu0 0.0
      %1590 = vmatprep.subr.mxu0 0.0
      %1591 = vmatpush1.msra.mxu0 0.0
      %1592 = vmatprep.subr.mxu0 0.0
      %1593 = vmatpush1.msra.mxu0 0.0
      %1594 = vmatprep.subr.mxu0 0.0
      %1595 = vmatpush1.msra.mxu0 0.0
      %1596 = vmatprep.subr.mxu0 0.0
      %1597 = vmatpush1.msra.mxu0 0.0
      %1598 = vmatprep.subr.mxu0 0.0
      %1599 = vmatpush1.msra.mxu0 0.0
      %1600 = vmatprep.subr.mxu0 0.0
      %1601 = vmatpush1.msra.mxu0 0.0
      %1602 = vmatprep.mubr.f32.mxu0 0.0
      %1603 = vmatmul.mubr.f32.gmra.mrb[0].mxu0 %v1527
      %v1604 = vpop.f32.mrb[0].mxu0
      %v1605 = vadd.f32 %v1504, %v1604
      %v1606 = vpop.f32.mrb[0].mxu0
      %v1607 = vadd.f32 %v1506, %v1606
      %1608 = vmatprep.mubr.f32.mxu0 0.0
      %1609 = vmatmul.mubr.f32.gmra.mrb[0].mxu0 %v1530
      %v1610 = vpop.f32.mrb[0].mxu0
      %v1611 = vadd.f32 %v1510, %v1610
      %v1612 = vpop.f32.mrb[0].mxu0
      %v1613 = vadd.f32 %v1512, %v1612
      %1614 = vmatprep.mubr.f32.mxu0 0.0
      %1615 = vmatmul.mubr.f32.gmra.mrb[0].mxu0 %v1533
      %v1616 = vpop.f32.mrb[0].mxu0
      %v1617 = vadd.f32 %v1516, %v1616
      %v1618 = vpop.f32.mrb[0].mxu0
      %v1619 = vadd.f32 %v1518, %v1618
      %1620 = vmatprep.mubr.f32.mxu0 0.0
      %1621 = vmatmul.mubr.f32.gmra.mrb[0].mxu0 %v1536
      %v1622 = vpop.f32.mrb[0].mxu0
      %v1623 = vadd.f32 %v1522, %v1622
      %v1624 = vpop.f32.mrb[0].mxu0
      %v1625 = vadd.f32 %v1524, %v1624
      %1626 = vdwg.mxu0
      %v1627 = vld [vmem:[%s16] sm:$0xff]
      %v1628 = vld [vmem:[%s16 + $0x8] sm:$0xff]
      %v1629 = vld [vmem:[%s16 + $0x10] sm:$0xff]
      %v1630 = vld [vmem:[%s16 + $0x18] sm:$0xff]
      %v1632 = vsel %vm1186, %v1627, 0
      %v1635 = vsel %vm1186, %v1628, 0
      %v1638 = vsel %vm1186, %v1629, 0
      %v1641 = vsel %vm1186, %v1630, 0
      %1643 = vmatprep.subr.mxu0 %v1397
      %1644 = vmatpush1.msra.mxu0 %v1395
      %1645 = vmatprep.subr.mxu0 %v1403
      %1646 = vmatpush1.msra.mxu0 %v1401
      %1647 = vmatprep.subr.mxu0 %v1409
      %1648 = vmatpush1.msra.mxu0 %v1407
      %1649 = vmatprep.subr.mxu0 %v1415
      %1650 = vmatpush1.msra.mxu0 %v1413
      %1651 = vmatprep.subr.mxu0 0.0
      %1652 = vmatpush1.msra.mxu0 0.0
      %1653 = vmatprep.subr.mxu0 0.0
      %1654 = vmatpush1.msra.mxu0 0.0
      %1655 = vmatprep.subr.mxu0 0.0
      %1656 = vmatpush1.msra.mxu0 0.0
      %1657 = vmatprep.subr.mxu0 0.0
      %1658 = vmatpush1.msra.mxu0 0.0
      %1659 = vmatprep.subr.mxu0 0.0
      %1660 = vmatpush1.msra.mxu0 0.0
      %1661 = vmatprep.subr.mxu0 0.0
      %1662 = vmatpush1.msra.mxu0 0.0
      %1663 = vmatprep.subr.mxu0 0.0
      %1664 = vmatpush1.msra.mxu0 0.0
      %1665 = vmatprep.subr.mxu0 0.0
      %1666 = vmatpush1.msra.mxu0 0.0
      %1667 = vmatprep.subr.mxu0 0.0
      %1668 = vmatpush1.msra.mxu0 0.0
      %1669 = vmatprep.subr.mxu0 0.0
      %1670 = vmatpush1.msra.mxu0 0.0
      %1671 = vmatprep.subr.mxu0 0.0
      %1672 = vmatpush1.msra.mxu0 0.0
      %1673 = vmatprep.subr.mxu0 0.0
      %1674 = vmatpush1.msra.mxu0 0.0
      %1675 = vmatprep.subr.mxu0 0.0
      %1676 = vmatpush1.msra.mxu0 0.0
      %1677 = vmatprep.subr.mxu0 0.0
      %1678 = vmatpush1.msra.mxu0 0.0
      %1679 = vmatprep.subr.mxu0 0.0
      %1680 = vmatpush1.msra.mxu0 0.0
      %1681 = vmatprep.subr.mxu0 0.0
      %1682 = vmatpush1.msra.mxu0 0.0
      %1683 = vmatprep.subr.mxu0 0.0
      %1684 = vmatpush1.msra.mxu0 0.0
      %1685 = vmatprep.subr.mxu0 0.0
      %1686 = vmatpush1.msra.mxu0 0.0
      %1687 = vmatprep.subr.mxu0 0.0
      %1688 = vmatpush1.msra.mxu0 0.0
      %1689 = vmatprep.subr.mxu0 0.0
      %1690 = vmatpush1.msra.mxu0 0.0
      %1691 = vmatprep.subr.mxu0 0.0
      %1692 = vmatpush1.msra.mxu0 0.0
      %1693 = vmatprep.subr.mxu0 0.0
      %1694 = vmatpush1.msra.mxu0 0.0
      %1695 = vmatprep.subr.mxu0 0.0
      %1696 = vmatpush1.msra.mxu0 0.0
      %1697 = vmatprep.subr.mxu0 0.0
      %1698 = vmatpush1.msra.mxu0 0.0
      %1699 = vmatprep.subr.mxu0 0.0
      %1700 = vmatpush1.msra.mxu0 0.0
      %1701 = vmatprep.subr.mxu0 0.0
      %1702 = vmatpush1.msra.mxu0 0.0
      %1703 = vmatprep.subr.mxu0 0.0
      %1704 = vmatpush1.msra.mxu0 0.0
      %1705 = vmatprep.subr.mxu0 0.0
      %1706 = vmatpush1.msra.mxu0 0.0
      %1707 = vmatprep.mubr.f32.mxu0 0.0
      %1708 = vmatmul.mubr.f32.gmra.mrb[0].mxu0 %v1632
      %v1709 = vpop.f32.mrb[0].mxu0
      %v1710 = vadd.f32 0.0, %v1709
      %v1711 = vpop.f32.mrb[0].mxu0
      %v1712 = vadd.f32 0.0, %v1711
      %1713 = vmatprep.mubr.f32.mxu0 0.0
      %1714 = vmatmul.mubr.f32.gmra.mrb[0].mxu0 %v1635
      %v1715 = vpop.f32.mrb[0].mxu0
      %v1716 = vadd.f32 0.0, %v1715
      %v1717 = vpop.f32.mrb[0].mxu0
      %v1718 = vadd.f32 0.0, %v1717
      %1719 = vmatprep.mubr.f32.mxu0 0.0
      %1720 = vmatmul.mubr.f32.gmra.mrb[0].mxu0 %v1638
      %v1721 = vpop.f32.mrb[0].mxu0
      %v1722 = vadd.f32 0.0, %v1721
      %v1723 = vpop.f32.mrb[0].mxu0
      %v1724 = vadd.f32 0.0, %v1723
      %1725 = vmatprep.mubr.f32.mxu0 0.0
      %1726 = vmatmul.mubr.f32.gmra.mrb[0].mxu0 %v1641
      %v1727 = vpop.f32.mrb[0].mxu0
      %v1728 = vadd.f32 0.0, %v1727
      %v1729 = vpop.f32.mrb[0].mxu0
      %v1730 = vadd.f32 0.0, %v1729
      %1731 = vdwg.mxu0
      %v1732 = vadd.f32 %v1605, %v1710
      %v1733 = vadd.f32 %v1607, %v1712
      %v1734 = vadd.f32 %v1611, %v1716
      %v1735 = vadd.f32 %v1613, %v1718
      %v1736 = vadd.f32 %v1617, %v1722
      %v1737 = vadd.f32 %v1619, %v1724
      %v1738 = vadd.f32 %v1623, %v1728
      %v1739 = vadd.f32 %v1625, %v1730
      %v1740 = vld [vmem:[%s17] sm:$0xff]
      %v1741 = vld [vmem:[%s17 + $0x8] sm:$0xff]
      %v1742 = vld [vmem:[%s17 + $0x10] sm:$0xff]
      %v1743 = vld [vmem:[%s17 + $0x18] sm:$0xff]
      %1745 = vset.pattern.permute.xlu0 0
      %1746 = vperm.xlu0 %1745, %v1740
      %v1747 = vpop.permute.xlu0 %1746
      %1750 = vset.pattern.permute.xlu0 0
      %1751 = vperm.xlu0 %1750, %v1741
      %v1752 = vpop.permute.xlu0 %1751
      %1755 = vset.pattern.permute.xlu0 0
      %1756 = vperm.xlu0 %1755, %v1742
      %v1757 = vpop.permute.xlu0 %1756
      %1760 = vset.pattern.permute.xlu0 0
      %1761 = vperm.xlu0 %1760, %v1743
      %v1762 = vpop.permute.xlu0 %1761
      %v1764 = vadd.f32 %v1732, %v1747
      %v1765 = vadd.f32 %v1733, %v1747
      %v1766 = vadd.f32 %v1734, %v1752
      %v1767 = vadd.f32 %v1735, %v1752
      %v1768 = vadd.f32 %v1736, %v1757
      %v1769 = vadd.f32 %v1737, %v1757
      %v1770 = vadd.f32 %v1738, %v1762
      %v1771 = vadd.f32 %v1739, %v1762
      %v1772 = vxor.u32 %v1764, 2147483648
      %v1773 = vxor.u32 %v1765, 2147483648
      %v1774 = vxor.u32 %v1766, 2147483648
      %v1775 = vxor.u32 %v1767, 2147483648
      %v1776 = vxor.u32 %v1768, 2147483648
      %v1777 = vxor.u32 %v1769, 2147483648
      %v1778 = vxor.u32 %v1770, 2147483648
      %v1779 = vxor.u32 %v1771, 2147483648
      %v1780 = vmul.f32 %v1772, 1.442695
      %v1781 = vpow.pop %v1780
      %v1782 = vmul.f32 %v1773, 1.442695
      %v1783 = vpow.pop %v1782
      %v1784 = vmul.f32 %v1774, 1.442695
      %v1785 = vpow.pop %v1784
      %v1786 = vmul.f32 %v1775, 1.442695
      %v1787 = vpow.pop %v1786
      %v1788 = vmul.f32 %v1776, 1.442695
      %v1789 = vpow.pop %v1788
      %v1790 = vmul.f32 %v1777, 1.442695
      %v1791 = vpow.pop %v1790
      %v1792 = vmul.f32 %v1778, 1.442695
      %v1793 = vpow.pop %v1792
      %v1794 = vmul.f32 %v1779, 1.442695
      %v1795 = vpow.pop %v1794
      %v1796 = vadd.f32 %v1781, 1.0
      %v1797 = vadd.f32 %v1783, 1.0
      %v1798 = vadd.f32 %v1785, 1.0
      %v1799 = vadd.f32 %v1787, 1.0
      %v1800 = vadd.f32 %v1789, 1.0
      %v1801 = vadd.f32 %v1791, 1.0
      %v1802 = vadd.f32 %v1793, 1.0
      %v1803 = vadd.f32 %v1795, 1.0
      %v1804 = vrcp.pop %v1796
      %v1805 = vmul.f32 1.0, %v1804
      %v1806 = vrcp.pop %v1797
      %v1807 = vmul.f32 1.0, %v1806
      %v1808 = vrcp.pop %v1798
      %v1809 = vmul.f32 1.0, %v1808
      %v1810 = vrcp.pop %v1799
      %v1811 = vmul.f32 1.0, %v1810
      %v1812 = vrcp.pop %v1800
      %v1813 = vmul.f32 1.0, %v1812
      %v1814 = vrcp.pop %v1801
      %v1815 = vmul.f32 1.0, %v1814
      %v1816 = vrcp.pop %v1802
      %v1817 = vmul.f32 1.0, %v1816
      %v1818 = vrcp.pop %v1803
      %v1819 = vmul.f32 1.0, %v1818
      %v1820 = vmul.f32 %v1764, %v1805
      %v1821 = vmul.f32 %v1765, %v1807
      %v1822 = vmul.f32 %v1766, %v1809
      %v1823 = vmul.f32 %v1767, %v1811
      %v1824 = vmul.f32 %v1768, %v1813
      %v1825 = vmul.f32 %v1769, %v1815
      %v1826 = vmul.f32 %v1770, %v1817
      %v1827 = vmul.f32 %v1771, %v1819
      %v1828 = vmul.f32 %v1820, %v795
      %v1829 = vmul.f32 %v1821, %v799
      %v1830 = vmul.f32 %v1822, %v795
      %v1831 = vmul.f32 %v1823, %v799
      %v1832 = vmul.f32 %v1824, %v795
      %v1833 = vmul.f32 %v1825, %v799
      %v1834 = vmul.f32 %v1826, %v795
      %v1835 = vmul.f32 %v1827, %v799
      %v1836 = vld [vmem:[%s18] sm:$0xff]
      %v1837 = vld [vmem:[%s18 + $0x8] sm:$0xff]
      %v1838 = vld [vmem:[%s19] sm:$0xff]
      %v1839 = vld [vmem:[%s19 + $0x8] sm:$0xff]
      %1841 = vset.pattern.permute.xlu0 0
      %1842 = vperm.xlu0 %1841, %v1838
      %v1843 = vpop.permute.xlu0 %1842
      %1846 = vset.pattern.permute.xlu0 0
      %1847 = vperm.xlu0 %1846, %v1839
      %v1848 = vpop.permute.xlu0 %1847
      %v1851 = vsel %vm1186, %v1836, 0
      %v1854 = vsel %vm1186, %v1837, 0
      %1856 = vmatprep.subr.mxu0 %v1829
      %1857 = vmatpush1.msra.mxu0 %v1828
      %1858 = vmatprep.subr.mxu0 %v1831
      %1859 = vmatpush1.msra.mxu0 %v1830
      %1860 = vmatprep.subr.mxu0 %v1833
      %1861 = vmatpush1.msra.mxu0 %v1832
      %1862 = vmatprep.subr.mxu0 %v1835
      %1863 = vmatpush1.msra.mxu0 %v1834
      %1864 = vmatprep.subr.mxu0 0.0
      %1865 = vmatpush1.msra.mxu0 0.0
      %1866 = vmatprep.subr.mxu0 0.0
      %1867 = vmatpush1.msra.mxu0 0.0
      %1868 = vmatprep.subr.mxu0 0.0
      %1869 = vmatpush1.msra.mxu0 0.0
      %1870 = vmatprep.subr.mxu0 0.0
      %1871 = vmatpush1.msra.mxu0 0.0
      %1872 = vmatprep.subr.mxu0 0.0
      %1873 = vmatpush1.msra.mxu0 0.0
      %1874 = vmatprep.subr.mxu0 0.0
      %1875 = vmatpush1.msra.mxu0 0.0
      %1876 = vmatprep.subr.mxu0 0.0
      %1877 = vmatpush1.msra.mxu0 0.0
      %1878 = vmatprep.subr.mxu0 0.0
      %1879 = vmatpush1.msra.mxu0 0.0
      %1880 = vmatprep.subr.mxu0 0.0
      %1881 = vmatpush1.msra.mxu0 0.0
      %1882 = vmatprep.subr.mxu0 0.0
      %1883 = vmatpush1.msra.mxu0 0.0
      %1884 = vmatprep.subr.mxu0 0.0
      %1885 = vmatpush1.msra.mxu0 0.0
      %1886 = vmatprep.subr.mxu0 0.0
      %1887 = vmatpush1.msra.mxu0 0.0
      %1888 = vmatprep.subr.mxu0 0.0
      %1889 = vmatpush1.msra.mxu0 0.0
      %1890 = vmatprep.subr.mxu0 0.0
      %1891 = vmatpush1.msra.mxu0 0.0
      %1892 = vmatprep.subr.mxu0 0.0
      %1893 = vmatpush1.msra.mxu0 0.0
      %1894 = vmatprep.subr.mxu0 0.0
      %1895 = vmatpush1.msra.mxu0 0.0
      %1896 = vmatprep.subr.mxu0 0.0
      %1897 = vmatpush1.msra.mxu0 0.0
      %1898 = vmatprep.subr.mxu0 0.0
      %1899 = vmatpush1.msra.mxu0 0.0
      %1900 = vmatprep.subr.mxu0 0.0
      %1901 = vmatpush1.msra.mxu0 0.0
      %1902 = vmatprep.subr.mxu0 0.0
      %1903 = vmatpush1.msra.mxu0 0.0
      %1904 = vmatprep.subr.mxu0 0.0
      %1905 = vmatpush1.msra.mxu0 0.0
      %1906 = vmatprep.subr.mxu0 0.0
      %1907 = vmatpush1.msra.mxu0 0.0
      %1908 = vmatprep.subr.mxu0 0.0
      %1909 = vmatpush1.msra.mxu0 0.0
      %1910 = vmatprep.subr.mxu0 0.0
      %1911 = vmatpush1.msra.mxu0 0.0
      %1912 = vmatprep.subr.mxu0 0.0
      %1913 = vmatpush1.msra.mxu0 0.0
      %1914 = vmatprep.subr.mxu0 0.0
      %1915 = vmatpush1.msra.mxu0 0.0
      %1916 = vmatprep.subr.mxu0 0.0
      %1917 = vmatpush1.msra.mxu0 0.0
      %1918 = vmatprep.subr.mxu0 0.0
      %1919 = vmatpush1.msra.mxu0 0.0
      %1920 = vmatprep.mubr.f32.mxu0 0.0
      %1921 = vmatmul.mubr.f32.gmra.mrb[0].mxu0 %v1851
      %v1922 = vpop.f32.mrb[0].mxu0
      %v1923 = vadd.f32 %v1843, %v1922
      %v1924 = vpop.f32.mrb[0].mxu0
      %v1925 = vadd.f32 %v1843, %v1924
      %1926 = vmatprep.mubr.f32.mxu0 0.0
      %1927 = vmatmul.mubr.f32.gmra.mrb[0].mxu0 %v1854
      %v1928 = vpop.f32.mrb[0].mxu0
      %v1929 = vadd.f32 %v1848, %v1928
      %v1930 = vpop.f32.mrb[0].mxu0
      %v1931 = vadd.f32 %v1848, %v1930
      %1932 = vdwg.mxu0
      %v1933 = vxor.u32 %v1923, 2147483648
      %v1934 = vxor.u32 %v1925, 2147483648
      %v1935 = vxor.u32 %v1929, 2147483648
      %v1936 = vxor.u32 %v1931, 2147483648
      %v1937 = vmul.f32 %v1933, 1.442695
      %v1938 = vpow.pop %v1937
      %v1939 = vmul.f32 %v1934, 1.442695
      %v1940 = vpow.pop %v1939
      %v1941 = vmul.f32 %v1935, 1.442695
      %v1942 = vpow.pop %v1941
      %v1943 = vmul.f32 %v1936, 1.442695
      %v1944 = vpow.pop %v1943
      %v1945 = vadd.f32 %v1938, 1.0
      %v1946 = vadd.f32 %v1940, 1.0
      %v1947 = vadd.f32 %v1942, 1.0
      %v1948 = vadd.f32 %v1944, 1.0
      %v1949 = vrcp.pop %v1945
      %v1950 = vmul.f32 1.0, %v1949
      %v1951 = vrcp.pop %v1946
      %v1952 = vmul.f32 1.0, %v1951
      %v1953 = vrcp.pop %v1947
      %v1954 = vmul.f32 1.0, %v1953
      %v1955 = vrcp.pop %v1948
      %v1956 = vmul.f32 1.0, %v1955
      %v1957 = vmul.f32 %v1923, %v1950
      %v1958 = vmul.f32 %v1925, %v1952
      %v1959 = vmul.f32 %v1929, %v1954
      %v1960 = vmul.f32 %v1931, %v1956
      %v1961 = vld [vmem:[%s20] sm:$0xff]
      %v1962 = vld [vmem:[%s20 + $0x8] sm:$0xff]
      %1964 = vset.pattern.permute.xlu0 0
      %1965 = vperm.xlu0 %1964, %v1961
      %v1966 = vpop.permute.xlu0 %1965
      %1969 = vset.pattern.permute.xlu0 0
      %1970 = vperm.xlu0 %1969, %v1962
      %v1971 = vpop.permute.xlu0 %1970
      %v1973 = vmul.f32 %v1966, %v1957
      %v1974 = vmul.f32 %v1966, %v1958
      %v1975 = vmul.f32 %v1971, %v1959
      %v1976 = vmul.f32 %v1971, %v1960
      %v1977 = vadd.f32 %v1973, %v1975
      %v1978 = vrot.slane %v1977, 4
      %v1979 = vadd.f32 %v1977, %v1978
      %v1980 = vrot.slane %v1979, 2
      %v1981 = vadd.f32 %v1979, %v1980
      %v1982 = vrot.slane %v1981, 1
      %v1983 = vadd.f32 %v1981, %v1982
      %v1984 = vadd.f32 %v1974, %v1976
      %v1985 = vrot.slane %v1984, 4
      %v1986 = vadd.f32 %v1984, %v1985
      %v1987 = vrot.slane %v1986, 2
      %v1988 = vadd.f32 %v1986, %v1987
      %v1989 = vrot.slane %v1988, 1
      %v1990 = vadd.f32 %v1988, %v1989
      %v1991 = vld [vmem:[#allocation2] sm:$0x1]
      %1993 = vset.pattern.permute.xlu0 0
      %1994 = vperm.xlu0 %1993, %v1991
      %v1995 = vpop.permute.xlu0 %1994
      %v1997 = vlaneseq
      %v1998 = vshrl.u32 %v1997, 7
      %v1999 = vsub.s32 0, %v1998
      %v2000 = vrot.slane %v1995, %v1999
      %v2001 = vadd.f32 %v1983, %v2000
      %v2002 = vadd.f32 %v1990, %v2000
      %v2005 = vcombine.low %v2001, %v2002
      %v2007 = vunpack.c.l.s4 1966171168
      %v2008 = vunpack.c.0.s8 %v2007
      %v2009 = vlaneseq
      %v2010 = vshrl.u32 %v2009, 7
      %v2011 = vsub.s32 %v2008, %v2010
      %v2012 = vrot.slane %v2005, %v2011
      %v2014 = vunpack.c.l.s4 1966171168
      %v2015 = vunpack.c.0.s8 %v2014
      %v2016 = vlaneseq
      %v2017 = vshrl.u32 %v2016, 7
      %v2018 = vsub.s32 %v2015, %v2017
      %v2019 = vrot.slane %v2012, %v2018
      %v2021 = vlaneseq
      %vm2022 = vcmp.ge.s32.totalorder %v2021, 0
      %vm2023 = vcmp.lt.s32.totalorder %v2021, 256
      %vm2024 = vmand %vm2022, %vm2023
      %2025 = vst.msk [vmem:[%s720] sm:$0x3] %vm2024, %v2019
      %s2026 = smul.u32 2, %s35
      %p2027 = scmp.lt.s32.totalorder %s2026, 3
      %s2028 = scalar_select %p2027, %s2026, 3
      %s2029 = scalar_lea.vmem %s22, %s2028
      // Predicated region
      $region109: #{af2cg_forward.2} parent=107 // pred_check
        %p2030 = pneg %p530
      $region110: #{af2cg_forward.2} parent=107 // pred_check_branch
        %2032 = sbr.rel (%p2030) target = $region112
      $region111: #{af2cg_forward.2} parent=107 // pred_region
        %s2033 = smul.u32 2, %s35
      $region112: #{af2cg_forward.2} parent=107 // pred_fallthru
        _
    $region108: #{af2cg_forward.2} parent=5 // pred_fallthru
      _
    %p2034 = scmp.le.s32.totalorder 2, %s30
    // Predicated region
    $region113: #{af2cg_forward.2} parent=5 // pred_check
      %p2035 = pneg %p2034
    $region114: #{af2cg_forward.2} parent=5 // pred_check_branch
      %2037 = sbr.rel (%p2035) target = $region116
    $region115: #{af2cg_forward.2} parent=5 // pred_region
      %s2038 = ssub.s32 %s30, 2
      // Predicated region
      $region117: #{af2cg_forward.2} parent=115 // pred_check
        %p2039 = pneg %p536
      $region118: #{af2cg_forward.2} parent=115 // pred_check_branch
        %2041 = sbr.rel (%p2039) target = $region120
      $region119: #{af2cg_forward.2} parent=115 // pred_region
        %s2042 = smul.u32 2, %s36
        %p2043 = scmp.lt.s32.totalorder %s2042, 3
        %s2044 = scalar_select %p2043, %s2042, 3
        %s2045 = scalar_lea.vmem %s22, %s2044
      $region120: #{af2cg_forward.2} parent=115 // pred_fallthru
        _
    $region116: #{af2cg_forward.2} parent=5 // pred_fallthru
      _
  $region6: #{af2cg_forward.2} parent=0 // loop_footer
    %s34 = sadd.s32 1, %s30
  $region7: #{af2cg_forward.2} parent=0 // loop_footer_branch
    %29 = sbr.rel target = $region3
  $region8: #{af2cg_forward.2} parent=0 // loop_exit
    _

// kernel: af2cg_forward.3
$region0: #{af2cg_forward.3}
  #allocation0 [shape = 'u32[]', space=smem, size = 0x4, offset = 0x4, fixed_abs, tag = 'smem constant byte address 0x4 - core index']
  #allocation1 [shape = 'u32[144,128]{1,0:T(1,128)}', space=vmem, size = 0x12000, scoped, tag = 'internal scratch']
  %s0 = inlined_call_operand.vmem [shape: f32[1,128], index: 0, kind: input, shape index: {}]
  %s1 = inlined_call_operand.vmem [shape: f32[8,128], index: 1, kind: input, shape index: {}]
  %s2 = inlined_call_operand.vmem [shape: f32[8,128], index: 2, kind: input, shape index: {}]
  %s3 = inlined_call_operand.vmem [shape: f32[1,128], index: 3, kind: input, shape index: {}]
  %s4 = inlined_call_operand.vmem [shape: f32[8,1], index: 4, kind: input, shape index: {}]
  %s5 = inlined_call_operand.vmem [shape: f32[8,1], index: 5, kind: input, shape index: {}]
  %s6 = inlined_call_operand.vmem [shape: f32[24,8], index: 6, kind: input, shape index: {}]
  %s7 = inlined_call_operand.vmem [shape: f32[24,1], index: 7, kind: input, shape index: {}]
  %s8 = inlined_call_operand.vmem [shape: f32[8,8], index: 8, kind: input, shape index: {}]
  %s9 = inlined_call_operand.vmem [shape: f32[8,1], index: 9, kind: input, shape index: {}]
  %s10 = inlined_call_operand.vmem [shape: f32[32,8], index: 10, kind: input, shape index: {}]
  %s11 = inlined_call_operand.vmem [shape: f32[32,24], index: 11, kind: input, shape index: {}]
  %s12 = inlined_call_operand.vmem [shape: f32[32,8], index: 12, kind: input, shape index: {}]
  %s13 = inlined_call_operand.vmem [shape: f32[32,1], index: 13, kind: input, shape index: {}]
  %s14 = inlined_call_operand.vmem [shape: f32[32,32], index: 14, kind: input, shape index: {}]
  %s15 = inlined_call_operand.vmem [shape: f32[32,1], index: 15, kind: input, shape index: {}]
  %s16 = inlined_call_operand.vmem [shape: f32[32,32], index: 16, kind: input, shape index: {}]
  %s17 = inlined_call_operand.vmem [shape: f32[32,1], index: 17, kind: input, shape index: {}]
  %s18 = inlined_call_operand.vmem [shape: f32[32,24], index: 18, kind: input, shape index: {}]
  %s19 = inlined_call_operand.vmem [shape: f32[32,32], index: 19, kind: input, shape index: {}]
  %s20 = inlined_call_operand.vmem [shape: f32[32,32], index: 20, kind: input, shape index: {}]
  %s21 = inlined_call_operand.vmem [shape: f32[32,1], index: 21, kind: input, shape index: {}]
  %s22 = inlined_call_operand.vmem [shape: f32[16,32], index: 22, kind: input, shape index: {}]
  %s23 = inlined_call_operand.vmem [shape: f32[16,1], index: 23, kind: input, shape index: {}]
  %s24 = inlined_call_operand.vmem [shape: f32[8,16], index: 24, kind: input, shape index: {}]
  %s25 = inlined_call_operand.vmem [shape: f32[8,1], index: 25, kind: input, shape index: {}]
  %s26 = inlined_call_operand.vmem [shape: f32[8,128], index: 26, kind: output, shape index: {}]
  %s27 = sld [smem:[#allocation0]]
  $region114: #{af2cg_forward.3} parent=0
    _
  %s29 = ssub.s32 1, %s27
  %s30 = scalar_select 0, %s29, %s27
  // Predicated region
  $region2: #{af2cg_forward.3} parent=0 // pred_check
    _
  $region3: #{af2cg_forward.3} parent=0 // pred_check_branch
    %32 = sbr.rel (0) target = $region5
  $region4: #{af2cg_forward.3} parent=0 // pred_region
    _
  $region5: #{af2cg_forward.3} parent=0 // pred_fallthru
    _
  // Predicated region
  $region6: #{af2cg_forward.3} parent=0 // pred_check
    _
  $region7: #{af2cg_forward.3} parent=0 // pred_check_branch
    %34 = sbr.rel (0) target = $region9
  $region8: #{af2cg_forward.3} parent=0 // pred_region
    _
  $region9: #{af2cg_forward.3} parent=0 // pred_fallthru
    _
  // Predicated region
  $region10: #{af2cg_forward.3} parent=0 // pred_check
    _
  $region11: #{af2cg_forward.3} parent=0 // pred_check_branch
    %36 = sbr.rel (0) target = $region13
  $region12: #{af2cg_forward.3} parent=0 // pred_region
    _
  $region13: #{af2cg_forward.3} parent=0 // pred_fallthru
    _
  // Predicated region
  $region14: #{af2cg_forward.3} parent=0 // pred_check
    _
  $region15: #{af2cg_forward.3} parent=0 // pred_check_branch
    %38 = sbr.rel (0) target = $region17
  $region16: #{af2cg_forward.3} parent=0 // pred_region
    _
  $region17: #{af2cg_forward.3} parent=0 // pred_fallthru
    _
  // Predicated region
  $region18: #{af2cg_forward.3} parent=0 // pred_check
    _
  $region19: #{af2cg_forward.3} parent=0 // pred_check_branch
    %40 = sbr.rel (0) target = $region21
  $region20: #{af2cg_forward.3} parent=0 // pred_region
    _
  $region21: #{af2cg_forward.3} parent=0 // pred_fallthru
    _
  // Predicated region
  $region22: #{af2cg_forward.3} parent=0 // pred_check
    _
  $region23: #{af2cg_forward.3} parent=0 // pred_check_branch
    %42 = sbr.rel (0) target = $region25
  $region24: #{af2cg_forward.3} parent=0 // pred_region
    _
  $region25: #{af2cg_forward.3} parent=0 // pred_fallthru
    _
  // Predicated region
  $region26: #{af2cg_forward.3} parent=0 // pred_check
    _
  $region27: #{af2cg_forward.3} parent=0 // pred_check_branch
    %44 = sbr.rel (0) target = $region29
  $region28: #{af2cg_forward.3} parent=0 // pred_region
    _
  $region29: #{af2cg_forward.3} parent=0 // pred_fallthru
    _
  // Predicated region
  $region30: #{af2cg_forward.3} parent=0 // pred_check
    _
  $region31: #{af2cg_forward.3} parent=0 // pred_check_branch
    %46 = sbr.rel (0) target = $region33
  $region32: #{af2cg_forward.3} parent=0 // pred_region
    _
  $region33: #{af2cg_forward.3} parent=0 // pred_fallthru
    _
  // Predicated region
  $region34: #{af2cg_forward.3} parent=0 // pred_check
    _
  $region35: #{af2cg_forward.3} parent=0 // pred_check_branch
    %48 = sbr.rel (0) target = $region37
  $region36: #{af2cg_forward.3} parent=0 // pred_region
    _
  $region37: #{af2cg_forward.3} parent=0 // pred_fallthru
    _
  // Predicated region
  $region38: #{af2cg_forward.3} parent=0 // pred_check
    _
  $region39: #{af2cg_forward.3} parent=0 // pred_check_branch
    %50 = sbr.rel (0) target = $region41
  $region40: #{af2cg_forward.3} parent=0 // pred_region
    _
  $region41: #{af2cg_forward.3} parent=0 // pred_fallthru
    _
  // Predicated region
  $region42: #{af2cg_forward.3} parent=0 // pred_check
    _
  $region43: #{af2cg_forward.3} parent=0 // pred_check_branch
    %52 = sbr.rel (0) target = $region45
  $region44: #{af2cg_forward.3} parent=0 // pred_region
    _
  $region45: #{af2cg_forward.3} parent=0 // pred_fallthru
    _
  // Predicated region
  $region46: #{af2cg_forward.3} parent=0 // pred_check
    _
  $region47: #{af2cg_forward.3} parent=0 // pred_check_branch
    %54 = sbr.rel (0) target = $region49
  $region48: #{af2cg_forward.3} parent=0 // pred_region
    _
  $region49: #{af2cg_forward.3} parent=0 // pred_fallthru
    _
  // Predicated region
  $region50: #{af2cg_forward.3} parent=0 // pred_check
    _
  $region51: #{af2cg_forward.3} parent=0 // pred_check_branch
    %56 = sbr.rel (0) target = $region53
  $region52: #{af2cg_forward.3} parent=0 // pred_region
    _
  $region53: #{af2cg_forward.3} parent=0 // pred_fallthru
    _
  // Predicated region
  $region54: #{af2cg_forward.3} parent=0 // pred_check
    _
  $region55: #{af2cg_forward.3} parent=0 // pred_check_branch
    %58 = sbr.rel (0) target = $region57
  $region56: #{af2cg_forward.3} parent=0 // pred_region
    _
  $region57: #{af2cg_forward.3} parent=0 // pred_fallthru
    _
  // Predicated region
  $region58: #{af2cg_forward.3} parent=0 // pred_check
    _
  $region59: #{af2cg_forward.3} parent=0 // pred_check_branch
    %60 = sbr.rel (0) target = $region61
  $region60: #{af2cg_forward.3} parent=0 // pred_region
    _
  $region61: #{af2cg_forward.3} parent=0 // pred_fallthru
    _
  // Predicated region
  $region62: #{af2cg_forward.3} parent=0 // pred_check
    _
  $region63: #{af2cg_forward.3} parent=0 // pred_check_branch
    %62 = sbr.rel (0) target = $region65
  $region64: #{af2cg_forward.3} parent=0 // pred_region
    _
  $region65: #{af2cg_forward.3} parent=0 // pred_fallthru
    _
  // Predicated region
  $region66: #{af2cg_forward.3} parent=0 // pred_check
    _
  $region67: #{af2cg_forward.3} parent=0 // pred_check_branch
    %64 = sbr.rel (0) target = $region69
  $region68: #{af2cg_forward.3} parent=0 // pred_region
    _
  $region69: #{af2cg_forward.3} parent=0 // pred_fallthru
    _
  // Predicated region
  $region70: #{af2cg_forward.3} parent=0 // pred_check
    _
  $region71: #{af2cg_forward.3} parent=0 // pred_check_branch
    %66 = sbr.rel (0) target = $region73
  $region72: #{af2cg_forward.3} parent=0 // pred_region
    _
  $region73: #{af2cg_forward.3} parent=0 // pred_fallthru
    _
  // Predicated region
  $region74: #{af2cg_forward.3} parent=0 // pred_check
    _
  $region75: #{af2cg_forward.3} parent=0 // pred_check_branch
    %68 = sbr.rel (0) target = $region77
  $region76: #{af2cg_forward.3} parent=0 // pred_region
    _
  $region77: #{af2cg_forward.3} parent=0 // pred_fallthru
    _
  // Predicated region
  $region78: #{af2cg_forward.3} parent=0 // pred_check
    _
  $region79: #{af2cg_forward.3} parent=0 // pred_check_branch
    %70 = sbr.rel (0) target = $region81
  $region80: #{af2cg_forward.3} parent=0 // pred_region
    _
  $region81: #{af2cg_forward.3} parent=0 // pred_fallthru
    _
  // Predicated region
  $region82: #{af2cg_forward.3} parent=0 // pred_check
    _
  $region83: #{af2cg_forward.3} parent=0 // pred_check_branch
    %72 = sbr.rel (0) target = $region85
  $region84: #{af2cg_forward.3} parent=0 // pred_region
    _
  $region85: #{af2cg_forward.3} parent=0 // pred_fallthru
    _
  // Predicated region
  $region86: #{af2cg_forward.3} parent=0 // pred_check
    _
  $region87: #{af2cg_forward.3} parent=0 // pred_check_branch
    %74 = sbr.rel (0) target = $region89
  $region88: #{af2cg_forward.3} parent=0 // pred_region
    _
  $region89: #{af2cg_forward.3} parent=0 // pred_fallthru
    _
  // Predicated region
  $region90: #{af2cg_forward.3} parent=0 // pred_check
    _
  $region91: #{af2cg_forward.3} parent=0 // pred_check_branch
    %76 = sbr.rel (0) target = $region93
  $region92: #{af2cg_forward.3} parent=0 // pred_region
    _
  $region93: #{af2cg_forward.3} parent=0 // pred_fallthru
    _
  // Predicated region
  $region94: #{af2cg_forward.3} parent=0 // pred_check
    _
  $region95: #{af2cg_forward.3} parent=0 // pred_check_branch
    %78 = sbr.rel (0) target = $region97
  $region96: #{af2cg_forward.3} parent=0 // pred_region
    _
  $region97: #{af2cg_forward.3} parent=0 // pred_fallthru
    _
  // Predicated region
  $region98: #{af2cg_forward.3} parent=0 // pred_check
    _
  $region99: #{af2cg_forward.3} parent=0 // pred_check_branch
    %80 = sbr.rel (0) target = $region101
  $region100: #{af2cg_forward.3} parent=0 // pred_region
    _
  $region101: #{af2cg_forward.3} parent=0 // pred_fallthru
    _
  // Predicated region
  $region102: #{af2cg_forward.3} parent=0 // pred_check
    _
  $region103: #{af2cg_forward.3} parent=0 // pred_check_branch
    %82 = sbr.rel (0) target = $region105
  $region104: #{af2cg_forward.3} parent=0 // pred_region
    _
  $region105: #{af2cg_forward.3} parent=0 // pred_fallthru
    _
  %v83 = vld [vmem:[%s3] sm:$0x1]
  %v84 = vld [vmem:[%s4] sm:$0xff]
  %v85 = vld [vmem:[%s0] sm:$0x1]
  %87 = vset.pattern.permute.xlu0 0
  %88 = vperm.xlu0 %87, %v84
  %v89 = vpop.permute.xlu0 %88
  %v92 = vlaneseq
  %v93 = vshrl.u32 %v92, 7
  %v94 = vsub.s32 0, %v93
  %v95 = vrot.slane %v85, %v94
  %v97 = vmul.f32 %v89, %v95
  %v98 = vld [vmem:[%s5] sm:$0xff]
  %100 = vset.pattern.permute.xlu0 0
  %101 = vperm.xlu0 %100, %v98
  %v102 = vpop.permute.xlu0 %101
  %v104 = vadd.f32 %v97, %v102
  %v105 = vld [vmem:[%s6] sm:$0xff]
  %v106 = vld [vmem:[%s6 + $0x8] sm:$0xff]
  %v107 = vld [vmem:[%s6 + $0x10] sm:$0xff]
  %v108 = vld [vmem:[%s1] sm:$0xff]
  %v109 = vld [vmem:[%s7] sm:$0xff]
  %v110 = vld [vmem:[%s7 + $0x8] sm:$0xff]
  %v111 = vld [vmem:[%s7 + $0x10] sm:$0xff]
  %113 = vset.pattern.permute.xlu0 0
  %114 = vperm.xlu0 %113, %v109
  %v115 = vpop.permute.xlu0 %114
  %118 = vset.pattern.permute.xlu0 0
  %119 = vperm.xlu0 %118, %v110
  %v120 = vpop.permute.xlu0 %119
  %123 = vset.pattern.permute.xlu0 0
  %124 = vperm.xlu0 %123, %v111
  %v125 = vpop.permute.xlu0 %124
  %vm127 = vcmask 64512
  %v129 = vsel %vm127, %v105, 0
  %v132 = vsel %vm127, %v106, 0
  %v135 = vsel %vm127, %v107, 0
  %137 = vmatprep.subr.mxu0 0.0
  %138 = vmatpush1.msra.mxu0 %v108
  %139 = vmatprep.subr.mxu0 0.0
  %140 = vmatpush1.msra.mxu0 0.0
  %141 = vmatprep.subr.mxu0 0.0
  %142 = vmatpush1.msra.mxu0 0.0
  %143 = vmatprep.subr.mxu0 0.0
  %144 = vmatpush1.msra.mxu0 0.0
  %145 = vmatprep.subr.mxu0 0.0
  %146 = vmatpush1.msra.mxu0 0.0
  %147 = vmatprep.subr.mxu0 0.0
  %148 = vmatpush1.msra.mxu0 0.0
  %149 = vmatprep.subr.mxu0 0.0
  %150 = vmatpush1.msra.mxu0 0.0
  %151 = vmatprep.subr.mxu0 0.0
  %152 = vmatpush1.msra.mxu0 0.0
  %153 = vmatprep.subr.mxu0 0.0
  %154 = vmatpush1.msra.mxu0 0.0
  %155 = vmatprep.subr.mxu0 0.0
  %156 = vmatpush1.msra.mxu0 0.0
  %157 = vmatprep.subr.mxu0 0.0
  %158 = vmatpush1.msra.mxu0 0.0
  %159 = vmatprep.subr.mxu0 0.0
  %160 = vmatpush1.msra.mxu0 0.0
  %161 = vmatprep.subr.mxu0 0.0
  %162 = vmatpush1.msra.mxu0 0.0
  %163 = vmatprep.subr.mxu0 0.0
  %164 = vmatpush1.msra.mxu0 0.0
  %165 = vmatprep.subr.mxu0 0.0
  %166 = vmatpush1.msra.mxu0 0.0
  %167 = vmatprep.subr.mxu0 0.0
  %168 = vmatpush1.msra.mxu0 0.0
  %169 = vmatprep.subr.mxu0 0.0
  %170 = vmatpush1.msra.mxu0 0.0
  %171 = vmatprep.subr.mxu0 0.0
  %172 = vmatpush1.msra.mxu0 0.0
  %173 = vmatprep.subr.mxu0 0.0
  %174 = vmatpush1.msra.mxu0 0.0
  %175 = vmatprep.subr.mxu0 0.0
  %176 = vmatpush1.msra.mxu0 0.0
  %177 = vmatprep.subr.mxu0 0.0
  %178 = vmatpush1.msra.mxu0 0.0
  %179 = vmatprep.subr.mxu0 0.0
  %180 = vmatpush1.msra.mxu0 0.0
  %181 = vmatprep.subr.mxu0 0.0
  %182 = vmatpush1.msra.mxu0 0.0
  %183 = vmatprep.subr.mxu0 0.0
  %184 = vmatpush1.msra.mxu0 0.0
  %185 = vmatprep.subr.mxu0 0.0
  %186 = vmatpush1.msra.mxu0 0.0
  %187 = vmatprep.subr.mxu0 0.0
  %188 = vmatpush1.msra.mxu0 0.0
  %189 = vmatprep.subr.mxu0 0.0
  %190 = vmatpush1.msra.mxu0 0.0
  %191 = vmatprep.subr.mxu0 0.0
  %192 = vmatpush1.msra.mxu0 0.0
  %193 = vmatprep.subr.mxu0 0.0
  %194 = vmatpush1.msra.mxu0 0.0
  %195 = vmatprep.subr.mxu0 0.0
  %196 = vmatpush1.msra.mxu0 0.0
  %197 = vmatprep.subr.mxu0 0.0
  %198 = vmatpush1.msra.mxu0 0.0
  %199 = vmatprep.subr.mxu0 0.0
  %200 = vmatpush1.msra.mxu0 0.0
  %201 = vmatprep.mubr.f32.mxu0 0.0
  %202 = vmatmul.mubr.f32.gmra.mrb[0].mxu0 %v129
  %v203 = vpop.f32.mrb[0].mxu0
  %v204 = vadd.f32 %v115, %v203
  %v205 = vpop.f32.mrb[0].mxu0
  %206 = vmatprep.mubr.f32.mxu0 0.0
  %207 = vmatmul.mubr.f32.gmra.mrb[0].mxu0 %v132
  %v208 = vpop.f32.mrb[0].mxu0
  %v209 = vadd.f32 %v120, %v208
  %v210 = vpop.f32.mrb[0].mxu0
  %211 = vmatprep.mubr.f32.mxu0 0.0
  %212 = vmatmul.mubr.f32.gmra.mrb[0].mxu0 %v135
  %v213 = vpop.f32.mrb[0].mxu0
  %v214 = vadd.f32 %v125, %v213
  %v215 = vpop.f32.mrb[0].mxu0
  %216 = vdwg.mxu0
  %v217 = vld [vmem:[%s8] sm:$0xff]
  %v218 = vld [vmem:[%s2] sm:$0xff]
  %v219 = vld [vmem:[%s9] sm:$0xff]
  %221 = vset.pattern.permute.xlu0 0
  %222 = vperm.xlu0 %221, %v219
  %v223 = vpop.permute.xlu0 %222
  %v226 = vsel %vm127, %v217, 0
  %228 = vmatprep.subr.mxu0 0.0
  %229 = vmatpush1.msra.mxu0 %v218
  %230 = vmatprep.subr.mxu0 0.0
  %231 = vmatpush1.msra.mxu0 0.0
  %232 = vmatprep.subr.mxu0 0.0
  %233 = vmatpush1.msra.mxu0 0.0
  %234 = vmatprep.subr.mxu0 0.0
  %235 = vmatpush1.msra.mxu0 0.0
  %236 = vmatprep.subr.mxu0 0.0
  %237 = vmatpush1.msra.mxu0 0.0
  %238 = vmatprep.subr.mxu0 0.0
  %239 = vmatpush1.msra.mxu0 0.0
  %240 = vmatprep.subr.mxu0 0.0
  %241 = vmatpush1.msra.mxu0 0.0
  %242 = vmatprep.subr.mxu0 0.0
  %243 = vmatpush1.msra.mxu0 0.0
  %244 = vmatprep.subr.mxu0 0.0
  %245 = vmatpush1.msra.mxu0 0.0
  %246 = vmatprep.subr.mxu0 0.0
  %247 = vmatpush1.msra.mxu0 0.0
  %248 = vmatprep.subr.mxu0 0.0
  %249 = vmatpush1.msra.mxu0 0.0
  %250 = vmatprep.subr.mxu0 0.0
  %251 = vmatpush1.msra.mxu0 0.0
  %252 = vmatprep.subr.mxu0 0.0
  %253 = vmatpush1.msra.mxu0 0.0
  %254 = vmatprep.subr.mxu0 0.0
  %255 = vmatpush1.msra.mxu0 0.0
  %256 = vmatprep.subr.mxu0 0.0
  %257 = vmatpush1.msra.mxu0 0.0
  %258 = vmatprep.subr.mxu0 0.0
  %259 = vmatpush1.msra.mxu0 0.0
  %260 = vmatprep.subr.mxu0 0.0
  %261 = vmatpush1.msra.mxu0 0.0
  %262 = vmatprep.subr.mxu0 0.0
  %263 = vmatpush1.msra.mxu0 0.0
  %264 = vmatprep.subr.mxu0 0.0
  %265 = vmatpush1.msra.mxu0 0.0
  %266 = vmatprep.subr.mxu0 0.0
  %267 = vmatpush1.msra.mxu0 0.0
  %268 = vmatprep.subr.mxu0 0.0
  %269 = vmatpush1.msra.mxu0 0.0
  %270 = vmatprep.subr.mxu0 0.0
  %271 = vmatpush1.msra.mxu0 0.0
  %272 = vmatprep.subr.mxu0 0.0
  %273 = vmatpush1.msra.mxu0 0.0
  %274 = vmatprep.subr.mxu0 0.0
  %275 = vmatpush1.msra.mxu0 0.0
  %276 = vmatprep.subr.mxu0 0.0
  %277 = vmatpush1.msra.mxu0 0.0
  %278 = vmatprep.subr.mxu0 0.0
  %279 = vmatpush1.msra.mxu0 0.0
  %280 = vmatprep.subr.mxu0 0.0
  %281 = vmatpush1.msra.mxu0 0.0
  %282 = vmatprep.subr.mxu0 0.0
  %283 = vmatpush1.msra.mxu0 0.0
  %284 = vmatprep.subr.mxu0 0.0
  %285 = vmatpush1.msra.mxu0 0.0
  %286 = vmatprep.subr.mxu0 0.0
  %287 = vmatpush1.msra.mxu0 0.0
  %288 = vmatprep.subr.mxu0 0.0
  %289 = vmatpush1.msra.mxu0 0.0
  %290 = vmatprep.subr.mxu0 0.0
  %291 = vmatpush1.msra.mxu0 0.0
  %292 = vmatprep.mubr.f32.mxu0 0.0
  %293 = vmatmul.mubr.f32.gmra.mrb[0].mxu0 %v226
  %v294 = vpop.f32.mrb[0].mxu0
  %v295 = vadd.f32 %v223, %v294
  %v296 = vpop.f32.mrb[0].mxu0
  %297 = vdwg.mxu0
  %v298 = vld [vmem:[%s10] sm:$0xff]
  %v299 = vld [vmem:[%s10 + $0x8] sm:$0xff]
  %v300 = vld [vmem:[%s10 + $0x10] sm:$0xff]
  %v301 = vld [vmem:[%s10 + $0x18] sm:$0xff]
  %v302 = vld [vmem:[%s11] sm:$0xff]
  %v303 = vld [vmem:[%s11 + $0x8] sm:$0xff]
  %v304 = vld [vmem:[%s11 + $0x10] sm:$0xff]
  %v305 = vld [vmem:[%s11 + $0x18] sm:$0xff]
  %vm306 = vcmask 195584
  %v308 = vsel %vm306, %v302, 0
  %v311 = vsel %vm306, %v303, 0
  %v314 = vsel %vm306, %v304, 0
  %v317 = vsel %vm306, %v305, 0
  %319 = vmatprep.subr.mxu0 0.0
  %320 = vmatpush1.msra.mxu0 %v204
  %321 = vmatprep.subr.mxu0 0.0
  %322 = vmatpush1.msra.mxu0 %v209
  %323 = vmatprep.subr.mxu0 0.0
  %324 = vmatpush1.msra.mxu0 %v214
  %325 = vmatprep.subr.mxu0 0.0
  %326 = vmatpush1.msra.mxu0 0.0
  %327 = vmatprep.subr.mxu0 0.0
  %328 = vmatpush1.msra.mxu0 0.0
  %329 = vmatprep.subr.mxu0 0.0
  %330 = vmatpush1.msra.mxu0 0.0
  %331 = vmatprep.subr.mxu0 0.0
  %332 = vmatpush1.msra.mxu0 0.0
  %333 = vmatprep.subr.mxu0 0.0
  %334 = vmatpush1.msra.mxu0 0.0
  %335 = vmatprep.subr.mxu0 0.0
  %336 = vmatpush1.msra.mxu0 0.0
  %337 = vmatprep.subr.mxu0 0.0
  %338 = vmatpush1.msra.mxu0 0.0
  %339 = vmatprep.subr.mxu0 0.0
  %340 = vmatpush1.msra.mxu0 0.0
  %341 = vmatprep.subr.mxu0 0.0
  %342 = vmatpush1.msra.mxu0 0.0
  %343 = vmatprep.subr.mxu0 0.0
  %344 = vmatpush1.msra.mxu0 0.0
  %345 = vmatprep.subr.mxu0 0.0
  %346 = vmatpush1.msra.mxu0 0.0
  %347 = vmatprep.subr.mxu0 0.0
  %348 = vmatpush1.msra.mxu0 0.0
  %349 = vmatprep.subr.mxu0 0.0
  %350 = vmatpush1.msra.mxu0 0.0
  %351 = vmatprep.subr.mxu0 0.0
  %352 = vmatpush1.msra.mxu0 0.0
  %353 = vmatprep.subr.mxu0 0.0
  %354 = vmatpush1.msra.mxu0 0.0
  %355 = vmatprep.subr.mxu0 0.0
  %356 = vmatpush1.msra.mxu0 0.0
  %357 = vmatprep.subr.mxu0 0.0
  %358 = vmatpush1.msra.mxu0 0.0
  %359 = vmatprep.subr.mxu0 0.0
  %360 = vmatpush1.msra.mxu0 0.0
  %361 = vmatprep.subr.mxu0 0.0
  %362 = vmatpush1.msra.mxu0 0.0
  %363 = vmatprep.subr.mxu0 0.0
  %364 = vmatpush1.msra.mxu0 0.0
  %365 = vmatprep.subr.mxu0 0.0
  %366 = vmatpush1.msra.mxu0 0.0
  %367 = vmatprep.subr.mxu0 0.0
  %368 = vmatpush1.msra.mxu0 0.0
  %369 = vmatprep.subr.mxu0 0.0
  %370 = vmatpush1.msra.mxu0 0.0
  %371 = vmatprep.subr.mxu0 0.0
  %372 = vmatpush1.msra.mxu0 0.0
  %373 = vmatprep.subr.mxu0 0.0
  %374 = vmatpush1.msra.mxu0 0.0
  %375 = vmatprep.subr.mxu0 0.0
  %376 = vmatpush1.msra.mxu0 0.0
  %377 = vmatprep.subr.mxu0 0.0
  %378 = vmatpush1.msra.mxu0 0.0
  %379 = vmatprep.subr.mxu0 0.0
  %380 = vmatpush1.msra.mxu0 0.0
  %381 = vmatprep.subr.mxu0 0.0
  %382 = vmatpush1.msra.mxu0 0.0
  %383 = vmatprep.mubr.f32.mxu0 0.0
  %384 = vmatmul.mubr.f32.gmra.mrb[0].mxu0 %v308
  %v385 = vpop.f32.mrb[0].mxu0
  %v386 = vadd.f32 0.0, %v385
  %v387 = vpop.f32.mrb[0].mxu0
  %388 = vmatprep.mubr.f32.mxu0 0.0
  %389 = vmatmul.mubr.f32.gmra.mrb[0].mxu0 %v311
  %v390 = vpop.f32.mrb[0].mxu0
  %v391 = vadd.f32 0.0, %v390
  %v392 = vpop.f32.mrb[0].mxu0
  %393 = vmatprep.mubr.f32.mxu0 0.0
  %394 = vmatmul.mubr.f32.gmra.mrb[0].mxu0 %v314
  %v395 = vpop.f32.mrb[0].mxu0
  %v396 = vadd.f32 0.0, %v395
  %v397 = vpop.f32.mrb[0].mxu0
  %398 = vmatprep.mubr.f32.mxu0 0.0
  %399 = vmatmul.mubr.f32.gmra.mrb[0].mxu0 %v317
  %v400 = vpop.f32.mrb[0].mxu0
  %v401 = vadd.f32 0.0, %v400
  %v402 = vpop.f32.mrb[0].mxu0
  %403 = vdwg.mxu0
  %v405 = vsel %vm127, %v298, 0
  %v408 = vsel %vm127, %v299, 0
  %v411 = vsel %vm127, %v300, 0
  %v414 = vsel %vm127, %v301, 0
  %416 = vmatprep.subr.mxu0 0.0
  %417 = vmatpush1.msra.mxu0 %v104
  %418 = vmatprep.subr.mxu0 0.0
  %419 = vmatpush1.msra.mxu0 0.0
  %420 = vmatprep.subr.mxu0 0.0
  %421 = vmatpush1.msra.mxu0 0.0
  %422 = vmatprep.subr.mxu0 0.0
  %423 = vmatpush1.msra.mxu0 0.0
  %424 = vmatprep.subr.mxu0 0.0
  %425 = vmatpush1.msra.mxu0 0.0
  %426 = vmatprep.subr.mxu0 0.0
  %427 = vmatpush1.msra.mxu0 0.0
  %428 = vmatprep.subr.mxu0 0.0
  %429 = vmatpush1.msra.mxu0 0.0
  %430 = vmatprep.subr.mxu0 0.0
  %431 = vmatpush1.msra.mxu0 0.0
  %432 = vmatprep.subr.mxu0 0.0
  %433 = vmatpush1.msra.mxu0 0.0
  %434 = vmatprep.subr.mxu0 0.0
  %435 = vmatpush1.msra.mxu0 0.0
  %436 = vmatprep.subr.mxu0 0.0
  %437 = vmatpush1.msra.mxu0 0.0
  %438 = vmatprep.subr.mxu0 0.0
  %439 = vmatpush1.msra.mxu0 0.0
  %440 = vmatprep.subr.mxu0 0.0
  %441 = vmatpush1.msra.mxu0 0.0
  %442 = vmatprep.subr.mxu0 0.0
  %443 = vmatpush1.msra.mxu0 0.0
  %444 = vmatprep.subr.mxu0 0.0
  %445 = vmatpush1.msra.mxu0 0.0
  %446 = vmatprep.subr.mxu0 0.0
  %447 = vmatpush1.msra.mxu0 0.0
  %448 = vmatprep.subr.mxu0 0.0
  %449 = vmatpush1.msra.mxu0 0.0
  %450 = vmatprep.subr.mxu0 0.0
  %451 = vmatpush1.msra.mxu0 0.0
  %452 = vmatprep.subr.mxu0 0.0
  %453 = vmatpush1.msra.mxu0 0.0
  %454 = vmatprep.subr.mxu0 0.0
  %455 = vmatpush1.msra.mxu0 0.0
  %456 = vmatprep.subr.mxu0 0.0
  %457 = vmatpush1.msra.mxu0 0.0
  %458 = vmatprep.subr.mxu0 0.0
  %459 = vmatpush1.msra.mxu0 0.0
  %460 = vmatprep.subr.mxu0 0.0
  %461 = vmatpush1.msra.mxu0 0.0
  %462 = vmatprep.subr.mxu0 0.0
  %463 = vmatpush1.msra.mxu0 0.0
  %464 = vmatprep.subr.mxu0 0.0
  %465 = vmatpush1.msra.mxu0 0.0
  %466 = vmatprep.subr.mxu0 0.0
  %467 = vmatpush1.msra.mxu0 0.0
  %468 = vmatprep.subr.mxu0 0.0
  %469 = vmatpush1.msra.mxu0 0.0
  %470 = vmatprep.subr.mxu0 0.0
  %471 = vmatpush1.msra.mxu0 0.0
  %472 = vmatprep.subr.mxu0 0.0
  %473 = vmatpush1.msra.mxu0 0.0
  %474 = vmatprep.subr.mxu0 0.0
  %475 = vmatpush1.msra.mxu0 0.0
  %476 = vmatprep.subr.mxu0 0.0
  %477 = vmatpush1.msra.mxu0 0.0
  %478 = vmatprep.subr.mxu0 0.0
  %479 = vmatpush1.msra.mxu0 0.0
  %480 = vmatprep.mubr.f32.mxu0 0.0
  %481 = vmatmul.mubr.f32.gmra.mrb[0].mxu0 %v405
  %v482 = vpop.f32.mrb[0].mxu0
  %v483 = vadd.f32 %v386, %v482
  %v484 = vpop.f32.mrb[0].mxu0
  %485 = vmatprep.mubr.f32.mxu0 0.0
  %486 = vmatmul.mubr.f32.gmra.mrb[0].mxu0 %v408
  %v487 = vpop.f32.mrb[0].mxu0
  %v488 = vadd.f32 %v391, %v487
  %v489 = vpop.f32.mrb[0].mxu0
  %490 = vmatprep.mubr.f32.mxu0 0.0
  %491 = vmatmul.mubr.f32.gmra.mrb[0].mxu0 %v411
  %v492 = vpop.f32.mrb[0].mxu0
  %v493 = vadd.f32 %v396, %v492
  %v494 = vpop.f32.mrb[0].mxu0
  %495 = vmatprep.mubr.f32.mxu0 0.0
  %496 = vmatmul.mubr.f32.gmra.mrb[0].mxu0 %v414
  %v497 = vpop.f32.mrb[0].mxu0
  %v498 = vadd.f32 %v401, %v497
  %v499 = vpop.f32.mrb[0].mxu0
  %500 = vdwg.mxu0
  %v501 = vld [vmem:[%s12] sm:$0xff]
  %v502 = vld [vmem:[%s12 + $0x8] sm:$0xff]
  %v503 = vld [vmem:[%s12 + $0x10] sm:$0xff]
  %v504 = vld [vmem:[%s12 + $0x18] sm:$0xff]
  %v506 = vsel %vm127, %v501, 0
  %v509 = vsel %vm127, %v502, 0
  %v512 = vsel %vm127, %v503, 0
  %v515 = vsel %vm127, %v504, 0
  %517 = vmatprep.subr.mxu0 0.0
  %518 = vmatpush1.msra.mxu0 %v295
  %519 = vmatprep.subr.mxu0 0.0
  %520 = vmatpush1.msra.mxu0 0.0
  %521 = vmatprep.subr.mxu0 0.0
  %522 = vmatpush1.msra.mxu0 0.0
  %523 = vmatprep.subr.mxu0 0.0
  %524 = vmatpush1.msra.mxu0 0.0
  %525 = vmatprep.subr.mxu0 0.0
  %526 = vmatpush1.msra.mxu0 0.0
  %527 = vmatprep.subr.mxu0 0.0
  %528 = vmatpush1.msra.mxu0 0.0
  %529 = vmatprep.subr.mxu0 0.0
  %530 = vmatpush1.msra.mxu0 0.0
  %531 = vmatprep.subr.mxu0 0.0
  %532 = vmatpush1.msra.mxu0 0.0
  %533 = vmatprep.subr.mxu0 0.0
  %534 = vmatpush1.msra.mxu0 0.0
  %535 = vmatprep.subr.mxu0 0.0
  %536 = vmatpush1.msra.mxu0 0.0
  %537 = vmatprep.subr.mxu0 0.0
  %538 = vmatpush1.msra.mxu0 0.0
  %539 = vmatprep.subr.mxu0 0.0
  %540 = vmatpush1.msra.mxu0 0.0
  %541 = vmatprep.subr.mxu0 0.0
  %542 = vmatpush1.msra.mxu0 0.0
  %543 = vmatprep.subr.mxu0 0.0
  %544 = vmatpush1.msra.mxu0 0.0
  %545 = vmatprep.subr.mxu0 0.0
  %546 = vmatpush1.msra.mxu0 0.0
  %547 = vmatprep.subr.mxu0 0.0
  %548 = vmatpush1.msra.mxu0 0.0
  %549 = vmatprep.subr.mxu0 0.0
  %550 = vmatpush1.msra.mxu0 0.0
  %551 = vmatprep.subr.mxu0 0.0
  %552 = vmatpush1.msra.mxu0 0.0
  %553 = vmatprep.subr.mxu0 0.0
  %554 = vmatpush1.msra.mxu0 0.0
  %555 = vmatprep.subr.mxu0 0.0
  %556 = vmatpush1.msra.mxu0 0.0
  %557 = vmatprep.subr.mxu0 0.0
  %558 = vmatpush1.msra.mxu0 0.0
  %559 = vmatprep.subr.mxu0 0.0
  %560 = vmatpush1.msra.mxu0 0.0
  %561 = vmatprep.subr.mxu0 0.0
  %562 = vmatpush1.msra.mxu0 0.0
  %563 = vmatprep.subr.mxu0 0.0
  %564 = vmatpush1.msra.mxu0 0.0
  %565 = vmatprep.subr.mxu0 0.0
  %566 = vmatpush1.msra.mxu0 0.0
  %567 = vmatprep.subr.mxu0 0.0
  %568 = vmatpush1.msra.mxu0 0.0
  %569 = vmatprep.subr.mxu0 0.0
  %570 = vmatpush1.msra.mxu0 0.0
  %571 = vmatprep.subr.mxu0 0.0
  %572 = vmatpush1.msra.mxu0 0.0
  %573 = vmatprep.subr.mxu0 0.0
  %574 = vmatpush1.msra.mxu0 0.0
  %575 = vmatprep.subr.mxu0 0.0
  %576 = vmatpush1.msra.mxu0 0.0
  %577 = vmatprep.subr.mxu0 0.0
  %578 = vmatpush1.msra.mxu0 0.0
  %579 = vmatprep.subr.mxu0 0.0
  %580 = vmatpush1.msra.mxu0 0.0
  %581 = vmatprep.mubr.f32.mxu0 0.0
  %582 = vmatmul.mubr.f32.gmra.mrb[0].mxu0 %v506
  %v583 = vpop.f32.mrb[0].mxu0
  %v584 = vadd.f32 0.0, %v583
  %v585 = vpop.f32.mrb[0].mxu0
  %586 = vmatprep.mubr.f32.mxu0 0.0
  %587 = vmatmul.mubr.f32.gmra.mrb[0].mxu0 %v509
  %v588 = vpop.f32.mrb[0].mxu0
  %v589 = vadd.f32 0.0, %v588
  %v590 = vpop.f32.mrb[0].mxu0
  %591 = vmatprep.mubr.f32.mxu0 0.0
  %592 = vmatmul.mubr.f32.gmra.mrb[0].mxu0 %v512
  %v593 = vpop.f32.mrb[0].mxu0
  %v594 = vadd.f32 0.0, %v593
  %v595 = vpop.f32.mrb[0].mxu0
  %596 = vmatprep.mubr.f32.mxu0 0.0
  %597 = vmatmul.mubr.f32.gmra.mrb[0].mxu0 %v515
  %v598 = vpop.f32.mrb[0].mxu0
  %v599 = vadd.f32 0.0, %v598
  %v600 = vpop.f32.mrb[0].mxu0
  %601 = vdwg.mxu0
  %v602 = vadd.f32 %v483, %v584
  %v603 = vadd.f32 %v488, %v589
  %v604 = vadd.f32 %v493, %v594
  %v605 = vadd.f32 %v498, %v599
  %v606 = vld [vmem:[%s13] sm:$0xff]
  %v607 = vld [vmem:[%s13 + $0x8] sm:$0xff]
  %v608 = vld [vmem:[%s13 + $0x10] sm:$0xff]
  %v609 = vld [vmem:[%s13 + $0x18] sm:$0xff]
  %611 = vset.pattern.permute.xlu0 0
  %612 = vperm.xlu0 %611, %v606
  %v613 = vpop.permute.xlu0 %612
  %616 = vset.pattern.permute.xlu0 0
  %617 = vperm.xlu0 %616, %v607
  %v618 = vpop.permute.xlu0 %617
  %621 = vset.pattern.permute.xlu0 0
  %622 = vperm.xlu0 %621, %v608
  %v623 = vpop.permute.xlu0 %622
  %626 = vset.pattern.permute.xlu0 0
  %627 = vperm.xlu0 %626, %v609
  %v628 = vpop.permute.xlu0 %627
  %v630 = vadd.f32 %v602, %v613
  %v631 = vadd.f32 %v603, %v618
  %v632 = vadd.f32 %v604, %v623
  %v633 = vadd.f32 %v605, %v628
  %v634 = vld [vmem:[%s14] sm:$0xff]
  %v635 = vld [vmem:[%s14 + $0x8] sm:$0xff]
  %v636 = vld [vmem:[%s14 + $0x10] sm:$0xff]
  %v637 = vld [vmem:[%s14 + $0x18] sm:$0xff]
  %v638 = vld [vmem:[%s15] sm:$0xff]
  %v639 = vld [vmem:[%s15 + $0x8] sm:$0xff]
  %v640 = vld [vmem:[%s15 + $0x10] sm:$0xff]
  %v641 = vld [vmem:[%s15 + $0x18] sm:$0xff]
  %643 = vset.pattern.permute.xlu0 0
  %644 = vperm.xlu0 %643, %v638
  %v645 = vpop.permute.xlu0 %644
  %648 = vset.pattern.permute.xlu0 0
  %649 = vperm.xlu0 %648, %v639
  %v650 = vpop.permute.xlu0 %649
  %653 = vset.pattern.permute.xlu0 0
  %654 = vperm.xlu0 %653, %v640
  %v655 = vpop.permute.xlu0 %654
  %658 = vset.pattern.permute.xlu0 0
  %659 = vperm.xlu0 %658, %v641
  %v660 = vpop.permute.xlu0 %659
  %vm662 = vcmask 261120
  %v664 = vsel %vm662, %v634, 0
  %v667 = vsel %vm662, %v635, 0
  %v670 = vsel %vm662, %v636, 0
  %v673 = vsel %vm662, %v637, 0
  %675 = vmatprep.subr.mxu0 0.0
  %676 = vmatpush1.msra.mxu0 %v630
  %677 = vmatprep.subr.mxu0 0.0
  %678 = vmatpush1.msra.mxu0 %v631
  %679 = vmatprep.subr.mxu0 0.0
  %680 = vmatpush1.msra.mxu0 %v632
  %681 = vmatprep.subr.mxu0 0.0
  %682 = vmatpush1.msra.mxu0 %v633
  %683 = vmatprep.subr.mxu0 0.0
  %684 = vmatpush1.msra.mxu0 0.0
  %685 = vmatprep.subr.mxu0 0.0
  %686 = vmatpush1.msra.mxu0 0.0
  %687 = vmatprep.subr.mxu0 0.0
  %688 = vmatpush1.msra.mxu0 0.0
  %689 = vmatprep.subr.mxu0 0.0
  %690 = vmatpush1.msra.mxu0 0.0
  %691 = vmatprep.subr.mxu0 0.0
  %692 = vmatpush1.msra.mxu0 0.0
  %693 = vmatprep.subr.mxu0 0.0
  %694 = vmatpush1.msra.mxu0 0.0
  %695 = vmatprep.subr.mxu0 0.0
  %696 = vmatpush1.msra.mxu0 0.0
  %697 = vmatprep.subr.mxu0 0.0
  %698 = vmatpush1.msra.mxu0 0.0
  %699 = vmatprep.subr.mxu0 0.0
  %700 = vmatpush1.msra.mxu0 0.0
  %701 = vmatprep.subr.mxu0 0.0
  %702 = vmatpush1.msra.mxu0 0.0
  %703 = vmatprep.subr.mxu0 0.0
  %704 = vmatpush1.msra.mxu0 0.0
  %705 = vmatprep.subr.mxu0 0.0
  %706 = vmatpush1.msra.mxu0 0.0
  %707 = vmatprep.subr.mxu0 0.0
  %708 = vmatpush1.msra.mxu0 0.0
  %709 = vmatprep.subr.mxu0 0.0
  %710 = vmatpush1.msra.mxu0 0.0
  %711 = vmatprep.subr.mxu0 0.0
  %712 = vmatpush1.msra.mxu0 0.0
  %713 = vmatprep.subr.mxu0 0.0
  %714 = vmatpush1.msra.mxu0 0.0
  %715 = vmatprep.subr.mxu0 0.0
  %716 = vmatpush1.msra.mxu0 0.0
  %717 = vmatprep.subr.mxu0 0.0
  %718 = vmatpush1.msra.mxu0 0.0
  %719 = vmatprep.subr.mxu0 0.0
  %720 = vmatpush1.msra.mxu0 0.0
  %721 = vmatprep.subr.mxu0 0.0
  %722 = vmatpush1.msra.mxu0 0.0
  %723 = vmatprep.subr.mxu0 0.0
  %724 = vmatpush1.msra.mxu0 0.0
  %725 = vmatprep.subr.mxu0 0.0
  %726 = vmatpush1.msra.mxu0 0.0
  %727 = vmatprep.subr.mxu0 0.0
  %728 = vmatpush1.msra.mxu0 0.0
  %729 = vmatprep.subr.mxu0 0.0
  %730 = vmatpush1.msra.mxu0 0.0
  %731 = vmatprep.subr.mxu0 0.0
  %732 = vmatpush1.msra.mxu0 0.0
  %733 = vmatprep.subr.mxu0 0.0
  %734 = vmatpush1.msra.mxu0 0.0
  %735 = vmatprep.subr.mxu0 0.0
  %736 = vmatpush1.msra.mxu0 0.0
  %737 = vmatprep.subr.mxu0 0.0
  %738 = vmatpush1.msra.mxu0 0.0
  %739 = vmatprep.mubr.f32.mxu0 0.0
  %740 = vmatmul.mubr.f32.gmra.mrb[0].mxu0 %v664
  %v741 = vpop.f32.mrb[0].mxu0
  %v742 = vadd.f32 %v645, %v741
  %v743 = vpop.f32.mrb[0].mxu0
  %744 = vmatprep.mubr.f32.mxu0 0.0
  %745 = vmatmul.mubr.f32.gmra.mrb[0].mxu0 %v667
  %v746 = vpop.f32.mrb[0].mxu0
  %v747 = vadd.f32 %v650, %v746
  %v748 = vpop.f32.mrb[0].mxu0
  %749 = vmatprep.mubr.f32.mxu0 0.0
  %750 = vmatmul.mubr.f32.gmra.mrb[0].mxu0 %v670
  %v751 = vpop.f32.mrb[0].mxu0
  %v752 = vadd.f32 %v655, %v751
  %v753 = vpop.f32.mrb[0].mxu0
  %754 = vmatprep.mubr.f32.mxu0 0.0
  %755 = vmatmul.mubr.f32.gmra.mrb[0].mxu0 %v673
  %v756 = vpop.f32.mrb[0].mxu0
  %v757 = vadd.f32 %v660, %v756
  %v758 = vpop.f32.mrb[0].mxu0
  %759 = vdwg.mxu0
  %v760 = vld [vmem:[%s16] sm:$0xff]
  %v761 = vld [vmem:[%s16 + $0x8] sm:$0xff]
  %v762 = vld [vmem:[%s16 + $0x10] sm:$0xff]
  %v763 = vld [vmem:[%s16 + $0x18] sm:$0xff]
  %v764 = vld [vmem:[%s17] sm:$0xff]
  %v765 = vld [vmem:[%s17 + $0x8] sm:$0xff]
  %v766 = vld [vmem:[%s17 + $0x10] sm:$0xff]
  %v767 = vld [vmem:[%s17 + $0x18] sm:$0xff]
  %769 = vset.pattern.permute.xlu0 0
  %770 = vperm.xlu0 %769, %v764
  %v771 = vpop.permute.xlu0 %770
  %774 = vset.pattern.permute.xlu0 0
  %775 = vperm.xlu0 %774, %v765
  %v776 = vpop.permute.xlu0 %775
  %779 = vset.pattern.permute.xlu0 0
  %780 = vperm.xlu0 %779, %v766
  %v781 = vpop.permute.xlu0 %780
  %784 = vset.pattern.permute.xlu0 0
  %785 = vperm.xlu0 %784, %v767
  %v786 = vpop.permute.xlu0 %785
  %v789 = vsel %vm662, %v760, 0
  %v792 = vsel %vm662, %v761, 0
  %v795 = vsel %vm662, %v762, 0
  %v798 = vsel %vm662, %v763, 0
  %800 = vmatprep.subr.mxu0 0.0
  %801 = vmatpush1.msra.mxu0 %v630
  %802 = vmatprep.subr.mxu0 0.0
  %803 = vmatpush1.msra.mxu0 %v631
  %804 = vmatprep.subr.mxu0 0.0
  %805 = vmatpush1.msra.mxu0 %v632
  %806 = vmatprep.subr.mxu0 0.0
  %807 = vmatpush1.msra.mxu0 %v633
  %808 = vmatprep.subr.mxu0 0.0
  %809 = vmatpush1.msra.mxu0 0.0
  %810 = vmatprep.subr.mxu0 0.0
  %811 = vmatpush1.msra.mxu0 0.0
  %812 = vmatprep.subr.mxu0 0.0
  %813 = vmatpush1.msra.mxu0 0.0
  %814 = vmatprep.subr.mxu0 0.0
  %815 = vmatpush1.msra.mxu0 0.0
  %816 = vmatprep.subr.mxu0 0.0
  %817 = vmatpush1.msra.mxu0 0.0
  %818 = vmatprep.subr.mxu0 0.0
  %819 = vmatpush1.msra.mxu0 0.0
  %820 = vmatprep.subr.mxu0 0.0
  %821 = vmatpush1.msra.mxu0 0.0
  %822 = vmatprep.subr.mxu0 0.0
  %823 = vmatpush1.msra.mxu0 0.0
  %824 = vmatprep.subr.mxu0 0.0
  %825 = vmatpush1.msra.mxu0 0.0
  %826 = vmatprep.subr.mxu0 0.0
  %827 = vmatpush1.msra.mxu0 0.0
  %828 = vmatprep.subr.mxu0 0.0
  %829 = vmatpush1.msra.mxu0 0.0
  %830 = vmatprep.subr.mxu0 0.0
  %831 = vmatpush1.msra.mxu0 0.0
  %832 = vmatprep.subr.mxu0 0.0
  %833 = vmatpush1.msra.mxu0 0.0
  %834 = vmatprep.subr.mxu0 0.0
  %835 = vmatpush1.msra.mxu0 0.0
  %836 = vmatprep.subr.mxu0 0.0
  %837 = vmatpush1.msra.mxu0 0.0
  %838 = vmatprep.subr.mxu0 0.0
  %839 = vmatpush1.msra.mxu0 0.0
  %840 = vmatprep.subr.mxu0 0.0
  %841 = vmatpush1.msra.mxu0 0.0
  %842 = vmatprep.subr.mxu0 0.0
  %843 = vmatpush1.msra.mxu0 0.0
  %844 = vmatprep.subr.mxu0 0.0
  %845 = vmatpush1.msra.mxu0 0.0
  %846 = vmatprep.subr.mxu0 0.0
  %847 = vmatpush1.msra.mxu0 0.0
  %848 = vmatprep.subr.mxu0 0.0
  %849 = vmatpush1.msra.mxu0 0.0
  %850 = vmatprep.subr.mxu0 0.0
  %851 = vmatpush1.msra.mxu0 0.0
  %852 = vmatprep.subr.mxu0 0.0
  %853 = vmatpush1.msra.mxu0 0.0
  %854 = vmatprep.subr.mxu0 0.0
  %855 = vmatpush1.msra.mxu0 0.0
  %856 = vmatprep.subr.mxu0 0.0
  %857 = vmatpush1.msra.mxu0 0.0
  %858 = vmatprep.subr.mxu0 0.0
  %859 = vmatpush1.msra.mxu0 0.0
  %860 = vmatprep.subr.mxu0 0.0
  %861 = vmatpush1.msra.mxu0 0.0
  %862 = vmatprep.subr.mxu0 0.0
  %863 = vmatpush1.msra.mxu0 0.0
  %864 = vmatprep.mubr.f32.mxu0 0.0
  %865 = vmatmul.mubr.f32.gmra.mrb[0].mxu0 %v789
  %v866 = vpop.f32.mrb[0].mxu0
  %v867 = vadd.f32 %v771, %v866
  %v868 = vpop.f32.mrb[0].mxu0
  %869 = vmatprep.mubr.f32.mxu0 0.0
  %870 = vmatmul.mubr.f32.gmra.mrb[0].mxu0 %v792
  %v871 = vpop.f32.mrb[0].mxu0
  %v872 = vadd.f32 %v776, %v871
  %v873 = vpop.f32.mrb[0].mxu0
  %874 = vmatprep.mubr.f32.mxu0 0.0
  %875 = vmatmul.mubr.f32.gmra.mrb[0].mxu0 %v795
  %v876 = vpop.f32.mrb[0].mxu0
  %v877 = vadd.f32 %v781, %v876
  %v878 = vpop.f32.mrb[0].mxu0
  %879 = vmatprep.mubr.f32.mxu0 0.0
  %880 = vmatmul.mubr.f32.gmra.mrb[0].mxu0 %v798
  %v881 = vpop.f32.mrb[0].mxu0
  %v882 = vadd.f32 %v786, %v881
  %v883 = vpop.f32.mrb[0].mxu0
  %884 = vdwg.mxu0
  %v885 = vld [vmem:[%s18] sm:$0xff]
  %v886 = vld [vmem:[%s18 + $0x8] sm:$0xff]
  %v887 = vld [vmem:[%s18 + $0x10] sm:$0xff]
  %v888 = vld [vmem:[%s18 + $0x18] sm:$0xff]
  %v889 = vld [vmem:[%s19] sm:$0xff]
  %v890 = vld [vmem:[%s19 + $0x8] sm:$0xff]
  %v891 = vld [vmem:[%s19 + $0x10] sm:$0xff]
  %v892 = vld [vmem:[%s19 + $0x18] sm:$0xff]
  %v894 = vsel %vm662, %v889, 0
  %v897 = vsel %vm662, %v890, 0
  %v900 = vsel %vm662, %v891, 0
  %v903 = vsel %vm662, %v892, 0
  %905 = vmatprep.subr.mxu0 0.0
  %906 = vmatpush1.msra.mxu0 %v742
  %907 = vmatprep.subr.mxu0 0.0
  %908 = vmatpush1.msra.mxu0 %v747
  %909 = vmatprep.subr.mxu0 0.0
  %910 = vmatpush1.msra.mxu0 %v752
  %911 = vmatprep.subr.mxu0 0.0
  %912 = vmatpush1.msra.mxu0 %v757
  %913 = vmatprep.subr.mxu0 0.0
  %914 = vmatpush1.msra.mxu0 0.0
  %915 = vmatprep.subr.mxu0 0.0
  %916 = vmatpush1.msra.mxu0 0.0
  %917 = vmatprep.subr.mxu0 0.0
  %918 = vmatpush1.msra.mxu0 0.0
  %919 = vmatprep.subr.mxu0 0.0
  %920 = vmatpush1.msra.mxu0 0.0
  %921 = vmatprep.subr.mxu0 0.0
  %922 = vmatpush1.msra.mxu0 0.0
  %923 = vmatprep.subr.mxu0 0.0
  %924 = vmatpush1.msra.mxu0 0.0
  %925 = vmatprep.subr.mxu0 0.0
  %926 = vmatpush1.msra.mxu0 0.0
  %927 = vmatprep.subr.mxu0 0.0
  %928 = vmatpush1.msra.mxu0 0.0
  %929 = vmatprep.subr.mxu0 0.0
  %930 = vmatpush1.msra.mxu0 0.0
  %931 = vmatprep.subr.mxu0 0.0
  %932 = vmatpush1.msra.mxu0 0.0
  %933 = vmatprep.subr.mxu0 0.0
  %934 = vmatpush1.msra.mxu0 0.0
  %935 = vmatprep.subr.mxu0 0.0
  %936 = vmatpush1.msra.mxu0 0.0
  %937 = vmatprep.subr.mxu0 0.0
  %938 = vmatpush1.msra.mxu0 0.0
  %939 = vmatprep.subr.mxu0 0.0
  %940 = vmatpush1.msra.mxu0 0.0
  %941 = vmatprep.subr.mxu0 0.0
  %942 = vmatpush1.msra.mxu0 0.0
  %943 = vmatprep.subr.mxu0 0.0
  %944 = vmatpush1.msra.mxu0 0.0
  %945 = vmatprep.subr.mxu0 0.0
  %946 = vmatpush1.msra.mxu0 0.0
  %947 = vmatprep.subr.mxu0 0.0
  %948 = vmatpush1.msra.mxu0 0.0
  %949 = vmatprep.subr.mxu0 0.0
  %950 = vmatpush1.msra.mxu0 0.0
  %951 = vmatprep.subr.mxu0 0.0
  %952 = vmatpush1.msra.mxu0 0.0
  %953 = vmatprep.subr.mxu0 0.0
  %954 = vmatpush1.msra.mxu0 0.0
  %955 = vmatprep.subr.mxu0 0.0
  %956 = vmatpush1.msra.mxu0 0.0
  %957 = vmatprep.subr.mxu0 0.0
  %958 = vmatpush1.msra.mxu0 0.0
  %959 = vmatprep.subr.mxu0 0.0
  %960 = vmatpush1.msra.mxu0 0.0
  %961 = vmatprep.subr.mxu0 0.0
  %962 = vmatpush1.msra.mxu0 0.0
  %963 = vmatprep.subr.mxu0 0.0
  %964 = vmatpush1.msra.mxu0 0.0
  %965 = vmatprep.subr.mxu0 0.0
  %966 = vmatpush1.msra.mxu0 0.0
  %967 = vmatprep.subr.mxu0 0.0
  %968 = vmatpush1.msra.mxu0 0.0
  %969 = vmatprep.mubr.f32.mxu0 0.0
  %970 = vmatmul.mubr.f32.gmra.mrb[0].mxu0 %v894
  %v971 = vpop.f32.mrb[0].mxu0
  %v972 = vadd.f32 0.0, %v971
  %v973 = vpop.f32.mrb[0].mxu0
  %974 = vmatprep.mubr.f32.mxu0 0.0
  %975 = vmatmul.mubr.f32.gmra.mrb[0].mxu0 %v897
  %v976 = vpop.f32.mrb[0].mxu0
  %v977 = vadd.f32 0.0, %v976
  %v978 = vpop.f32.mrb[0].mxu0
  %979 = vmatprep.mubr.f32.mxu0 0.0
  %980 = vmatmul.mubr.f32.gmra.mrb[0].mxu0 %v900
  %v981 = vpop.f32.mrb[0].mxu0
  %v982 = vadd.f32 0.0, %v981
  %v983 = vpop.f32.mrb[0].mxu0
  %984 = vmatprep.mubr.f32.mxu0 0.0
  %985 = vmatmul.mubr.f32.gmra.mrb[0].mxu0 %v903
  %v986 = vpop.f32.mrb[0].mxu0
  %v987 = vadd.f32 0.0, %v986
  %v988 = vpop.f32.mrb[0].mxu0
  %989 = vdwg.mxu0
  %v991 = vsel %vm306, %v885, 0
  %v994 = vsel %vm306, %v886, 0
  %v997 = vsel %vm306, %v887, 0
  %v1000 = vsel %vm306, %v888, 0
  %1002 = vmatprep.subr.mxu0 0.0
  %1003 = vmatpush1.msra.mxu0 %v204
  %1004 = vmatprep.subr.mxu0 0.0
  %1005 = vmatpush1.msra.mxu0 %v209
  %1006 = vmatprep.subr.mxu0 0.0
  %1007 = vmatpush1.msra.mxu0 %v214
  %1008 = vmatprep.subr.mxu0 0.0
  %1009 = vmatpush1.msra.mxu0 0.0
  %1010 = vmatprep.subr.mxu0 0.0
  %1011 = vmatpush1.msra.mxu0 0.0
  %1012 = vmatprep.subr.mxu0 0.0
  %1013 = vmatpush1.msra.mxu0 0.0
  %1014 = vmatprep.subr.mxu0 0.0
  %1015 = vmatpush1.msra.mxu0 0.0
  %1016 = vmatprep.subr.mxu0 0.0
  %1017 = vmatpush1.msra.mxu0 0.0
  %1018 = vmatprep.subr.mxu0 0.0
  %1019 = vmatpush1.msra.mxu0 0.0
  %1020 = vmatprep.subr.mxu0 0.0
  %1021 = vmatpush1.msra.mxu0 0.0
  %1022 = vmatprep.subr.mxu0 0.0
  %1023 = vmatpush1.msra.mxu0 0.0
  %1024 = vmatprep.subr.mxu0 0.0
  %1025 = vmatpush1.msra.mxu0 0.0
  %1026 = vmatprep.subr.mxu0 0.0
  %1027 = vmatpush1.msra.mxu0 0.0
  %1028 = vmatprep.subr.mxu0 0.0
  %1029 = vmatpush1.msra.mxu0 0.0
  %1030 = vmatprep.subr.mxu0 0.0
  %1031 = vmatpush1.msra.mxu0 0.0
  %1032 = vmatprep.subr.mxu0 0.0
  %1033 = vmatpush1.msra.mxu0 0.0
  %1034 = vmatprep.subr.mxu0 0.0
  %1035 = vmatpush1.msra.mxu0 0.0
  %1036 = vmatprep.subr.mxu0 0.0
  %1037 = vmatpush1.msra.mxu0 0.0
  %1038 = vmatprep.subr.mxu0 0.0
  %1039 = vmatpush1.msra.mxu0 0.0
  %1040 = vmatprep.subr.mxu0 0.0
  %1041 = vmatpush1.msra.mxu0 0.0
  %1042 = vmatprep.subr.mxu0 0.0
  %1043 = vmatpush1.msra.mxu0 0.0
  %1044 = vmatprep.subr.mxu0 0.0
  %1045 = vmatpush1.msra.mxu0 0.0
  %1046 = vmatprep.subr.mxu0 0.0
  %1047 = vmatpush1.msra.mxu0 0.0
  %1048 = vmatprep.subr.mxu0 0.0
  %1049 = vmatpush1.msra.mxu0 0.0
  %1050 = vmatprep.subr.mxu0 0.0
  %1051 = vmatpush1.msra.mxu0 0.0
  %1052 = vmatprep.subr.mxu0 0.0
  %1053 = vmatpush1.msra.mxu0 0.0
  %1054 = vmatprep.subr.mxu0 0.0
  %1055 = vmatpush1.msra.mxu0 0.0
  %1056 = vmatprep.subr.mxu0 0.0
  %1057 = vmatpush1.msra.mxu0 0.0
  %1058 = vmatprep.subr.mxu0 0.0
  %1059 = vmatpush1.msra.mxu0 0.0
  %1060 = vmatprep.subr.mxu0 0.0
  %1061 = vmatpush1.msra.mxu0 0.0
  %1062 = vmatprep.subr.mxu0 0.0
  %1063 = vmatpush1.msra.mxu0 0.0
  %1064 = vmatprep.subr.mxu0 0.0
  %1065 = vmatpush1.msra.mxu0 0.0
  %1066 = vmatprep.mubr.f32.mxu0 0.0
  %1067 = vmatmul.mubr.f32.gmra.mrb[0].mxu0 %v991
  %v1068 = vpop.f32.mrb[0].mxu0
  %v1069 = vadd.f32 %v972, %v1068
  %v1070 = vpop.f32.mrb[0].mxu0
  %1071 = vmatprep.mubr.f32.mxu0 0.0
  %1072 = vmatmul.mubr.f32.gmra.mrb[0].mxu0 %v994
  %v1073 = vpop.f32.mrb[0].mxu0
  %v1074 = vadd.f32 %v977, %v1073
  %v1075 = vpop.f32.mrb[0].mxu0
  %1076 = vmatprep.mubr.f32.mxu0 0.0
  %1077 = vmatmul.mubr.f32.gmra.mrb[0].mxu0 %v997
  %v1078 = vpop.f32.mrb[0].mxu0
  %v1079 = vadd.f32 %v982, %v1078
  %v1080 = vpop.f32.mrb[0].mxu0
  %1081 = vmatprep.mubr.f32.mxu0 0.0
  %1082 = vmatmul.mubr.f32.gmra.mrb[0].mxu0 %v1000
  %v1083 = vpop.f32.mrb[0].mxu0
  %v1084 = vadd.f32 %v987, %v1083
  %v1085 = vpop.f32.mrb[0].mxu0
  %1086 = vdwg.mxu0
  %v1087 = vld [vmem:[%s20] sm:$0xff]
  %v1088 = vld [vmem:[%s20 + $0x8] sm:$0xff]
  %v1089 = vld [vmem:[%s20 + $0x10] sm:$0xff]
  %v1090 = vld [vmem:[%s20 + $0x18] sm:$0xff]
  %v1092 = vsel %vm662, %v1087, 0
  %v1095 = vsel %vm662, %v1088, 0
  %v1098 = vsel %vm662, %v1089, 0
  %v1101 = vsel %vm662, %v1090, 0
  %1103 = vmatprep.subr.mxu0 0.0
  %1104 = vmatpush1.msra.mxu0 %v867
  %1105 = vmatprep.subr.mxu0 0.0
  %1106 = vmatpush1.msra.mxu0 %v872
  %1107 = vmatprep.subr.mxu0 0.0
  %1108 = vmatpush1.msra.mxu0 %v877
  %1109 = vmatprep.subr.mxu0 0.0
  %1110 = vmatpush1.msra.mxu0 %v882
  %1111 = vmatprep.subr.mxu0 0.0
  %1112 = vmatpush1.msra.mxu0 0.0
  %1113 = vmatprep.subr.mxu0 0.0
  %1114 = vmatpush1.msra.mxu0 0.0
  %1115 = vmatprep.subr.mxu0 0.0
  %1116 = vmatpush1.msra.mxu0 0.0
  %1117 = vmatprep.subr.mxu0 0.0
  %1118 = vmatpush1.msra.mxu0 0.0
  %1119 = vmatprep.subr.mxu0 0.0
  %1120 = vmatpush1.msra.mxu0 0.0
  %1121 = vmatprep.subr.mxu0 0.0
  %1122 = vmatpush1.msra.mxu0 0.0
  %1123 = vmatprep.subr.mxu0 0.0
  %1124 = vmatpush1.msra.mxu0 0.0
  %1125 = vmatprep.subr.mxu0 0.0
  %1126 = vmatpush1.msra.mxu0 0.0
  %1127 = vmatprep.subr.mxu0 0.0
  %1128 = vmatpush1.msra.mxu0 0.0
  %1129 = vmatprep.subr.mxu0 0.0
  %1130 = vmatpush1.msra.mxu0 0.0
  %1131 = vmatprep.subr.mxu0 0.0
  %1132 = vmatpush1.msra.mxu0 0.0
  %1133 = vmatprep.subr.mxu0 0.0
  %1134 = vmatpush1.msra.mxu0 0.0
  %1135 = vmatprep.subr.mxu0 0.0
  %1136 = vmatpush1.msra.mxu0 0.0
  %1137 = vmatprep.subr.mxu0 0.0
  %1138 = vmatpush1.msra.mxu0 0.0
  %1139 = vmatprep.subr.mxu0 0.0
  %1140 = vmatpush1.msra.mxu0 0.0
  %1141 = vmatprep.subr.mxu0 0.0
  %1142 = vmatpush1.msra.mxu0 0.0
  %1143 = vmatprep.subr.mxu0 0.0
  %1144 = vmatpush1.msra.mxu0 0.0
  %1145 = vmatprep.subr.mxu0 0.0
  %1146 = vmatpush1.msra.mxu0 0.0
  %1147 = vmatprep.subr.mxu0 0.0
  %1148 = vmatpush1.msra.mxu0 0.0
  %1149 = vmatprep.subr.mxu0 0.0
  %1150 = vmatpush1.msra.mxu0 0.0
  %1151 = vmatprep.subr.mxu0 0.0
  %1152 = vmatpush1.msra.mxu0 0.0
  %1153 = vmatprep.subr.mxu0 0.0
  %1154 = vmatpush1.msra.mxu0 0.0
  %1155 = vmatprep.subr.mxu0 0.0
  %1156 = vmatpush1.msra.mxu0 0.0
  %1157 = vmatprep.subr.mxu0 0.0
  %1158 = vmatpush1.msra.mxu0 0.0
  %1159 = vmatprep.subr.mxu0 0.0
  %1160 = vmatpush1.msra.mxu0 0.0
  %1161 = vmatprep.subr.mxu0 0.0
  %1162 = vmatpush1.msra.mxu0 0.0
  %1163 = vmatprep.subr.mxu0 0.0
  %1164 = vmatpush1.msra.mxu0 0.0
  %1165 = vmatprep.subr.mxu0 0.0
  %1166 = vmatpush1.msra.mxu0 0.0
  %1167 = vmatprep.mubr.f32.mxu0 0.0
  %1168 = vmatmul.mubr.f32.gmra.mrb[0].mxu0 %v1092
  %v1169 = vpop.f32.mrb[0].mxu0
  %v1170 = vadd.f32 0.0, %v1169
  %v1171 = vpop.f32.mrb[0].mxu0
  %1172 = vmatprep.mubr.f32.mxu0 0.0
  %1173 = vmatmul.mubr.f32.gmra.mrb[0].mxu0 %v1095
  %v1174 = vpop.f32.mrb[0].mxu0
  %v1175 = vadd.f32 0.0, %v1174
  %v1176 = vpop.f32.mrb[0].mxu0
  %1177 = vmatprep.mubr.f32.mxu0 0.0
  %1178 = vmatmul.mubr.f32.gmra.mrb[0].mxu0 %v1098
  %v1179 = vpop.f32.mrb[0].mxu0
  %v1180 = vadd.f32 0.0, %v1179
  %v1181 = vpop.f32.mrb[0].mxu0
  %1182 = vmatprep.mubr.f32.mxu0 0.0
  %1183 = vmatmul.mubr.f32.gmra.mrb[0].mxu0 %v1101
  %v1184 = vpop.f32.mrb[0].mxu0
  %v1185 = vadd.f32 0.0, %v1184
  %v1186 = vpop.f32.mrb[0].mxu0
  %1187 = vdwg.mxu0
  %v1188 = vadd.f32 %v1069, %v1170
  %v1189 = vadd.f32 %v1074, %v1175
  %v1190 = vadd.f32 %v1079, %v1180
  %v1191 = vadd.f32 %v1084, %v1185
  %v1192 = vld [vmem:[%s21] sm:$0xff]
  %v1193 = vld [vmem:[%s21 + $0x8] sm:$0xff]
  %v1194 = vld [vmem:[%s21 + $0x10] sm:$0xff]
  %v1195 = vld [vmem:[%s21 + $0x18] sm:$0xff]
  %1197 = vset.pattern.permute.xlu0 0
  %1198 = vperm.xlu0 %1197, %v1192
  %v1199 = vpop.permute.xlu0 %1198
  %1202 = vset.pattern.permute.xlu0 0
  %1203 = vperm.xlu0 %1202, %v1193
  %v1204 = vpop.permute.xlu0 %1203
  %1207 = vset.pattern.permute.xlu0 0
  %1208 = vperm.xlu0 %1207, %v1194
  %v1209 = vpop.permute.xlu0 %1208
  %1212 = vset.pattern.permute.xlu0 0
  %1213 = vperm.xlu0 %1212, %v1195
  %v1214 = vpop.permute.xlu0 %1213
  %v1216 = vadd.f32 %v1188, %v1199
  %v1217 = vadd.f32 %v1189, %v1204
  %v1218 = vadd.f32 %v1190, %v1209
  %v1219 = vadd.f32 %v1191, %v1214
  %v1220 = vxor.u32 %v1216, 2147483648
  %v1221 = vxor.u32 %v1217, 2147483648
  %v1222 = vxor.u32 %v1218, 2147483648
  %v1223 = vxor.u32 %v1219, 2147483648
  %v1224 = vmul.f32 %v1220, 1.442695
  %v1225 = vpow.pop %v1224
  %v1226 = vmul.f32 %v1221, 1.442695
  %v1227 = vpow.pop %v1226
  %v1228 = vmul.f32 %v1222, 1.442695
  %v1229 = vpow.pop %v1228
  %v1230 = vmul.f32 %v1223, 1.442695
  %v1231 = vpow.pop %v1230
  %v1232 = vadd.f32 %v1225, 1.0
  %v1233 = vadd.f32 %v1227, 1.0
  %v1234 = vadd.f32 %v1229, 1.0
  %v1235 = vadd.f32 %v1231, 1.0
  %v1236 = vrcp.pop %v1232
  %v1237 = vmul.f32 1.0, %v1236
  %v1238 = vrcp.pop %v1233
  %v1239 = vmul.f32 1.0, %v1238
  %v1240 = vrcp.pop %v1234
  %v1241 = vmul.f32 1.0, %v1240
  %v1242 = vrcp.pop %v1235
  %v1243 = vmul.f32 1.0, %v1242
  %v1244 = vmul.f32 %v1216, %v1237
  %v1245 = vmul.f32 %v1217, %v1239
  %v1246 = vmul.f32 %v1218, %v1241
  %v1247 = vmul.f32 %v1219, %v1243
  %v1249 = vlaneseq
  %v1250 = vshrl.u32 %v1249, 7
  %v1251 = vsub.s32 0, %v1250
  %v1252 = vrot.slane %v83, %v1251
  %v1254 = vmul.f32 %v1244, %v1252
  %v1255 = vmul.f32 %v1245, %v1252
  %v1256 = vmul.f32 %v1246, %v1252
  %v1257 = vmul.f32 %v1247, %v1252
  %v1258 = vld [vmem:[%s22] sm:$0xff]
  %v1259 = vld [vmem:[%s22 + $0x8] sm:$0xff]
  %v1260 = vld [vmem:[%s23] sm:$0xff]
  %v1261 = vld [vmem:[%s23 + $0x8] sm:$0xff]
  %1263 = vset.pattern.permute.xlu0 0
  %1264 = vperm.xlu0 %1263, %v1260
  %v1265 = vpop.permute.xlu0 %1264
  %1268 = vset.pattern.permute.xlu0 0
  %1269 = vperm.xlu0 %1268, %v1261
  %v1270 = vpop.permute.xlu0 %1269
  %v1273 = vsel %vm662, %v1258, 0
  %v1276 = vsel %vm662, %v1259, 0
  %1278 = vmatprep.subr.mxu0 0.0
  %1279 = vmatpush1.msra.mxu0 %v1254
  %1280 = vmatprep.subr.mxu0 0.0
  %1281 = vmatpush1.msra.mxu0 %v1255
  %1282 = vmatprep.subr.mxu0 0.0
  %1283 = vmatpush1.msra.mxu0 %v1256
  %1284 = vmatprep.subr.mxu0 0.0
  %1285 = vmatpush1.msra.mxu0 %v1257
  %1286 = vmatprep.subr.mxu0 0.0
  %1287 = vmatpush1.msra.mxu0 0.0
  %1288 = vmatprep.subr.mxu0 0.0
  %1289 = vmatpush1.msra.mxu0 0.0
  %1290 = vmatprep.subr.mxu0 0.0
  %1291 = vmatpush1.msra.mxu0 0.0
  %1292 = vmatprep.subr.mxu0 0.0
  %1293 = vmatpush1.msra.mxu0 0.0
  %1294 = vmatprep.subr.mxu0 0.0
  %1295 = vmatpush1.msra.mxu0 0.0
  %1296 = vmatprep.subr.mxu0 0.0
  %1297 = vmatpush1.msra.mxu0 0.0
  %1298 = vmatprep.subr.mxu0 0.0
  %1299 = vmatpush1.msra.mxu0 0.0
  %1300 = vmatprep.subr.mxu0 0.0
  %1301 = vmatpush1.msra.mxu0 0.0
  %1302 = vmatprep.subr.mxu0 0.0
  %1303 = vmatpush1.msra.mxu0 0.0
  %1304 = vmatprep.subr.mxu0 0.0
  %1305 = vmatpush1.msra.mxu0 0.0
  %1306 = vmatprep.subr.mxu0 0.0
  %1307 = vmatpush1.msra.mxu0 0.0
  %1308 = vmatprep.subr.mxu0 0.0
  %1309 = vmatpush1.msra.mxu0 0.0
  %1310 = vmatprep.subr.mxu0 0.0
  %1311 = vmatpush1.msra.mxu0 0.0
  %1312 = vmatprep.subr.mxu0 0.0
  %1313 = vmatpush1.msra.mxu0 0.0
  %1314 = vmatprep.subr.mxu0 0.0
  %1315 = vmatpush1.msra.mxu0 0.0
  %1316 = vmatprep.subr.mxu0 0.0
  %1317 = vmatpush1.msra.mxu0 0.0
  %1318 = vmatprep.subr.mxu0 0.0
  %1319 = vmatpush1.msra.mxu0 0.0
  %1320 = vmatprep.subr.mxu0 0.0
  %1321 = vmatpush1.msra.mxu0 0.0
  %1322 = vmatprep.subr.mxu0 0.0
  %1323 = vmatpush1.msra.mxu0 0.0
  %1324 = vmatprep.subr.mxu0 0.0
  %1325 = vmatpush1.msra.mxu0 0.0
  %1326 = vmatprep.subr.mxu0 0.0
  %1327 = vmatpush1.msra.mxu0 0.0
  %1328 = vmatprep.subr.mxu0 0.0
  %1329 = vmatpush1.msra.mxu0 0.0
  %1330 = vmatprep.subr.mxu0 0.0
  %1331 = vmatpush1.msra.mxu0 0.0
  %1332 = vmatprep.subr.mxu0 0.0
  %1333 = vmatpush1.msra.mxu0 0.0
  %1334 = vmatprep.subr.mxu0 0.0
  %1335 = vmatpush1.msra.mxu0 0.0
  %1336 = vmatprep.subr.mxu0 0.0
  %1337 = vmatpush1.msra.mxu0 0.0
  %1338 = vmatprep.subr.mxu0 0.0
  %1339 = vmatpush1.msra.mxu0 0.0
  %1340 = vmatprep.subr.mxu0 0.0
  %1341 = vmatpush1.msra.mxu0 0.0
  %1342 = vmatprep.mubr.f32.mxu0 0.0
  %1343 = vmatmul.mubr.f32.gmra.mrb[0].mxu0 %v1273
  %v1344 = vpop.f32.mrb[0].mxu0
  %v1345 = vadd.f32 %v1265, %v1344
  %v1346 = vpop.f32.mrb[0].mxu0
  %1347 = vmatprep.mubr.f32.mxu0 0.0
  %1348 = vmatmul.mubr.f32.gmra.mrb[0].mxu0 %v1276
  %v1349 = vpop.f32.mrb[0].mxu0
  %v1350 = vadd.f32 %v1270, %v1349
  %v1351 = vpop.f32.mrb[0].mxu0
  %1352 = vdwg.mxu0
  %v1353 = vxor.u32 %v1345, 2147483648
  %v1354 = vxor.u32 %v1350, 2147483648
  %v1355 = vmul.f32 %v1353, 1.442695
  %v1356 = vpow.pop %v1355
  %v1357 = vmul.f32 %v1354, 1.442695
  %v1358 = vpow.pop %v1357
  %v1359 = vadd.f32 %v1356, 1.0
  %v1360 = vadd.f32 %v1358, 1.0
  %v1361 = vrcp.pop %v1359
  %v1362 = vmul.f32 1.0, %v1361
  %v1363 = vrcp.pop %v1360
  %v1364 = vmul.f32 1.0, %v1363
  %v1365 = vmul.f32 %v1345, %v1362
  %v1366 = vmul.f32 %v1350, %v1364
  %v1367 = vld [vmem:[%s24] sm:$0xff]
  %v1368 = vld [vmem:[%s25] sm:$0xff]
  %1370 = vset.pattern.permute.xlu0 0
  %1371 = vperm.xlu0 %1370, %v1368
  %v1372 = vpop.permute.xlu0 %1371
  %vm1374 = vcmask 130048
  %v1376 = vsel %vm1374, %v1367, 0
  %1378 = vmatprep.subr.mxu0 0.0
  %1379 = vmatpush1.msra.mxu0 %v1365
  %1380 = vmatprep.subr.mxu0 0.0
  %1381 = vmatpush1.msra.mxu0 %v1366
  %1382 = vmatprep.subr.mxu0 0.0
  %1383 = vmatpush1.msra.mxu0 0.0
  %1384 = vmatprep.subr.mxu0 0.0
  %1385 = vmatpush1.msra.mxu0 0.0
  %1386 = vmatprep.subr.mxu0 0.0
  %1387 = vmatpush1.msra.mxu0 0.0
  %1388 = vmatprep.subr.mxu0 0.0
  %1389 = vmatpush1.msra.mxu0 0.0
  %1390 = vmatprep.subr.mxu0 0.0
  %1391 = vmatpush1.msra.mxu0 0.0
  %1392 = vmatprep.subr.mxu0 0.0
  %1393 = vmatpush1.msra.mxu0 0.0
  %1394 = vmatprep.subr.mxu0 0.0
  %1395 = vmatpush1.msra.mxu0 0.0
  %1396 = vmatprep.subr.mxu0 0.0
  %1397 = vmatpush1.msra.mxu0 0.0
  %1398 = vmatprep.subr.mxu0 0.0
  %1399 = vmatpush1.msra.mxu0 0.0
  %1400 = vmatprep.subr.mxu0 0.0
  %1401 = vmatpush1.msra.mxu0 0.0
  %1402 = vmatprep.subr.mxu0 0.0
  %1403 = vmatpush1.msra.mxu0 0.0
  %1404 = vmatprep.subr.mxu0 0.0
  %1405 = vmatpush1.msra.mxu0 0.0
  %1406 = vmatprep.subr.mxu0 0.0
  %1407 = vmatpush1.msra.mxu0 0.0
  %1408 = vmatprep.subr.mxu0 0.0
  %1409 = vmatpush1.msra.mxu0 0.0
  %1410 = vmatprep.subr.mxu0 0.0
  %1411 = vmatpush1.msra.mxu0 0.0
  %1412 = vmatprep.subr.mxu0 0.0
  %1413 = vmatpush1.msra.mxu0 0.0
  %1414 = vmatprep.subr.mxu0 0.0
  %1415 = vmatpush1.msra.mxu0 0.0
  %1416 = vmatprep.subr.mxu0 0.0
  %1417 = vmatpush1.msra.mxu0 0.0
  %1418 = vmatprep.subr.mxu0 0.0
  %1419 = vmatpush1.msra.mxu0 0.0
  %1420 = vmatprep.subr.mxu0 0.0
  %1421 = vmatpush1.msra.mxu0 0.0
  %1422 = vmatprep.subr.mxu0 0.0
  %1423 = vmatpush1.msra.mxu0 0.0
  %1424 = vmatprep.subr.mxu0 0.0
  %1425 = vmatpush1.msra.mxu0 0.0
  %1426 = vmatprep.subr.mxu0 0.0
  %1427 = vmatpush1.msra.mxu0 0.0
  %1428 = vmatprep.subr.mxu0 0.0
  %1429 = vmatpush1.msra.mxu0 0.0
  %1430 = vmatprep.subr.mxu0 0.0
  %1431 = vmatpush1.msra.mxu0 0.0
  %1432 = vmatprep.subr.mxu0 0.0
  %1433 = vmatpush1.msra.mxu0 0.0
  %1434 = vmatprep.subr.mxu0 0.0
  %1435 = vmatpush1.msra.mxu0 0.0
  %1436 = vmatprep.subr.mxu0 0.0
  %1437 = vmatpush1.msra.mxu0 0.0
  %1438 = vmatprep.subr.mxu0 0.0
  %1439 = vmatpush1.msra.mxu0 0.0
  %1440 = vmatprep.subr.mxu0 0.0
  %1441 = vmatpush1.msra.mxu0 0.0
  %1442 = vmatprep.mubr.f32.mxu0 0.0
  %1443 = vmatmul.mubr.f32.gmra.mrb[0].mxu0 %v1376
  %v1444 = vpop.f32.mrb[0].mxu0
  %v1445 = vadd.f32 %v1372, %v1444
  %v1446 = vpop.f32.mrb[0].mxu0
  %1447 = vdwg.mxu0
  %v1448 = vmul.f32 %v1445, %v1252
  %1449 = vst [vmem:[%s26] sm:$0xff] %v1448
  // Predicated region
  $region106: #{af2cg_forward.3} parent=0 // pred_check
    _
  $region107: #{af2cg_forward.3} parent=0 // pred_check_branch
    %1451 = sbr.rel (0) target = $region109
  $region108: #{af2cg_forward.3} parent=0 // pred_region
    _
  $region109: #{af2cg_forward.3} parent=0 // pred_fallthru
    _
  // Predicated region
  $region110: #{af2cg_forward.3} parent=0 // pred_check
    _
  $region111: #{af2cg_forward.3} parent=0 // pred_check_branch
    %1453 = sbr.rel (0) target = $region113
  $region112: #{af2cg_forward.3} parent=0 // pred_region
    _
  $region113: #{af2cg_forward.3} parent=0 // pred_fallthru
    _

</llo_original>
